<compile_context>
chip_gen: v7x
topology: tpu7x:2x2x1
jax: 0.10.0
libtpu: 0.0.40
codegen_flags: <defaults>
</compile_context>

<pallas_src>
import numpy as np

import jax
import jax.numpy as jnp
from jax import lax
from jax.experimental import pallas as pl
from jax.experimental.pallas import tpu as pltpu


_BATCH_BLOCK = 4   # max batch elements fused per grid step


# ------------------------------ helpers ------------------------------

def _out_size(n):
    # output spatial size of a k=3, stride=2, pad=1 conv
    return (n + 1) // 2


def _build_sel(h, w):
    """Static one-hot gather matrices (9, out_h*out_w, h*w) for a 3x3/s2/p1 conv.

    sel[t, p, q] = 1 iff input pixel q feeds output pixel p for tap t; rows for
    out-of-range taps stay all-zero, which emulates the zero padding exactly.
    Built with numpy at trace time -> baked in as constants (no runtime cost).
    """
    oh, ow = _out_size(h), _out_size(w)
    P, Q = oh * ow, h * w
    rows = np.arange(P, dtype=np.int64)
    yo, xo = np.divmod(rows, ow)
    sel = np.zeros((9, P, Q), np.float32)
    for ky in range(3):
        for kx in range(3):
            iy = 2 * yo + (ky - 1)
            ix = 2 * xo + (kx - 1)
            valid = (iy >= 0) & (iy < h) & (ix >= 0) & (ix < w)
            q = iy * w + ix
            sel[ky * 3 + kx, rows[valid], q[valid]] = 1.0
    return sel


def _block_diag(w2d, nb):
    """(K, M) -> (nb*K, nb*M) block diagonal; rows (n, k), cols (n, m)."""
    K, M = w2d.shape
    eye = jnp.eye(nb, dtype=w2d.dtype)
    return (eye[:, None, :, None] * w2d[None, :, None, :]).reshape(nb * K, nb * M)


def _block_diag_taps(w_taps, nb):
    """(9, K, M) -> (9*nb*K, nb*M); rows ordered (tap, n, k), cols (n, m)."""
    T, K, M = w_taps.shape
    eye = jnp.eye(nb, dtype=w_taps.dtype)
    big = w_taps[:, None, :, None, :] * eye[None, :, None, :, None]
    return big.reshape(T * nb * K, nb * M)


# ---------------------------- fused kernel ----------------------------

def _fused_kernel(x_ref, sel1_ref, sel2_ref, w0_ref, b0_ref, w1_ref, b1_ref,
                  wca_ref, wcb_ref, wcc_ref, bc_ref, o_ref):
    x = x_ref[0]                                           # (HW, Nb*Cin)

    # out1 = global average pool of the input (all Nb elems lane-stacked)
    out1 = jnp.mean(x, axis=0, keepdims=True)              # (1, Nb*Cin)

    # ---- conv1: 9 static gather matmuls -> one im2col matmul -> relu ----
    slabs = [jnp.dot(sel1_ref[t], x, preferred_element_type=jnp.float32)
             for t in range(9)]
    im2col1 = jnp.concatenate(slabs, axis=-1)              # (P1, 9*Nb*Cin)
    ds1 = jnp.dot(im2col1, w0_ref[...],
                  preferred_element_type=jnp.float32) + b0_ref[...]
    ds1 = jnp.maximum(ds1, 0.0)                            # (P1, Nb*C1)
    out2 = jnp.mean(ds1, axis=0, keepdims=True)            # (1, Nb*C1)

    # ---- conv2: same structure; ds1/ds2 never leave the core ----
    slabs2 = [jnp.dot(sel2_ref[t], ds1, preferred_element_type=jnp.float32)
              for t in range(9)]
    im2col2 = jnp.concatenate(slabs2, axis=-1)             # (P2, 9*Nb*C1)
    ds2 = jnp.dot(im2col2, w1_ref[...],
                  preferred_element_type=jnp.float32) + b1_ref[...]
    ds2 = jnp.maximum(ds2, 0.0)                            # (P2, Nb*C2)
    out3 = jnp.mean(ds2, axis=0, keepdims=True)            # (1, Nb*C2)

    # final 1x1 conv == dense layer; channel concat folded into 3 partial dots
    r = (jnp.dot(out1, wca_ref[...], preferred_element_type=jnp.float32)
         + jnp.dot(out2, wcb_ref[...], preferred_element_type=jnp.float32)
         + jnp.dot(out3, wcc_ref[...], preferred_element_type=jnp.float32)
         + bc_ref[...])                                    # (1, Nb*out_dim)
    o_ref[...] = r                                         # one lane-packed store


# ------------------------------ wrapper ------------------------------

def syntax_model_forward(syntax, params):
    """syntax: (N, Cin, H, W) float32 -> (N, out_dim, 1, 1) float32."""
    N, Cin, H, W = syntax.shape
    C1 = params["w0"].shape[0]           # 32
    C2 = params["w1"].shape[0]           # 64
    out_dim = params["wc"].shape[0]
    H1, W1 = _out_size(H), _out_size(W)
    H2, W2 = _out_size(H1), _out_size(W1)
    HW, P1, P2 = H * W, H1 * W1, H2 * W2

    nb = min(N, _BATCH_BLOCK)            # batch elements fused per grid step
    G = -(-N // nb)                      # number of grid steps
    n_pad = G * nb

    # --- host-side layout prep (tiny, one-time) ---------------------------
    xin = syntax
    if n_pad != N:
        xin = jnp.concatenate(
            [xin, jnp.zeros((n_pad - N, Cin, H, W), syntax.dtype)], axis=0)
    # (N,C,H,W) -> (G, HW, Nb*Cin): spatial on rows, (batch, channel) on lanes
    xt = jnp.transpose(xin, (2, 3, 0, 1)).reshape(HW, G, nb, Cin)
    x_all = jnp.transpose(xt, (1, 0, 2, 3)).reshape(G, HW, nb * Cin)

    # static gather matrices (trace-time numpy constants)
    sel1 = jnp.asarray(_build_sel(H, W))       # (9, P1, HW)
    sel2 = jnp.asarray(_build_sel(H1, W1))     # (9, P2, P1)

    # im2col weights, block-diagonal over the Nb lane-stacked batch elements
    w0_taps = jnp.transpose(params["w0"], (2, 3, 1, 0)).reshape(9, Cin, C1)
    w1_taps = jnp.transpose(params["w1"], (2, 3, 1, 0)).reshape(9, C1, C2)
    w0_big = _block_diag_taps(w0_taps, nb)     # (9*nb*Cin, nb*C1)
    w1_big = _block_diag_taps(w1_taps, nb)     # (9*nb*C1,  nb*C2)
    b0_big = jnp.tile(params["b0"], nb)[None, :]
    b1_big = jnp.tile(params["b1"], nb)[None, :]

    wc_mat = params["wc"].reshape(out_dim, Cin + C1 + C2).T
    wca_big = _block_diag(wc_mat[:Cin], nb)            # (nb*Cin, nb*out_dim)
    wcb_big = _block_diag(wc_mat[Cin:Cin + C1], nb)    # (nb*C1,  nb*out_dim)
    wcc_big = _block_diag(wc_mat[Cin + C1:], nb)       # (nb*C2,  nb*out_dim)
    bc_big = jnp.tile(params["bc"], nb)[None, :]

    out = pl.pallas_call(
        _fused_kernel,
        out_shape=jax.ShapeDtypeStruct((G, nb * out_dim), jnp.float32),
        grid=(G,),
        in_specs=[
            pl.BlockSpec((1, HW, nb * Cin), lambda g: (g, 0, 0)),   # x block
            pl.BlockSpec((9, P1, HW), lambda g: (0, 0, 0)),         # sel1 (const)
            pl.BlockSpec((9, P2, P1), lambda g: (0, 0, 0)),         # sel2 (const)
            pl.BlockSpec(w0_big.shape, lambda g: (0, 0)),           # conv1 weight
            pl.BlockSpec(b0_big.shape, lambda g: (0, 0)),           # conv1 bias
            pl.BlockSpec(w1_big.shape, lambda g: (0, 0)),           # conv2 weight
            pl.BlockSpec(b1_big.shape, lambda g: (0, 0)),           # conv2 bias
            pl.BlockSpec(wca_big.shape, lambda g: (0, 0)),          # wc (out1)
            pl.BlockSpec(wcb_big.shape, lambda g: (0, 0)),          # wc (out2)
            pl.BlockSpec(wcc_big.shape, lambda g: (0, 0)),          # wc (out3)
            pl.BlockSpec(bc_big.shape, lambda g: (0, 0)),           # bc
        ],
        out_specs=pl.BlockSpec((1, nb * out_dim), lambda g: (g, 0)),
        compiler_params=pltpu.CompilerParams(
            dimension_semantics=("parallel",)),   # v7x: batch blocks across TCs
    )(x_all, sel1, sel2, w0_big, b0_big, w1_big, b1_big,
      wca_big, wcb_big, wcc_big, bc_big)

    # (G, nb*out_dim) -> (N, out_dim, 1, 1)
    return out.reshape(n_pad, out_dim)[:N].reshape(N, out_dim, 1, 1)


# --------------------------- parameter init ---------------------------

def init_params(key, in_dim, out_dim):
    ks = jax.random.split(key, 6)
    w0 = jax.random.normal(ks[0], (32, in_dim, 3, 3), jnp.float32) * 0.10
    b0 = jax.random.normal(ks[1], (32,), jnp.float32) * 0.10
    w1 = jax.random.normal(ks[2], (64, 32, 3, 3), jnp.float32) * 0.05
    b1 = jax.random.normal(ks[3], (64,), jnp.float32) * 0.10
    cat_dim = in_dim + 32 + 64
    wc = jax.random.normal(ks[4], (out_dim, cat_dim, 1, 1), jnp.float32) * 0.10
    bc = jax.random.normal(ks[5], (out_dim,), jnp.float32) * 0.10
    return dict(w0=w0, b0=b0, w1=w1, b1=b1, wc=wc, bc=bc)


# ------------------------- pure-JAX reference -------------------------

def _ref_conv(x, w, b, stride, pad):
    dn = lax.conv_dimension_numbers(x.shape, w.shape, ("NCHW", "OIHW", "NCHW"))
    y = lax.conv_general_dilated(x, w, (stride, stride),
                                 [(pad, pad), (pad, pad)],
                                 dimension_numbers=dn)
    return y + b[None, :, None, None]


def ref_forward(syntax, params):
    out1 = jnp.mean(syntax, axis=(2, 3), keepdims=True)
    ds1 = jnp.maximum(_ref_conv(syntax, params["w0"], params["b0"], 2, 1), 0.0)
    out2 = jnp.mean(ds1, axis=(2, 3), keepdims=True)
    ds2 = jnp.maximum(_ref_conv(ds1, params["w1"], params["b1"], 2, 1), 0.0)
    out3 = jnp.mean(ds2, axis=(2, 3), keepdims=True)
    cat = jnp.concatenate([out1, out2, out3], axis=1)
    return _ref_conv(cat, params["wc"], params["bc"], 1, 0)


# -------------------------------- main --------------------------------

if __name__ == "__main__":
    N, in_dim, H, W, out_dim = 2, 4, 16, 16, 8
    key = jax.random.PRNGKey(0)
    k_x, k_p = jax.random.split(key)
    x = jax.random.normal(k_x, (N, in_dim, H, W), jnp.float32)
    params = init_params(k_p, in_dim, out_dim)

    fwd = jax.jit(syntax_model_forward)
    out = jax.block_until_ready(fwd(x, params))
    ref = jax.block_until_ready(ref_forward(x, params))

    assert out.shape == (N, out_dim, 1, 1), out.shape
    if not jnp.allclose(out, ref, rtol=1e-4, atol=1e-4):
        max_err = float(jnp.max(jnp.abs(out - ref)))
        raise AssertionError(f"mismatch vs reference, max_err={max_err}")
    print("KERNEL_OK")
</pallas_src>

<mosaic_0001>
module attributes {stable_mosaic.version = 11 : i64} {
  func.func @_fused_kernel(%arg0: i32, %arg1: memref<1x256x8xf32, #tpu.memory_space<vmem>>, %arg2: memref<9x64x256xf32, #tpu.memory_space<vmem>>, %arg3: memref<9x16x64xf32, #tpu.memory_space<vmem>>, %arg4: memref<72x64xf32, #tpu.memory_space<vmem>>, %arg5: memref<1x64xf32, #tpu.memory_space<vmem>>, %arg6: memref<576x128xf32, #tpu.memory_space<vmem>>, %arg7: memref<1x128xf32, #tpu.memory_space<vmem>>, %arg8: memref<8x16xf32, #tpu.memory_space<vmem>>, %arg9: memref<64x16xf32, #tpu.memory_space<vmem>>, %arg10: memref<128x16xf32, #tpu.memory_space<vmem>>, %arg11: memref<1x16xf32, #tpu.memory_space<vmem>>, %arg12: memref<1x16xf32, #tpu.memory_space<vmem>>) attributes {dimension_semantics = [#tpu.dimension_semantics<parallel>], iteration_bounds = array<i64: 1>, scalar_prefetch = 0 : i64, scratch_operands = 0 : i64, tpu.core_type = #tpu.core_type<tc>, window_params = [{transform_indices = @transform_0, window_bounds = array<i64: 1, 256, 8>}, {pipeline_mode = #tpu.pipeline_mode<synchronous>, transform_indices = @transform_1, window_bounds = array<i64: 9, 64, 256>}, {pipeline_mode = #tpu.pipeline_mode<synchronous>, transform_indices = @transform_2, window_bounds = array<i64: 9, 16, 64>}, {pipeline_mode = #tpu.pipeline_mode<synchronous>, transform_indices = @transform_3, window_bounds = array<i64: 72, 64>}, {pipeline_mode = #tpu.pipeline_mode<synchronous>, transform_indices = @transform_4, window_bounds = array<i64: 1, 64>}, {pipeline_mode = #tpu.pipeline_mode<synchronous>, transform_indices = @transform_5, window_bounds = array<i64: 576, 128>}, {pipeline_mode = #tpu.pipeline_mode<synchronous>, transform_indices = @transform_6, window_bounds = array<i64: 1, 128>}, {pipeline_mode = #tpu.pipeline_mode<synchronous>, transform_indices = @transform_7, window_bounds = array<i64: 8, 16>}, {pipeline_mode = #tpu.pipeline_mode<synchronous>, transform_indices = @transform_8, window_bounds = array<i64: 64, 16>}, {pipeline_mode = #tpu.pipeline_mode<synchronous>, transform_indices = @transform_9, window_bounds = array<i64: 128, 16>}, {pipeline_mode = #tpu.pipeline_mode<synchronous>, transform_indices = @transform_10, window_bounds = array<i64: 1, 16>}, {transform_indices = @transform_11, window_bounds = array<i64: 1, 16>}]} {
    %c0 = arith.constant 0 : index
    %c0_0 = arith.constant 0 : index
    %c0_1 = arith.constant 0 : index
    %0 = vector.load %arg1[%c0, %c0_0, %c0_1] : memref<1x256x8xf32, #tpu.memory_space<vmem>>, vector<1x256x8xf32>
    %1 = vector.shape_cast %0 : vector<1x256x8xf32> to vector<256x8xf32>
    %cst = arith.constant dense<0.000000e+00> : vector<8xf32>
    %2 = vector.multi_reduction <add>, %1, %cst [0] : vector<256x8xf32> to vector<8xf32>
    %3 = vector.shape_cast %2 : vector<8xf32> to vector<1x8xf32>
    %cst_2 = arith.constant 2.560000e+02 : f32
    %4 = vector.broadcast %cst_2 : f32 to vector<1x8xf32>
    %5 = arith.divf %3, %4 : vector<1x8xf32>
    %c0_3 = arith.constant 0 : index
    %c0_4 = arith.constant 0 : index
    %c0_5 = arith.constant 0 : index
    %6 = vector.load %arg2[%c0_3, %c0_4, %c0_5] : memref<9x64x256xf32, #tpu.memory_space<vmem>>, vector<1x64x256xf32>
    %7 = vector.shape_cast %6 : vector<1x64x256xf32> to vector<64x256xf32>
    %cst_6 = arith.constant dense<0.000000e+00> : vector<64x8xf32>
    %8 = tpu.matmul %7, %1, %cst_6 {dimension_numbers = #tpu.dot_dimension_numbers<[1], [0], [0], [1], [0, 0, 1, 1], [], []>} : vector<64x256xf32>, vector<256x8xf32>, vector<64x8xf32> -> vector<64x8xf32>
    %c1 = arith.constant 1 : index
    %c0_7 = arith.constant 0 : index
    %c0_8 = arith.constant 0 : index
    %9 = vector.load %arg2[%c1, %c0_7, %c0_8] : memref<9x64x256xf32, #tpu.memory_space<vmem>>, vector<1x64x256xf32>
    %10 = vector.shape_cast %9 : vector<1x64x256xf32> to vector<64x256xf32>
    %cst_9 = arith.constant dense<0.000000e+00> : vector<64x8xf32>
    %11 = tpu.matmul %10, %1, %cst_9 {dimension_numbers = #tpu.dot_dimension_numbers<[1], [0], [0], [1], [0, 0, 1, 1], [], []>} : vector<64x256xf32>, vector<256x8xf32>, vector<64x8xf32> -> vector<64x8xf32>
    %c2 = arith.constant 2 : index
    %c0_10 = arith.constant 0 : index
    %c0_11 = arith.constant 0 : index
    %12 = vector.load %arg2[%c2, %c0_10, %c0_11] : memref<9x64x256xf32, #tpu.memory_space<vmem>>, vector<1x64x256xf32>
    %13 = vector.shape_cast %12 : vector<1x64x256xf32> to vector<64x256xf32>
    %cst_12 = arith.constant dense<0.000000e+00> : vector<64x8xf32>
    %14 = tpu.matmul %13, %1, %cst_12 {dimension_numbers = #tpu.dot_dimension_numbers<[1], [0], [0], [1], [0, 0, 1, 1], [], []>} : vector<64x256xf32>, vector<256x8xf32>, vector<64x8xf32> -> vector<64x8xf32>
    %c3 = arith.constant 3 : index
    %c0_13 = arith.constant 0 : index
    %c0_14 = arith.constant 0 : index
    %15 = vector.load %arg2[%c3, %c0_13, %c0_14] : memref<9x64x256xf32, #tpu.memory_space<vmem>>, vector<1x64x256xf32>
    %16 = vector.shape_cast %15 : vector<1x64x256xf32> to vector<64x256xf32>
    %cst_15 = arith.constant dense<0.000000e+00> : vector<64x8xf32>
    %17 = tpu.matmul %16, %1, %cst_15 {dimension_numbers = #tpu.dot_dimension_numbers<[1], [0], [0], [1], [0, 0, 1, 1], [], []>} : vector<64x256xf32>, vector<256x8xf32>, vector<64x8xf32> -> vector<64x8xf32>
    %c4 = arith.constant 4 : index
    %c0_16 = arith.constant 0 : index
    %c0_17 = arith.constant 0 : index
    %18 = vector.load %arg2[%c4, %c0_16, %c0_17] : memref<9x64x256xf32, #tpu.memory_space<vmem>>, vector<1x64x256xf32>
    %19 = vector.shape_cast %18 : vector<1x64x256xf32> to vector<64x256xf32>
    %cst_18 = arith.constant dense<0.000000e+00> : vector<64x8xf32>
    %20 = tpu.matmul %19, %1, %cst_18 {dimension_numbers = #tpu.dot_dimension_numbers<[1], [0], [0], [1], [0, 0, 1, 1], [], []>} : vector<64x256xf32>, vector<256x8xf32>, vector<64x8xf32> -> vector<64x8xf32>
    %c5 = arith.constant 5 : index
    %c0_19 = arith.constant 0 : index
    %c0_20 = arith.constant 0 : index
    %21 = vector.load %arg2[%c5, %c0_19, %c0_20] : memref<9x64x256xf32, #tpu.memory_space<vmem>>, vector<1x64x256xf32>
    %22 = vector.shape_cast %21 : vector<1x64x256xf32> to vector<64x256xf32>
    %cst_21 = arith.constant dense<0.000000e+00> : vector<64x8xf32>
    %23 = tpu.matmul %22, %1, %cst_21 {dimension_numbers = #tpu.dot_dimension_numbers<[1], [0], [0], [1], [0, 0, 1, 1], [], []>} : vector<64x256xf32>, vector<256x8xf32>, vector<64x8xf32> -> vector<64x8xf32>
    %c6 = arith.constant 6 : index
    %c0_22 = arith.constant 0 : index
    %c0_23 = arith.constant 0 : index
    %24 = vector.load %arg2[%c6, %c0_22, %c0_23] : memref<9x64x256xf32, #tpu.memory_space<vmem>>, vector<1x64x256xf32>
    %25 = vector.shape_cast %24 : vector<1x64x256xf32> to vector<64x256xf32>
    %cst_24 = arith.constant dense<0.000000e+00> : vector<64x8xf32>
    %26 = tpu.matmul %25, %1, %cst_24 {dimension_numbers = #tpu.dot_dimension_numbers<[1], [0], [0], [1], [0, 0, 1, 1], [], []>} : vector<64x256xf32>, vector<256x8xf32>, vector<64x8xf32> -> vector<64x8xf32>
    %c7 = arith.constant 7 : index
    %c0_25 = arith.constant 0 : index
    %c0_26 = arith.constant 0 : index
    %27 = vector.load %arg2[%c7, %c0_25, %c0_26] : memref<9x64x256xf32, #tpu.memory_space<vmem>>, vector<1x64x256xf32>
    %28 = vector.shape_cast %27 : vector<1x64x256xf32> to vector<64x256xf32>
    %cst_27 = arith.constant dense<0.000000e+00> : vector<64x8xf32>
    %29 = tpu.matmul %28, %1, %cst_27 {dimension_numbers = #tpu.dot_dimension_numbers<[1], [0], [0], [1], [0, 0, 1, 1], [], []>} : vector<64x256xf32>, vector<256x8xf32>, vector<64x8xf32> -> vector<64x8xf32>
    %c8 = arith.constant 8 : index
    %c0_28 = arith.constant 0 : index
    %c0_29 = arith.constant 0 : index
    %30 = vector.load %arg2[%c8, %c0_28, %c0_29] : memref<9x64x256xf32, #tpu.memory_space<vmem>>, vector<1x64x256xf32>
    %31 = vector.shape_cast %30 : vector<1x64x256xf32> to vector<64x256xf32>
    %cst_30 = arith.constant dense<0.000000e+00> : vector<64x8xf32>
    %32 = tpu.matmul %31, %1, %cst_30 {dimension_numbers = #tpu.dot_dimension_numbers<[1], [0], [0], [1], [0, 0, 1, 1], [], []>} : vector<64x256xf32>, vector<256x8xf32>, vector<64x8xf32> -> vector<64x8xf32>
    %33 = tpu.concatenate %8, %11, %14, %17, %20, %23, %26, %29, %32 in 1 : vector<64x8xf32>, vector<64x8xf32>, vector<64x8xf32>, vector<64x8xf32>, vector<64x8xf32>, vector<64x8xf32>, vector<64x8xf32>, vector<64x8xf32>, vector<64x8xf32> -> vector<64x72xf32>
    %c0_31 = arith.constant 0 : index
    %c0_32 = arith.constant 0 : index
    %34 = vector.load %arg4[%c0_31, %c0_32] : memref<72x64xf32, #tpu.memory_space<vmem>>, vector<72x64xf32>
    %cst_33 = arith.constant dense<0.000000e+00> : vector<64x64xf32>
    %35 = tpu.matmul %33, %34, %cst_33 {dimension_numbers = #tpu.dot_dimension_numbers<[1], [0], [0], [1], [0, 0, 1, 1], [], []>} : vector<64x72xf32>, vector<72x64xf32>, vector<64x64xf32> -> vector<64x64xf32>
    %c0_34 = arith.constant 0 : index
    %c0_35 = arith.constant 0 : index
    %36 = vector.load %arg5[%c0_34, %c0_35] : memref<1x64xf32, #tpu.memory_space<vmem>>, vector<1x64xf32>
    %37 = vector.broadcast %36 : vector<1x64xf32> to vector<64x64xf32>
    %38 = arith.addf %35, %37 : vector<64x64xf32>
    %cst_36 = arith.constant 0.000000e+00 : f32
    %39 = vector.broadcast %cst_36 : f32 to vector<64x64xf32>
    %40 = arith.maximumf %38, %39 : vector<64x64xf32>
    %cst_37 = arith.constant dense<0.000000e+00> : vector<64xf32>
    %41 = vector.multi_reduction <add>, %40, %cst_37 [0] : vector<64x64xf32> to vector<64xf32>
    %42 = vector.shape_cast %41 : vector<64xf32> to vector<1x64xf32>
    %cst_38 = arith.constant 6.400000e+01 : f32
    %43 = vector.broadcast %cst_38 : f32 to vector<1x64xf32>
    %44 = arith.divf %42, %43 : vector<1x64xf32>
    %c0_39 = arith.constant 0 : index
    %c0_40 = arith.constant 0 : index
    %c0_41 = arith.constant 0 : index
    %45 = vector.load %arg3[%c0_39, %c0_40, %c0_41] : memref<9x16x64xf32, #tpu.memory_space<vmem>>, vector<1x16x64xf32>
    %46 = vector.shape_cast %45 : vector<1x16x64xf32> to vector<16x64xf32>
    %cst_42 = arith.constant dense<0.000000e+00> : vector<16x64xf32>
    %47 = tpu.matmul %46, %40, %cst_42 {dimension_numbers = #tpu.dot_dimension_numbers<[1], [0], [0], [1], [0, 0, 1, 1], [], []>} : vector<16x64xf32>, vector<64x64xf32>, vector<16x64xf32> -> vector<16x64xf32>
    %c1_43 = arith.constant 1 : index
    %c0_44 = arith.constant 0 : index
    %c0_45 = arith.constant 0 : index
    %48 = vector.load %arg3[%c1_43, %c0_44, %c0_45] : memref<9x16x64xf32, #tpu.memory_space<vmem>>, vector<1x16x64xf32>
    %49 = vector.shape_cast %48 : vector<1x16x64xf32> to vector<16x64xf32>
    %cst_46 = arith.constant dense<0.000000e+00> : vector<16x64xf32>
    %50 = tpu.matmul %49, %40, %cst_46 {dimension_numbers = #tpu.dot_dimension_numbers<[1], [0], [0], [1], [0, 0, 1, 1], [], []>} : vector<16x64xf32>, vector<64x64xf32>, vector<16x64xf32> -> vector<16x64xf32>
    %c2_47 = arith.constant 2 : index
    %c0_48 = arith.constant 0 : index
    %c0_49 = arith.constant 0 : index
    %51 = vector.load %arg3[%c2_47, %c0_48, %c0_49] : memref<9x16x64xf32, #tpu.memory_space<vmem>>, vector<1x16x64xf32>
    %52 = vector.shape_cast %51 : vector<1x16x64xf32> to vector<16x64xf32>
    %cst_50 = arith.constant dense<0.000000e+00> : vector<16x64xf32>
    %53 = tpu.matmul %52, %40, %cst_50 {dimension_numbers = #tpu.dot_dimension_numbers<[1], [0], [0], [1], [0, 0, 1, 1], [], []>} : vector<16x64xf32>, vector<64x64xf32>, vector<16x64xf32> -> vector<16x64xf32>
    %c3_51 = arith.constant 3 : index
    %c0_52 = arith.constant 0 : index
    %c0_53 = arith.constant 0 : index
    %54 = vector.load %arg3[%c3_51, %c0_52, %c0_53] : memref<9x16x64xf32, #tpu.memory_space<vmem>>, vector<1x16x64xf32>
    %55 = vector.shape_cast %54 : vector<1x16x64xf32> to vector<16x64xf32>
    %cst_54 = arith.constant dense<0.000000e+00> : vector<16x64xf32>
    %56 = tpu.matmul %55, %40, %cst_54 {dimension_numbers = #tpu.dot_dimension_numbers<[1], [0], [0], [1], [0, 0, 1, 1], [], []>} : vector<16x64xf32>, vector<64x64xf32>, vector<16x64xf32> -> vector<16x64xf32>
    %c4_55 = arith.constant 4 : index
    %c0_56 = arith.constant 0 : index
    %c0_57 = arith.constant 0 : index
    %57 = vector.load %arg3[%c4_55, %c0_56, %c0_57] : memref<9x16x64xf32, #tpu.memory_space<vmem>>, vector<1x16x64xf32>
    %58 = vector.shape_cast %57 : vector<1x16x64xf32> to vector<16x64xf32>
    %cst_58 = arith.constant dense<0.000000e+00> : vector<16x64xf32>
    %59 = tpu.matmul %58, %40, %cst_58 {dimension_numbers = #tpu.dot_dimension_numbers<[1], [0], [0], [1], [0, 0, 1, 1], [], []>} : vector<16x64xf32>, vector<64x64xf32>, vector<16x64xf32> -> vector<16x64xf32>
    %c5_59 = arith.constant 5 : index
    %c0_60 = arith.constant 0 : index
    %c0_61 = arith.constant 0 : index
    %60 = vector.load %arg3[%c5_59, %c0_60, %c0_61] : memref<9x16x64xf32, #tpu.memory_space<vmem>>, vector<1x16x64xf32>
    %61 = vector.shape_cast %60 : vector<1x16x64xf32> to vector<16x64xf32>
    %cst_62 = arith.constant dense<0.000000e+00> : vector<16x64xf32>
    %62 = tpu.matmul %61, %40, %cst_62 {dimension_numbers = #tpu.dot_dimension_numbers<[1], [0], [0], [1], [0, 0, 1, 1], [], []>} : vector<16x64xf32>, vector<64x64xf32>, vector<16x64xf32> -> vector<16x64xf32>
    %c6_63 = arith.constant 6 : index
    %c0_64 = arith.constant 0 : index
    %c0_65 = arith.constant 0 : index
    %63 = vector.load %arg3[%c6_63, %c0_64, %c0_65] : memref<9x16x64xf32, #tpu.memory_space<vmem>>, vector<1x16x64xf32>
    %64 = vector.shape_cast %63 : vector<1x16x64xf32> to vector<16x64xf32>
    %cst_66 = arith.constant dense<0.000000e+00> : vector<16x64xf32>
    %65 = tpu.matmul %64, %40, %cst_66 {dimension_numbers = #tpu.dot_dimension_numbers<[1], [0], [0], [1], [0, 0, 1, 1], [], []>} : vector<16x64xf32>, vector<64x64xf32>, vector<16x64xf32> -> vector<16x64xf32>
    %c7_67 = arith.constant 7 : index
    %c0_68 = arith.constant 0 : index
    %c0_69 = arith.constant 0 : index
    %66 = vector.load %arg3[%c7_67, %c0_68, %c0_69] : memref<9x16x64xf32, #tpu.memory_space<vmem>>, vector<1x16x64xf32>
    %67 = vector.shape_cast %66 : vector<1x16x64xf32> to vector<16x64xf32>
    %cst_70 = arith.constant dense<0.000000e+00> : vector<16x64xf32>
    %68 = tpu.matmul %67, %40, %cst_70 {dimension_numbers = #tpu.dot_dimension_numbers<[1], [0], [0], [1], [0, 0, 1, 1], [], []>} : vector<16x64xf32>, vector<64x64xf32>, vector<16x64xf32> -> vector<16x64xf32>
    %c8_71 = arith.constant 8 : index
    %c0_72 = arith.constant 0 : index
    %c0_73 = arith.constant 0 : index
    %69 = vector.load %arg3[%c8_71, %c0_72, %c0_73] : memref<9x16x64xf32, #tpu.memory_space<vmem>>, vector<1x16x64xf32>
    %70 = vector.shape_cast %69 : vector<1x16x64xf32> to vector<16x64xf32>
    %cst_74 = arith.constant dense<0.000000e+00> : vector<16x64xf32>
    %71 = tpu.matmul %70, %40, %cst_74 {dimension_numbers = #tpu.dot_dimension_numbers<[1], [0], [0], [1], [0, 0, 1, 1], [], []>} : vector<16x64xf32>, vector<64x64xf32>, vector<16x64xf32> -> vector<16x64xf32>
    %72 = tpu.concatenate %47, %50, %53, %56, %59, %62, %65, %68, %71 in 1 : vector<16x64xf32>, vector<16x64xf32>, vector<16x64xf32>, vector<16x64xf32>, vector<16x64xf32>, vector<16x64xf32>, vector<16x64xf32>, vector<16x64xf32>, vector<16x64xf32> -> vector<16x576xf32>
    %c0_75 = arith.constant 0 : index
    %c0_76 = arith.constant 0 : index
    %73 = vector.load %arg6[%c0_75, %c0_76] : memref<576x128xf32, #tpu.memory_space<vmem>>, vector<576x128xf32>
    %cst_77 = arith.constant dense<0.000000e+00> : vector<16x128xf32>
    %74 = tpu.matmul %72, %73, %cst_77 {dimension_numbers = #tpu.dot_dimension_numbers<[1], [0], [0], [1], [0, 0, 1, 1], [], []>} : vector<16x576xf32>, vector<576x128xf32>, vector<16x128xf32> -> vector<16x128xf32>
    %c0_78 = arith.constant 0 : index
    %c0_79 = arith.constant 0 : index
    %75 = vector.load %arg7[%c0_78, %c0_79] : memref<1x128xf32, #tpu.memory_space<vmem>>, vector<1x128xf32>
    %76 = vector.broadcast %75 : vector<1x128xf32> to vector<16x128xf32>
    %77 = arith.addf %74, %76 : vector<16x128xf32>
    %cst_80 = arith.constant 0.000000e+00 : f32
    %78 = vector.broadcast %cst_80 : f32 to vector<16x128xf32>
    %79 = arith.maximumf %77, %78 : vector<16x128xf32>
    %cst_81 = arith.constant dense<0.000000e+00> : vector<128xf32>
    %80 = vector.multi_reduction <add>, %79, %cst_81 [0] : vector<16x128xf32> to vector<128xf32>
    %81 = vector.shape_cast %80 : vector<128xf32> to vector<1x128xf32>
    %cst_82 = arith.constant 1.600000e+01 : f32
    %82 = vector.broadcast %cst_82 : f32 to vector<1x128xf32>
    %83 = arith.divf %81, %82 : vector<1x128xf32>
    %c0_83 = arith.constant 0 : index
    %c0_84 = arith.constant 0 : index
    %84 = vector.load %arg8[%c0_83, %c0_84] : memref<8x16xf32, #tpu.memory_space<vmem>>, vector<8x16xf32>
    %cst_85 = arith.constant dense<0.000000e+00> : vector<1x16xf32>
    %85 = tpu.matmul %5, %84, %cst_85 {dimension_numbers = #tpu.dot_dimension_numbers<[1], [0], [0], [1], [0, 0, 1, 1], [], []>} : vector<1x8xf32>, vector<8x16xf32>, vector<1x16xf32> -> vector<1x16xf32>
    %c0_86 = arith.constant 0 : index
    %c0_87 = arith.constant 0 : index
    %86 = vector.load %arg9[%c0_86, %c0_87] : memref<64x16xf32, #tpu.memory_space<vmem>>, vector<64x16xf32>
    %cst_88 = arith.constant dense<0.000000e+00> : vector<1x16xf32>
    %87 = tpu.matmul %44, %86, %cst_88 {dimension_numbers = #tpu.dot_dimension_numbers<[1], [0], [0], [1], [0, 0, 1, 1], [], []>} : vector<1x64xf32>, vector<64x16xf32>, vector<1x16xf32> -> vector<1x16xf32>
    %88 = arith.addf %85, %87 : vector<1x16xf32>
    %c0_89 = arith.constant 0 : index
    %c0_90 = arith.constant 0 : index
    %89 = vector.load %arg10[%c0_89, %c0_90] : memref<128x16xf32, #tpu.memory_space<vmem>>, vector<128x16xf32>
    %cst_91 = arith.constant dense<0.000000e+00> : vector<1x16xf32>
    %90 = tpu.matmul %83, %89, %cst_91 {dimension_numbers = #tpu.dot_dimension_numbers<[1], [0], [0], [1], [0, 0, 1, 1], [], []>} : vector<1x128xf32>, vector<128x16xf32>, vector<1x16xf32> -> vector<1x16xf32>
    %91 = arith.addf %88, %90 : vector<1x16xf32>
    %c0_92 = arith.constant 0 : index
    %c0_93 = arith.constant 0 : index
    %92 = vector.load %arg11[%c0_92, %c0_93] : memref<1x16xf32, #tpu.memory_space<vmem>>, vector<1x16xf32>
    %93 = arith.addf %91, %92 : vector<1x16xf32>
    %c0_94 = arith.constant 0 : index
    %c0_95 = arith.constant 0 : index
    %94 = vector.load %arg12[%c0_94, %c0_95] : memref<1x16xf32, #tpu.memory_space<vmem>>, vector<1x16xf32>
    tpu.vector_store %arg12[%c0_94, %c0_95], %93 {strides = array<i32>} : memref<1x16xf32, #tpu.memory_space<vmem>>, vector<1x16xf32>,
    return
  }
  func.func @transform_0(%arg0: i32) -> (i32, i32, i32) {
    %c0_i32 = arith.constant 0 : i32
    %c0_i32_0 = arith.constant 0 : i32
    %c0_i32_1 = arith.constant 0 : i32
    return %arg0, %c0_i32, %c0_i32_0 : i32, i32, i32
  }
  func.func @transform_1(%arg0: i32) -> (i32, i32, i32) {
    %c0_i32 = arith.constant 0 : i32
    %c0_i32_0 = arith.constant 0 : i32
    %c0_i32_1 = arith.constant 0 : i32
    %c0_i32_2 = arith.constant 0 : i32
    return %c0_i32, %c0_i32_0, %c0_i32_1 : i32, i32, i32
  }
  func.func @transform_2(%arg0: i32) -> (i32, i32, i32) {
    %c0_i32 = arith.constant 0 : i32
    %c0_i32_0 = arith.constant 0 : i32
    %c0_i32_1 = arith.constant 0 : i32
    %c0_i32_2 = arith.constant 0 : i32
    return %c0_i32, %c0_i32_0, %c0_i32_1 : i32, i32, i32
  }
  func.func @transform_3(%arg0: i32) -> (i32, i32) {
    %c0_i32 = arith.constant 0 : i32
    %c0_i32_0 = arith.constant 0 : i32
    %c0_i32_1 = arith.constant 0 : i32
    return %c0_i32, %c0_i32_0 : i32, i32
  }
  func.func @transform_4(%arg0: i32) -> (i32, i32) {
    %c0_i32 = arith.constant 0 : i32
    %c0_i32_0 = arith.constant 0 : i32
    %c0_i32_1 = arith.constant 0 : i32
    return %c0_i32, %c0_i32_0 : i32, i32
  }
  func.func @transform_5(%arg0: i32) -> (i32, i32) {
    %c0_i32 = arith.constant 0 : i32
    %c0_i32_0 = arith.constant 0 : i32
    %c0_i32_1 = arith.constant 0 : i32
    return %c0_i32, %c0_i32_0 : i32, i32
  }
  func.func @transform_6(%arg0: i32) -> (i32, i32) {
    %c0_i32 = arith.constant 0 : i32
    %c0_i32_0 = arith.constant 0 : i32
    %c0_i32_1 = arith.constant 0 : i32
    return %c0_i32, %c0_i32_0 : i32, i32
  }
  func.func @transform_7(%arg0: i32) -> (i32, i32) {
    %c0_i32 = arith.constant 0 : i32
    %c0_i32_0 = arith.constant 0 : i32
    %c0_i32_1 = arith.constant 0 : i32
    return %c0_i32, %c0_i32_0 : i32, i32
  }
  func.func @transform_8(%arg0: i32) -> (i32, i32) {
    %c0_i32 = arith.constant 0 : i32
    %c0_i32_0 = arith.constant 0 : i32
    %c0_i32_1 = arith.constant 0 : i32
    return %c0_i32, %c0_i32_0 : i32, i32
  }
  func.func @transform_9(%arg0: i32) -> (i32, i32) {
    %c0_i32 = arith.constant 0 : i32
    %c0_i32_0 = arith.constant 0 : i32
    %c0_i32_1 = arith.constant 0 : i32
    return %c0_i32, %c0_i32_0 : i32, i32
  }
  func.func @transform_10(%arg0: i32) -> (i32, i32) {
    %c0_i32 = arith.constant 0 : i32
    %c0_i32_0 = arith.constant 0 : i32
    %c0_i32_1 = arith.constant 0 : i32
    return %c0_i32, %c0_i32_0 : i32, i32
  }
  func.func @transform_11(%arg0: i32) -> (i32, i32) {
    %c0_i32 = arith.constant 0 : i32
    %c0_i32_0 = arith.constant 0 : i32
    return %arg0, %c0_i32 : i32, i32
  }
}

</mosaic_0001>

<llo_original>
// kernel: tile.18
$region0: #{tile.18}
  #allocation0 [shape = 's32[1]{0}', space=sflag, size = 0x4, scoped, tag = 'scoped memory for tile.18']
  %s0 = inlined_call_operand.vmem [shape: f32[32], index: 0, kind: input, shape index: {}]
  %s1 = inlined_call_operand.vmem [shape: f32[2,32], index: 1, kind: output, shape index: {}]
  // Predicated region
  $region2: #{tile.18} parent=0 // pred_check
    _
  $region3: #{tile.18} parent=0 // pred_check_branch
    %3 = sbr.rel (0) target = $region5
  $region4: #{tile.18} parent=0 // pred_region
    _
  $region5: #{tile.18} parent=0 // pred_fallthru
    _
  %v4 = vld [vmem:[%s0] ss:$0 sm:$0xff]
  %5 = vst [vmem:[%s1] sm:$0x3] %v4

// kernel: tile.19
$region0: #{tile.19}
  %s0 = inlined_call_operand.vmem [shape: f32[2,32], index: 0, kind: input, shape index: {}]
  %s1 = inlined_call_operand.vmem [shape: f32[1,64], index: 1, kind: output, shape index: {}]
  $region1: #{tile.19} parent=0
    #allocation0 [shape = 'u8[4096]{0}', space=vmem, size = 0x1000, scoped, tag = 'scoped mem for output reshape']
    #allocation1 [shape = 'u8[4096]{0}', space=vmem, size = 0x1000, scoped, tag = 'scoped mem for input reshape']
    %s3 = sshllo.u32 0, 2
    %v4 = vld [vmem:[%s0] sm:%s3]
    %5 = vst [vmem:[#allocation1] sm:%s3] %v4
    %v6 = vld [vmem:[#allocation1] sm:$0x1]
    %vm7 = vcmask 261120
    %8 = vst.msk [vmem:[#allocation0] sm:$0x1] %vm7, %v6
    %s9 = scalar_lea.vmem [#allocation1], 1
    %v10 = vld [vmem:[%s9] sm:$0x1]
    %11 = vrot.lane.b32.xlu0 %v10, 32
    %v12 = vpop.permute.xlu0 %11
    %vm13 = vcmask 523520
    %14 = vst.msk [vmem:[#allocation0] sm:$0x1] %vm13, %v12
    %s16 = sshllo.u32 0, 1
    %v18 = vld [vmem:[#allocation0] sm:%s16]
    %s19 = sshllo.u32 0, 1
    %20 = vst [vmem:[%s1] sm:%s19] %v18

// kernel: tile.23
$region0: #{tile.23}
  #allocation0 [shape = 's32[1]{0}', space=sflag, size = 0x4, scoped, tag = 'scoped memory for tile.23']
  %s0 = inlined_call_operand.vmem [shape: f32[64], index: 0, kind: input, shape index: {}]
  %s1 = inlined_call_operand.vmem [shape: f32[2,64], index: 1, kind: output, shape index: {}]
  // Predicated region
  $region2: #{tile.23} parent=0 // pred_check
    _
  $region3: #{tile.23} parent=0 // pred_check_branch
    %3 = sbr.rel (0) target = $region5
  $region4: #{tile.23} parent=0 // pred_region
    _
  $region5: #{tile.23} parent=0 // pred_fallthru
    _
  %v4 = vld [vmem:[%s0] ss:$0 sm:$0xff]
  %5 = vst [vmem:[%s1] sm:$0x3] %v4

// kernel: tile.24
$region0: #{tile.24}
  %s0 = inlined_call_operand.vmem [shape: f32[2,64], index: 0, kind: input, shape index: {}]
  %s1 = inlined_call_operand.vmem [shape: f32[1,128], index: 1, kind: output, shape index: {}]
  $region1: #{tile.24} parent=0
    #allocation0 [shape = 'u8[4096]{0}', space=vmem, size = 0x1000, scoped, tag = 'scoped mem for output reshape']
    #allocation1 [shape = 'u8[4096]{0}', space=vmem, size = 0x1000, scoped, tag = 'scoped mem for input reshape']
    %s3 = sshllo.u32 0, 2
    %v4 = vld [vmem:[%s0] sm:%s3]
    %5 = vst [vmem:[#allocation1] sm:%s3] %v4
    %v6 = vld [vmem:[#allocation1] sm:$0x1]
    %vm7 = vcmask 523264
    %8 = vst.msk [vmem:[#allocation0] sm:$0x1] %vm7, %v6
    %s9 = scalar_lea.vmem [#allocation1], 1
    %v10 = vld [vmem:[%s9] sm:$0x1]
    %11 = vrot.lane.b32.xlu0 %v10, 64
    %v12 = vpop.permute.xlu0 %11
    %vm13 = vcmask 1048064
    %14 = vst.msk [vmem:[#allocation0] sm:$0x1] %vm13, %v12
    %s16 = sshllo.u32 0, 1
    %v18 = vld [vmem:[#allocation0] sm:%s16]
    %s19 = sshllo.u32 0, 1
    %20 = vst [vmem:[%s1] sm:%s19] %v18

// kernel: tile.28
$region0: #{tile.28}
  #allocation0 [shape = 's32[1]{0}', space=sflag, size = 0x4, scoped, tag = 'scoped memory for tile.28']
  %s0 = inlined_call_operand.vmem [shape: f32[8], index: 0, kind: input, shape index: {}]
  %s1 = inlined_call_operand.vmem [shape: f32[2,8], index: 1, kind: output, shape index: {}]
  // Predicated region
  $region2: #{tile.28} parent=0 // pred_check
    _
  $region3: #{tile.28} parent=0 // pred_check_branch
    %3 = sbr.rel (0) target = $region5
  $region4: #{tile.28} parent=0 // pred_region
    _
  $region5: #{tile.28} parent=0 // pred_fallthru
    _
  %v4 = vld [vmem:[%s0] ss:$0 sm:$0xff]
  %5 = vst [vmem:[%s1] sm:$0x3] %v4

// kernel: tile.29
$region0: #{tile.29}
  %s0 = inlined_call_operand.vmem [shape: f32[2,8], index: 0, kind: input, shape index: {}]
  %s1 = inlined_call_operand.vmem [shape: f32[1,16], index: 1, kind: output, shape index: {}]
  $region1: #{tile.29} parent=0
    #allocation0 [shape = 'u8[4096]{0}', space=vmem, size = 0x1000, scoped, tag = 'scoped mem for output reshape']
    #allocation1 [shape = 'u8[4096]{0}', space=vmem, size = 0x1000, scoped, tag = 'scoped mem for input reshape']
    %s3 = sshllo.u32 0, 2
    %v4 = vld [vmem:[%s0] sm:%s3]
    %5 = vst [vmem:[#allocation1] sm:%s3] %v4
    %v6 = vld [vmem:[#allocation1] sm:$0x1]
    %vm7 = vcmask 64512
    %8 = vst.msk [vmem:[#allocation0] sm:$0x1] %vm7, %v6
    %s9 = scalar_lea.vmem [#allocation1], 1
    %v10 = vld [vmem:[%s9] sm:$0x1]
    %11 = vrot.lane.b32.xlu0 %v10, 8
    %v12 = vpop.permute.xlu0 %11
    %vm13 = vcmask 130112
    %14 = vst.msk [vmem:[#allocation0] sm:$0x1] %vm13, %v12
    %s16 = sshllo.u32 0, 1
    %v18 = vld [vmem:[#allocation0] sm:%s16]
    %s19 = sshllo.u32 0, 1
    %20 = vst [vmem:[%s1] sm:%s19] %v18

// kernel: syntax_model_forward.1
$region0: #{syntax_model_forward.1}
  #allocation0 [shape = 'u32[]', space=smem, size = 0x4, offset = 0x4, fixed_abs, tag = 'smem constant byte address 0x4 - core index']
  #allocation1 [shape = 'u32[144,128]{1,0:T(1,128)}', space=vmem, size = 0x12000, scoped, tag = 'internal scratch']
  %s0 = inlined_call_operand.vmem [shape: f32[1,256,8], index: 0, kind: input, shape index: {}]
  %s1 = inlined_call_operand.vmem [shape: f32[9,64,256], index: 1, kind: input, shape index: {}]
  %s2 = inlined_call_operand.vmem [shape: f32[9,16,64], index: 2, kind: input, shape index: {}]
  %s3 = inlined_call_operand.vmem [shape: f32[72,64], index: 3, kind: input, shape index: {}]
  %s4 = inlined_call_operand.vmem [shape: f32[1,64], index: 4, kind: input, shape index: {}]
  %s5 = inlined_call_operand.vmem [shape: f32[576,128], index: 5, kind: input, shape index: {}]
  %s6 = inlined_call_operand.vmem [shape: f32[1,128], index: 6, kind: input, shape index: {}]
  %s7 = inlined_call_operand.vmem [shape: f32[8,16], index: 7, kind: input, shape index: {}]
  %s8 = inlined_call_operand.vmem [shape: f32[64,16], index: 8, kind: input, shape index: {}]
  %s9 = inlined_call_operand.vmem [shape: f32[128,16], index: 9, kind: input, shape index: {}]
  %s10 = inlined_call_operand.vmem [shape: f32[1,16], index: 10, kind: input, shape index: {}]
  %s11 = inlined_call_operand.vmem [shape: f32[1,16], index: 11, kind: output, shape index: {}]
  %s12 = sld [smem:[#allocation0]]
  $region54: #{syntax_model_forward.1} parent=0
    _
  %s14 = ssub.s32 1, %s12
  %s15 = scalar_select 0, %s14, %s12
  // Predicated region
  $region2: #{syntax_model_forward.1} parent=0 // pred_check
    _
  $region3: #{syntax_model_forward.1} parent=0 // pred_check_branch
    %17 = sbr.rel (0) target = $region5
  $region4: #{syntax_model_forward.1} parent=0 // pred_region
    _
  $region5: #{syntax_model_forward.1} parent=0 // pred_fallthru
    _
  // Predicated region
  $region6: #{syntax_model_forward.1} parent=0 // pred_check
    _
  $region7: #{syntax_model_forward.1} parent=0 // pred_check_branch
    %19 = sbr.rel (0) target = $region9
  $region8: #{syntax_model_forward.1} parent=0 // pred_region
    _
  $region9: #{syntax_model_forward.1} parent=0 // pred_fallthru
    _
  // Predicated region
  $region10: #{syntax_model_forward.1} parent=0 // pred_check
    _
  $region11: #{syntax_model_forward.1} parent=0 // pred_check_branch
    %21 = sbr.rel (0) target = $region13
  $region12: #{syntax_model_forward.1} parent=0 // pred_region
    _
  $region13: #{syntax_model_forward.1} parent=0 // pred_fallthru
    _
  // Predicated region
  $region14: #{syntax_model_forward.1} parent=0 // pred_check
    _
  $region15: #{syntax_model_forward.1} parent=0 // pred_check_branch
    %23 = sbr.rel (0) target = $region17
  $region16: #{syntax_model_forward.1} parent=0 // pred_region
    _
  $region17: #{syntax_model_forward.1} parent=0 // pred_fallthru
    _
  // Predicated region
  $region18: #{syntax_model_forward.1} parent=0 // pred_check
    _
  $region19: #{syntax_model_forward.1} parent=0 // pred_check_branch
    %25 = sbr.rel (0) target = $region21
  $region20: #{syntax_model_forward.1} parent=0 // pred_region
    _
  $region21: #{syntax_model_forward.1} parent=0 // pred_fallthru
    _
  // Predicated region
  $region22: #{syntax_model_forward.1} parent=0 // pred_check
    _
  $region23: #{syntax_model_forward.1} parent=0 // pred_check_branch
    %27 = sbr.rel (0) target = $region25
  $region24: #{syntax_model_forward.1} parent=0 // pred_region
    _
  $region25: #{syntax_model_forward.1} parent=0 // pred_fallthru
    _
  // Predicated region
  $region26: #{syntax_model_forward.1} parent=0 // pred_check
    _
  $region27: #{syntax_model_forward.1} parent=0 // pred_check_branch
    %29 = sbr.rel (0) target = $region29
  $region28: #{syntax_model_forward.1} parent=0 // pred_region
    _
  $region29: #{syntax_model_forward.1} parent=0 // pred_fallthru
    _
  // Predicated region
  $region30: #{syntax_model_forward.1} parent=0 // pred_check
    _
  $region31: #{syntax_model_forward.1} parent=0 // pred_check_branch
    %31 = sbr.rel (0) target = $region33
  $region32: #{syntax_model_forward.1} parent=0 // pred_region
    _
  $region33: #{syntax_model_forward.1} parent=0 // pred_fallthru
    _
  // Predicated region
  $region34: #{syntax_model_forward.1} parent=0 // pred_check
    _
  $region35: #{syntax_model_forward.1} parent=0 // pred_check_branch
    %33 = sbr.rel (0) target = $region37
  $region36: #{syntax_model_forward.1} parent=0 // pred_region
    _
  $region37: #{syntax_model_forward.1} parent=0 // pred_fallthru
    _
  // Predicated region
  $region38: #{syntax_model_forward.1} parent=0 // pred_check
    _
  $region39: #{syntax_model_forward.1} parent=0 // pred_check_branch
    %35 = sbr.rel (0) target = $region41
  $region40: #{syntax_model_forward.1} parent=0 // pred_region
    _
  $region41: #{syntax_model_forward.1} parent=0 // pred_fallthru
    _
  // Predicated region
  $region42: #{syntax_model_forward.1} parent=0 // pred_check
    _
  $region43: #{syntax_model_forward.1} parent=0 // pred_check_branch
    %37 = sbr.rel (0) target = $region45
  $region44: #{syntax_model_forward.1} parent=0 // pred_region
    _
  $region45: #{syntax_model_forward.1} parent=0 // pred_fallthru
    _
  %v38 = vld [vmem:[%s0] sm:$0xff]
  %v39 = vld [vmem:[%s0 + $0x8] sm:$0xff]
  %v40 = vld [vmem:[%s0 + $0x10] sm:$0xff]
  %v41 = vld [vmem:[%s0 + $0x18] sm:$0xff]
  %v42 = vld [vmem:[%s0 + $0x20] sm:$0xff]
  %v43 = vld [vmem:[%s0 + $0x28] sm:$0xff]
  %v44 = vld [vmem:[%s0 + $0x30] sm:$0xff]
  %v45 = vld [vmem:[%s0 + $0x38] sm:$0xff]
  %v46 = vld [vmem:[%s0 + $0x40] sm:$0xff]
  %v47 = vld [vmem:[%s0 + $0x48] sm:$0xff]
  %v48 = vld [vmem:[%s0 + $0x50] sm:$0xff]
  %v49 = vld [vmem:[%s0 + $0x58] sm:$0xff]
  %v50 = vld [vmem:[%s0 + $0x60] sm:$0xff]
  %v51 = vld [vmem:[%s0 + $0x68] sm:$0xff]
  %v52 = vld [vmem:[%s0 + $0x70] sm:$0xff]
  %v53 = vld [vmem:[%s0 + $0x78] sm:$0xff]
  %v54 = vld [vmem:[%s0 + $0x80] sm:$0xff]
  %v55 = vld [vmem:[%s0 + $0x88] sm:$0xff]
  %v56 = vld [vmem:[%s0 + $0x90] sm:$0xff]
  %v57 = vld [vmem:[%s0 + $0x98] sm:$0xff]
  %v58 = vld [vmem:[%s0 + $0xa0] sm:$0xff]
  %v59 = vld [vmem:[%s0 + $0xa8] sm:$0xff]
  %v60 = vld [vmem:[%s0 + $0xb0] sm:$0xff]
  %v61 = vld [vmem:[%s0 + $0xb8] sm:$0xff]
  %v62 = vld [vmem:[%s0 + $0xc0] sm:$0xff]
  %v63 = vld [vmem:[%s0 + $0xc8] sm:$0xff]
  %v64 = vld [vmem:[%s0 + $0xd0] sm:$0xff]
  %v65 = vld [vmem:[%s0 + $0xd8] sm:$0xff]
  %v66 = vld [vmem:[%s0 + $0xe0] sm:$0xff]
  %v67 = vld [vmem:[%s0 + $0xe8] sm:$0xff]
  %v68 = vld [vmem:[%s0 + $0xf0] sm:$0xff]
  %v69 = vld [vmem:[%s0 + $0xf8] sm:$0xff]
  %vm70 = vcmask 64512
  %v71 = vsel %vm70, %v38, 0.0
  %v72 = vsel %vm70, %v39, 0.0
  %v73 = vadd.f32 %v71, %v72
  %v74 = vsel %vm70, %v40, 0.0
  %v75 = vadd.f32 %v73, %v74
  %v76 = vsel %vm70, %v41, 0.0
  %v77 = vadd.f32 %v75, %v76
  %v78 = vsel %vm70, %v42, 0.0
  %v79 = vadd.f32 %v77, %v78
  %v80 = vsel %vm70, %v43, 0.0
  %v81 = vadd.f32 %v79, %v80
  %v82 = vsel %vm70, %v44, 0.0
  %v83 = vadd.f32 %v81, %v82
  %v84 = vsel %vm70, %v45, 0.0
  %v85 = vadd.f32 %v83, %v84
  %v86 = vsel %vm70, %v46, 0.0
  %v87 = vadd.f32 %v85, %v86
  %v88 = vsel %vm70, %v47, 0.0
  %v89 = vadd.f32 %v87, %v88
  %v90 = vsel %vm70, %v48, 0.0
  %v91 = vadd.f32 %v89, %v90
  %v92 = vsel %vm70, %v49, 0.0
  %v93 = vadd.f32 %v91, %v92
  %v94 = vsel %vm70, %v50, 0.0
  %v95 = vadd.f32 %v93, %v94
  %v96 = vsel %vm70, %v51, 0.0
  %v97 = vadd.f32 %v95, %v96
  %v98 = vsel %vm70, %v52, 0.0
  %v99 = vadd.f32 %v97, %v98
  %v100 = vsel %vm70, %v53, 0.0
  %v101 = vadd.f32 %v99, %v100
  %v102 = vsel %vm70, %v54, 0.0
  %v103 = vadd.f32 %v101, %v102
  %v104 = vsel %vm70, %v55, 0.0
  %v105 = vadd.f32 %v103, %v104
  %v106 = vsel %vm70, %v56, 0.0
  %v107 = vadd.f32 %v105, %v106
  %v108 = vsel %vm70, %v57, 0.0
  %v109 = vadd.f32 %v107, %v108
  %v110 = vsel %vm70, %v58, 0.0
  %v111 = vadd.f32 %v109, %v110
  %v112 = vsel %vm70, %v59, 0.0
  %v113 = vadd.f32 %v111, %v112
  %v114 = vsel %vm70, %v60, 0.0
  %v115 = vadd.f32 %v113, %v114
  %v116 = vsel %vm70, %v61, 0.0
  %v117 = vadd.f32 %v115, %v116
  %v118 = vsel %vm70, %v62, 0.0
  %v119 = vadd.f32 %v117, %v118
  %v120 = vsel %vm70, %v63, 0.0
  %v121 = vadd.f32 %v119, %v120
  %v122 = vsel %vm70, %v64, 0.0
  %v123 = vadd.f32 %v121, %v122
  %v124 = vsel %vm70, %v65, 0.0
  %v125 = vadd.f32 %v123, %v124
  %v126 = vsel %vm70, %v66, 0.0
  %v127 = vadd.f32 %v125, %v126
  %v128 = vsel %vm70, %v67, 0.0
  %v129 = vadd.f32 %v127, %v128
  %v130 = vsel %vm70, %v68, 0.0
  %v131 = vadd.f32 %v129, %v130
  %v132 = vsel %vm70, %v69, 0.0
  %v133 = vadd.f32 %v131, %v132
  %v134 = vrot.slane %v133, 4
  %v135 = vadd.f32 %v133, %v134
  %v136 = vrot.slane %v135, 2
  %v137 = vadd.f32 %v135, %v136
  %v138 = vrot.slane %v137, 1
  %v139 = vadd.f32 %v137, %v138
  %v140 = vrcp.pop 256.0
  %v141 = vmul.f32 %v139, %v140
  %v142 = vld [vmem:[%s1] sm:$0xff]
  %v143 = vld [vmem:[%s1 + $0x8] sm:$0xff]
  %v144 = vld [vmem:[%s1 + $0x10] sm:$0xff]
  %v145 = vld [vmem:[%s1 + $0x18] sm:$0xff]
  %v146 = vld [vmem:[%s1 + $0x20] sm:$0xff]
  %v147 = vld [vmem:[%s1 + $0x28] sm:$0xff]
  %v148 = vld [vmem:[%s1 + $0x30] sm:$0xff]
  %v149 = vld [vmem:[%s1 + $0x38] sm:$0xff]
  %v150 = vld [vmem:[%s1 + $0x40] sm:$0xff]
  %v151 = vld [vmem:[%s1 + $0x48] sm:$0xff]
  %v152 = vld [vmem:[%s1 + $0x50] sm:$0xff]
  %v153 = vld [vmem:[%s1 + $0x58] sm:$0xff]
  %v154 = vld [vmem:[%s1 + $0x60] sm:$0xff]
  %v155 = vld [vmem:[%s1 + $0x68] sm:$0xff]
  %v156 = vld [vmem:[%s1 + $0x70] sm:$0xff]
  %v157 = vld [vmem:[%s1 + $0x78] sm:$0xff]
  %158 = vmatprep.subr.mxu0 0.0
  %159 = vmatpush1.msra.mxu0 %v38
  %160 = vmatprep.subr.mxu0 0.0
  %161 = vmatpush1.msra.mxu0 %v39
  %162 = vmatprep.subr.mxu0 0.0
  %163 = vmatpush1.msra.mxu0 %v40
  %164 = vmatprep.subr.mxu0 0.0
  %165 = vmatpush1.msra.mxu0 %v41
  %166 = vmatprep.subr.mxu0 0.0
  %167 = vmatpush1.msra.mxu0 %v42
  %168 = vmatprep.subr.mxu0 0.0
  %169 = vmatpush1.msra.mxu0 %v43
  %170 = vmatprep.subr.mxu0 0.0
  %171 = vmatpush1.msra.mxu0 %v44
  %172 = vmatprep.subr.mxu0 0.0
  %173 = vmatpush1.msra.mxu0 %v45
  %174 = vmatprep.subr.mxu0 0.0
  %175 = vmatpush1.msra.mxu0 %v46
  %176 = vmatprep.subr.mxu0 0.0
  %177 = vmatpush1.msra.mxu0 %v47
  %178 = vmatprep.subr.mxu0 0.0
  %179 = vmatpush1.msra.mxu0 %v48
  %180 = vmatprep.subr.mxu0 0.0
  %181 = vmatpush1.msra.mxu0 %v49
  %182 = vmatprep.subr.mxu0 0.0
  %183 = vmatpush1.msra.mxu0 %v50
  %184 = vmatprep.subr.mxu0 0.0
  %185 = vmatpush1.msra.mxu0 %v51
  %186 = vmatprep.subr.mxu0 0.0
  %187 = vmatpush1.msra.mxu0 %v52
  %188 = vmatprep.subr.mxu0 0.0
  %189 = vmatpush1.msra.mxu0 %v53
  %190 = vmatprep.subr.mxu0 0.0
  %191 = vmatpush1.msra.mxu0 %v54
  %192 = vmatprep.subr.mxu0 0.0
  %193 = vmatpush1.msra.mxu0 %v55
  %194 = vmatprep.subr.mxu0 0.0
  %195 = vmatpush1.msra.mxu0 %v56
  %196 = vmatprep.subr.mxu0 0.0
  %197 = vmatpush1.msra.mxu0 %v57
  %198 = vmatprep.subr.mxu0 0.0
  %199 = vmatpush1.msra.mxu0 %v58
  %200 = vmatprep.subr.mxu0 0.0
  %201 = vmatpush1.msra.mxu0 %v59
  %202 = vmatprep.subr.mxu0 0.0
  %203 = vmatpush1.msra.mxu0 %v60
  %204 = vmatprep.subr.mxu0 0.0
  %205 = vmatpush1.msra.mxu0 %v61
  %206 = vmatprep.subr.mxu0 0.0
  %207 = vmatpush1.msra.mxu0 %v62
  %208 = vmatprep.subr.mxu0 0.0
  %209 = vmatpush1.msra.mxu0 %v63
  %210 = vmatprep.subr.mxu0 0.0
  %211 = vmatpush1.msra.mxu0 %v64
  %212 = vmatprep.subr.mxu0 0.0
  %213 = vmatpush1.msra.mxu0 %v65
  %214 = vmatprep.subr.mxu0 0.0
  %215 = vmatpush1.msra.mxu0 %v66
  %216 = vmatprep.subr.mxu0 0.0
  %217 = vmatpush1.msra.mxu0 %v67
  %218 = vmatprep.subr.mxu0 0.0
  %219 = vmatpush1.msra.mxu0 %v68
  %220 = vmatprep.subr.mxu0 0.0
  %221 = vmatpush1.msra.mxu0 %v69
  %222 = vmatprep.mubr.f32.mxu0 %v143
  %223 = vmatmul.mubr.f32.gmra.mrb[0].mxu0 %v142
  %v224 = vpop.f32.mrb[0].mxu0
  %v225 = vadd.f32 0.0, %v224
  %v226 = vpop.f32.mrb[0].mxu0
  %227 = vmatprep.mubr.f32.mxu0 %v145
  %228 = vmatmul.mubr.f32.gmra.mrb[0].mxu0 %v144
  %v229 = vpop.f32.mrb[0].mxu0
  %v230 = vadd.f32 0.0, %v229
  %v231 = vpop.f32.mrb[0].mxu0
  %232 = vmatprep.mubr.f32.mxu0 %v147
  %233 = vmatmul.mubr.f32.gmra.mrb[0].mxu0 %v146
  %v234 = vpop.f32.mrb[0].mxu0
  %v235 = vadd.f32 0.0, %v234
  %v236 = vpop.f32.mrb[0].mxu0
  %237 = vmatprep.mubr.f32.mxu0 %v149
  %238 = vmatmul.mubr.f32.gmra.mrb[0].mxu0 %v148
  %v239 = vpop.f32.mrb[0].mxu0
  %v240 = vadd.f32 0.0, %v239
  %v241 = vpop.f32.mrb[0].mxu0
  %242 = vmatprep.mubr.f32.mxu0 %v151
  %243 = vmatmul.mubr.f32.gmra.mrb[0].mxu0 %v150
  %v244 = vpop.f32.mrb[0].mxu0
  %v245 = vadd.f32 0.0, %v244
  %v246 = vpop.f32.mrb[0].mxu0
  %247 = vmatprep.mubr.f32.mxu0 %v153
  %248 = vmatmul.mubr.f32.gmra.mrb[0].mxu0 %v152
  %v249 = vpop.f32.mrb[0].mxu0
  %v250 = vadd.f32 0.0, %v249
  %v251 = vpop.f32.mrb[0].mxu0
  %252 = vmatprep.mubr.f32.mxu0 %v155
  %253 = vmatmul.mubr.f32.gmra.mrb[0].mxu0 %v154
  %v254 = vpop.f32.mrb[0].mxu0
  %v255 = vadd.f32 0.0, %v254
  %v256 = vpop.f32.mrb[0].mxu0
  %257 = vmatprep.mubr.f32.mxu0 %v157
  %258 = vmatmul.mubr.f32.gmra.mrb[0].mxu0 %v156
  %v259 = vpop.f32.mrb[0].mxu0
  %v260 = vadd.f32 0.0, %v259
  %v261 = vpop.f32.mrb[0].mxu0
  %262 = vdwg.mxu0
  %s263 = scalar_lea.vmem %s1, 128
  %v264 = vld [vmem:[%s263] sm:$0xff]
  %v265 = vld [vmem:[%s263 + $0x8] sm:$0xff]
  %v266 = vld [vmem:[%s263 + $0x10] sm:$0xff]
  %v267 = vld [vmem:[%s263 + $0x18] sm:$0xff]
  %v268 = vld [vmem:[%s263 + $0x20] sm:$0xff]
  %v269 = vld [vmem:[%s263 + $0x28] sm:$0xff]
  %v270 = vld [vmem:[%s263 + $0x30] sm:$0xff]
  %v271 = vld [vmem:[%s263 + $0x38] sm:$0xff]
  %v272 = vld [vmem:[%s263 + $0x40] sm:$0xff]
  %v273 = vld [vmem:[%s263 + $0x48] sm:$0xff]
  %v274 = vld [vmem:[%s263 + $0x50] sm:$0xff]
  %v275 = vld [vmem:[%s263 + $0x58] sm:$0xff]
  %v276 = vld [vmem:[%s263 + $0x60] sm:$0xff]
  %v277 = vld [vmem:[%s263 + $0x68] sm:$0xff]
  %v278 = vld [vmem:[%s263 + $0x70] sm:$0xff]
  %v279 = vld [vmem:[%s263 + $0x78] sm:$0xff]
  %280 = vmatprep.subr.mxu0 0.0
  %281 = vmatpush1.msra.mxu0 %v38
  %282 = vmatprep.subr.mxu0 0.0
  %283 = vmatpush1.msra.mxu0 %v39
  %284 = vmatprep.subr.mxu0 0.0
  %285 = vmatpush1.msra.mxu0 %v40
  %286 = vmatprep.subr.mxu0 0.0
  %287 = vmatpush1.msra.mxu0 %v41
  %288 = vmatprep.subr.mxu0 0.0
  %289 = vmatpush1.msra.mxu0 %v42
  %290 = vmatprep.subr.mxu0 0.0
  %291 = vmatpush1.msra.mxu0 %v43
  %292 = vmatprep.subr.mxu0 0.0
  %293 = vmatpush1.msra.mxu0 %v44
  %294 = vmatprep.subr.mxu0 0.0
  %295 = vmatpush1.msra.mxu0 %v45
  %296 = vmatprep.subr.mxu0 0.0
  %297 = vmatpush1.msra.mxu0 %v46
  %298 = vmatprep.subr.mxu0 0.0
  %299 = vmatpush1.msra.mxu0 %v47
  %300 = vmatprep.subr.mxu0 0.0
  %301 = vmatpush1.msra.mxu0 %v48
  %302 = vmatprep.subr.mxu0 0.0
  %303 = vmatpush1.msra.mxu0 %v49
  %304 = vmatprep.subr.mxu0 0.0
  %305 = vmatpush1.msra.mxu0 %v50
  %306 = vmatprep.subr.mxu0 0.0
  %307 = vmatpush1.msra.mxu0 %v51
  %308 = vmatprep.subr.mxu0 0.0
  %309 = vmatpush1.msra.mxu0 %v52
  %310 = vmatprep.subr.mxu0 0.0
  %311 = vmatpush1.msra.mxu0 %v53
  %312 = vmatprep.subr.mxu0 0.0
  %313 = vmatpush1.msra.mxu0 %v54
  %314 = vmatprep.subr.mxu0 0.0
  %315 = vmatpush1.msra.mxu0 %v55
  %316 = vmatprep.subr.mxu0 0.0
  %317 = vmatpush1.msra.mxu0 %v56
  %318 = vmatprep.subr.mxu0 0.0
  %319 = vmatpush1.msra.mxu0 %v57
  %320 = vmatprep.subr.mxu0 0.0
  %321 = vmatpush1.msra.mxu0 %v58
  %322 = vmatprep.subr.mxu0 0.0
  %323 = vmatpush1.msra.mxu0 %v59
  %324 = vmatprep.subr.mxu0 0.0
  %325 = vmatpush1.msra.mxu0 %v60
  %326 = vmatprep.subr.mxu0 0.0
  %327 = vmatpush1.msra.mxu0 %v61
  %328 = vmatprep.subr.mxu0 0.0
  %329 = vmatpush1.msra.mxu0 %v62
  %330 = vmatprep.subr.mxu0 0.0
  %331 = vmatpush1.msra.mxu0 %v63
  %332 = vmatprep.subr.mxu0 0.0
  %333 = vmatpush1.msra.mxu0 %v64
  %334 = vmatprep.subr.mxu0 0.0
  %335 = vmatpush1.msra.mxu0 %v65
  %336 = vmatprep.subr.mxu0 0.0
  %337 = vmatpush1.msra.mxu0 %v66
  %338 = vmatprep.subr.mxu0 0.0
  %339 = vmatpush1.msra.mxu0 %v67
  %340 = vmatprep.subr.mxu0 0.0
  %341 = vmatpush1.msra.mxu0 %v68
  %342 = vmatprep.subr.mxu0 0.0
  %343 = vmatpush1.msra.mxu0 %v69
  %344 = vmatprep.mubr.f32.mxu0 %v265
  %345 = vmatmul.mubr.f32.gmra.mrb[0].mxu0 %v264
  %v346 = vpop.f32.mrb[0].mxu0
  %v347 = vadd.f32 0.0, %v346
  %v348 = vpop.f32.mrb[0].mxu0
  %349 = vmatprep.mubr.f32.mxu0 %v267
  %350 = vmatmul.mubr.f32.gmra.mrb[0].mxu0 %v266
  %v351 = vpop.f32.mrb[0].mxu0
  %v352 = vadd.f32 0.0, %v351
  %v353 = vpop.f32.mrb[0].mxu0
  %354 = vmatprep.mubr.f32.mxu0 %v269
  %355 = vmatmul.mubr.f32.gmra.mrb[0].mxu0 %v268
  %v356 = vpop.f32.mrb[0].mxu0
  %v357 = vadd.f32 0.0, %v356
  %v358 = vpop.f32.mrb[0].mxu0
  %359 = vmatprep.mubr.f32.mxu0 %v271
  %360 = vmatmul.mubr.f32.gmra.mrb[0].mxu0 %v270
  %v361 = vpop.f32.mrb[0].mxu0
  %v362 = vadd.f32 0.0, %v361
  %v363 = vpop.f32.mrb[0].mxu0
  %364 = vmatprep.mubr.f32.mxu0 %v273
  %365 = vmatmul.mubr.f32.gmra.mrb[0].mxu0 %v272
  %v366 = vpop.f32.mrb[0].mxu0
  %v367 = vadd.f32 0.0, %v366
  %v368 = vpop.f32.mrb[0].mxu0
  %369 = vmatprep.mubr.f32.mxu0 %v275
  %370 = vmatmul.mubr.f32.gmra.mrb[0].mxu0 %v274
  %v371 = vpop.f32.mrb[0].mxu0
  %v372 = vadd.f32 0.0, %v371
  %v373 = vpop.f32.mrb[0].mxu0
  %374 = vmatprep.mubr.f32.mxu0 %v277
  %375 = vmatmul.mubr.f32.gmra.mrb[0].mxu0 %v276
  %v376 = vpop.f32.mrb[0].mxu0
  %v377 = vadd.f32 0.0, %v376
  %v378 = vpop.f32.mrb[0].mxu0
  %379 = vmatprep.mubr.f32.mxu0 %v279
  %380 = vmatmul.mubr.f32.gmra.mrb[0].mxu0 %v278
  %v381 = vpop.f32.mrb[0].mxu0
  %v382 = vadd.f32 0.0, %v381
  %v383 = vpop.f32.mrb[0].mxu0
  %384 = vdwg.mxu0
  %s385 = scalar_lea.vmem %s1, 256
  %v386 = vld [vmem:[%s385] sm:$0xff]
  %v387 = vld [vmem:[%s385 + $0x8] sm:$0xff]
  %v388 = vld [vmem:[%s385 + $0x10] sm:$0xff]
  %v389 = vld [vmem:[%s385 + $0x18] sm:$0xff]
  %v390 = vld [vmem:[%s385 + $0x20] sm:$0xff]
  %v391 = vld [vmem:[%s385 + $0x28] sm:$0xff]
  %v392 = vld [vmem:[%s385 + $0x30] sm:$0xff]
  %v393 = vld [vmem:[%s385 + $0x38] sm:$0xff]
  %v394 = vld [vmem:[%s385 + $0x40] sm:$0xff]
  %v395 = vld [vmem:[%s385 + $0x48] sm:$0xff]
  %v396 = vld [vmem:[%s385 + $0x50] sm:$0xff]
  %v397 = vld [vmem:[%s385 + $0x58] sm:$0xff]
  %v398 = vld [vmem:[%s385 + $0x60] sm:$0xff]
  %v399 = vld [vmem:[%s385 + $0x68] sm:$0xff]
  %v400 = vld [vmem:[%s385 + $0x70] sm:$0xff]
  %v401 = vld [vmem:[%s385 + $0x78] sm:$0xff]
  %402 = vmatprep.subr.mxu0 0.0
  %403 = vmatpush1.msra.mxu0 %v38
  %404 = vmatprep.subr.mxu0 0.0
  %405 = vmatpush1.msra.mxu0 %v39
  %406 = vmatprep.subr.mxu0 0.0
  %407 = vmatpush1.msra.mxu0 %v40
  %408 = vmatprep.subr.mxu0 0.0
  %409 = vmatpush1.msra.mxu0 %v41
  %410 = vmatprep.subr.mxu0 0.0
  %411 = vmatpush1.msra.mxu0 %v42
  %412 = vmatprep.subr.mxu0 0.0
  %413 = vmatpush1.msra.mxu0 %v43
  %414 = vmatprep.subr.mxu0 0.0
  %415 = vmatpush1.msra.mxu0 %v44
  %416 = vmatprep.subr.mxu0 0.0
  %417 = vmatpush1.msra.mxu0 %v45
  %418 = vmatprep.subr.mxu0 0.0
  %419 = vmatpush1.msra.mxu0 %v46
  %420 = vmatprep.subr.mxu0 0.0
  %421 = vmatpush1.msra.mxu0 %v47
  %422 = vmatprep.subr.mxu0 0.0
  %423 = vmatpush1.msra.mxu0 %v48
  %424 = vmatprep.subr.mxu0 0.0
  %425 = vmatpush1.msra.mxu0 %v49
  %426 = vmatprep.subr.mxu0 0.0
  %427 = vmatpush1.msra.mxu0 %v50
  %428 = vmatprep.subr.mxu0 0.0
  %429 = vmatpush1.msra.mxu0 %v51
  %430 = vmatprep.subr.mxu0 0.0
  %431 = vmatpush1.msra.mxu0 %v52
  %432 = vmatprep.subr.mxu0 0.0
  %433 = vmatpush1.msra.mxu0 %v53
  %434 = vmatprep.subr.mxu0 0.0
  %435 = vmatpush1.msra.mxu0 %v54
  %436 = vmatprep.subr.mxu0 0.0
  %437 = vmatpush1.msra.mxu0 %v55
  %438 = vmatprep.subr.mxu0 0.0
  %439 = vmatpush1.msra.mxu0 %v56
  %440 = vmatprep.subr.mxu0 0.0
  %441 = vmatpush1.msra.mxu0 %v57
  %442 = vmatprep.subr.mxu0 0.0
  %443 = vmatpush1.msra.mxu0 %v58
  %444 = vmatprep.subr.mxu0 0.0
  %445 = vmatpush1.msra.mxu0 %v59
  %446 = vmatprep.subr.mxu0 0.0
  %447 = vmatpush1.msra.mxu0 %v60
  %448 = vmatprep.subr.mxu0 0.0
  %449 = vmatpush1.msra.mxu0 %v61
  %450 = vmatprep.subr.mxu0 0.0
  %451 = vmatpush1.msra.mxu0 %v62
  %452 = vmatprep.subr.mxu0 0.0
  %453 = vmatpush1.msra.mxu0 %v63
  %454 = vmatprep.subr.mxu0 0.0
  %455 = vmatpush1.msra.mxu0 %v64
  %456 = vmatprep.subr.mxu0 0.0
  %457 = vmatpush1.msra.mxu0 %v65
  %458 = vmatprep.subr.mxu0 0.0
  %459 = vmatpush1.msra.mxu0 %v66
  %460 = vmatprep.subr.mxu0 0.0
  %461 = vmatpush1.msra.mxu0 %v67
  %462 = vmatprep.subr.mxu0 0.0
  %463 = vmatpush1.msra.mxu0 %v68
  %464 = vmatprep.subr.mxu0 0.0
  %465 = vmatpush1.msra.mxu0 %v69
  %466 = vmatprep.mubr.f32.mxu0 %v387
  %467 = vmatmul.mubr.f32.gmra.mrb[0].mxu0 %v386
  %v468 = vpop.f32.mrb[0].mxu0
  %v469 = vadd.f32 0.0, %v468
  %v470 = vpop.f32.mrb[0].mxu0
  %471 = vmatprep.mubr.f32.mxu0 %v389
  %472 = vmatmul.mubr.f32.gmra.mrb[0].mxu0 %v388
  %v473 = vpop.f32.mrb[0].mxu0
  %v474 = vadd.f32 0.0, %v473
  %v475 = vpop.f32.mrb[0].mxu0
  %476 = vmatprep.mubr.f32.mxu0 %v391
  %477 = vmatmul.mubr.f32.gmra.mrb[0].mxu0 %v390
  %v478 = vpop.f32.mrb[0].mxu0
  %v479 = vadd.f32 0.0, %v478
  %v480 = vpop.f32.mrb[0].mxu0
  %481 = vmatprep.mubr.f32.mxu0 %v393
  %482 = vmatmul.mubr.f32.gmra.mrb[0].mxu0 %v392
  %v483 = vpop.f32.mrb[0].mxu0
  %v484 = vadd.f32 0.0, %v483
  %v485 = vpop.f32.mrb[0].mxu0
  %486 = vmatprep.mubr.f32.mxu0 %v395
  %487 = vmatmul.mubr.f32.gmra.mrb[0].mxu0 %v394
  %v488 = vpop.f32.mrb[0].mxu0
  %v489 = vadd.f32 0.0, %v488
  %v490 = vpop.f32.mrb[0].mxu0
  %491 = vmatprep.mubr.f32.mxu0 %v397
  %492 = vmatmul.mubr.f32.gmra.mrb[0].mxu0 %v396
  %v493 = vpop.f32.mrb[0].mxu0
  %v494 = vadd.f32 0.0, %v493
  %v495 = vpop.f32.mrb[0].mxu0
  %496 = vmatprep.mubr.f32.mxu0 %v399
  %497 = vmatmul.mubr.f32.gmra.mrb[0].mxu0 %v398
  %v498 = vpop.f32.mrb[0].mxu0
  %v499 = vadd.f32 0.0, %v498
  %v500 = vpop.f32.mrb[0].mxu0
  %501 = vmatprep.mubr.f32.mxu0 %v401
  %502 = vmatmul.mubr.f32.gmra.mrb[0].mxu0 %v400
  %v503 = vpop.f32.mrb[0].mxu0
  %v504 = vadd.f32 0.0, %v503
  %v505 = vpop.f32.mrb[0].mxu0
  %506 = vdwg.mxu0
  %s507 = scalar_lea.vmem %s1, 384
  %v508 = vld [vmem:[%s507] sm:$0xff]
  %v509 = vld [vmem:[%s507 + $0x8] sm:$0xff]
  %v510 = vld [vmem:[%s507 + $0x10] sm:$0xff]
  %v511 = vld [vmem:[%s507 + $0x18] sm:$0xff]
  %v512 = vld [vmem:[%s507 + $0x20] sm:$0xff]
  %v513 = vld [vmem:[%s507 + $0x28] sm:$0xff]
  %v514 = vld [vmem:[%s507 + $0x30] sm:$0xff]
  %v515 = vld [vmem:[%s507 + $0x38] sm:$0xff]
  %v516 = vld [vmem:[%s507 + $0x40] sm:$0xff]
  %v517 = vld [vmem:[%s507 + $0x48] sm:$0xff]
  %v518 = vld [vmem:[%s507 + $0x50] sm:$0xff]
  %v519 = vld [vmem:[%s507 + $0x58] sm:$0xff]
  %v520 = vld [vmem:[%s507 + $0x60] sm:$0xff]
  %v521 = vld [vmem:[%s507 + $0x68] sm:$0xff]
  %v522 = vld [vmem:[%s507 + $0x70] sm:$0xff]
  %v523 = vld [vmem:[%s507 + $0x78] sm:$0xff]
  %524 = vmatprep.subr.mxu0 0.0
  %525 = vmatpush1.msra.mxu0 %v38
  %526 = vmatprep.subr.mxu0 0.0
  %527 = vmatpush1.msra.mxu0 %v39
  %528 = vmatprep.subr.mxu0 0.0
  %529 = vmatpush1.msra.mxu0 %v40
  %530 = vmatprep.subr.mxu0 0.0
  %531 = vmatpush1.msra.mxu0 %v41
  %532 = vmatprep.subr.mxu0 0.0
  %533 = vmatpush1.msra.mxu0 %v42
  %534 = vmatprep.subr.mxu0 0.0
  %535 = vmatpush1.msra.mxu0 %v43
  %536 = vmatprep.subr.mxu0 0.0
  %537 = vmatpush1.msra.mxu0 %v44
  %538 = vmatprep.subr.mxu0 0.0
  %539 = vmatpush1.msra.mxu0 %v45
  %540 = vmatprep.subr.mxu0 0.0
  %541 = vmatpush1.msra.mxu0 %v46
  %542 = vmatprep.subr.mxu0 0.0
  %543 = vmatpush1.msra.mxu0 %v47
  %544 = vmatprep.subr.mxu0 0.0
  %545 = vmatpush1.msra.mxu0 %v48
  %546 = vmatprep.subr.mxu0 0.0
  %547 = vmatpush1.msra.mxu0 %v49
  %548 = vmatprep.subr.mxu0 0.0
  %549 = vmatpush1.msra.mxu0 %v50
  %550 = vmatprep.subr.mxu0 0.0
  %551 = vmatpush1.msra.mxu0 %v51
  %552 = vmatprep.subr.mxu0 0.0
  %553 = vmatpush1.msra.mxu0 %v52
  %554 = vmatprep.subr.mxu0 0.0
  %555 = vmatpush1.msra.mxu0 %v53
  %556 = vmatprep.subr.mxu0 0.0
  %557 = vmatpush1.msra.mxu0 %v54
  %558 = vmatprep.subr.mxu0 0.0
  %559 = vmatpush1.msra.mxu0 %v55
  %560 = vmatprep.subr.mxu0 0.0
  %561 = vmatpush1.msra.mxu0 %v56
  %562 = vmatprep.subr.mxu0 0.0
  %563 = vmatpush1.msra.mxu0 %v57
  %564 = vmatprep.subr.mxu0 0.0
  %565 = vmatpush1.msra.mxu0 %v58
  %566 = vmatprep.subr.mxu0 0.0
  %567 = vmatpush1.msra.mxu0 %v59
  %568 = vmatprep.subr.mxu0 0.0
  %569 = vmatpush1.msra.mxu0 %v60
  %570 = vmatprep.subr.mxu0 0.0
  %571 = vmatpush1.msra.mxu0 %v61
  %572 = vmatprep.subr.mxu0 0.0
  %573 = vmatpush1.msra.mxu0 %v62
  %574 = vmatprep.subr.mxu0 0.0
  %575 = vmatpush1.msra.mxu0 %v63
  %576 = vmatprep.subr.mxu0 0.0
  %577 = vmatpush1.msra.mxu0 %v64
  %578 = vmatprep.subr.mxu0 0.0
  %579 = vmatpush1.msra.mxu0 %v65
  %580 = vmatprep.subr.mxu0 0.0
  %581 = vmatpush1.msra.mxu0 %v66
  %582 = vmatprep.subr.mxu0 0.0
  %583 = vmatpush1.msra.mxu0 %v67
  %584 = vmatprep.subr.mxu0 0.0
  %585 = vmatpush1.msra.mxu0 %v68
  %586 = vmatprep.subr.mxu0 0.0
  %587 = vmatpush1.msra.mxu0 %v69
  %588 = vmatprep.mubr.f32.mxu0 %v509
  %589 = vmatmul.mubr.f32.gmra.mrb[0].mxu0 %v508
  %v590 = vpop.f32.mrb[0].mxu0
  %v591 = vadd.f32 0.0, %v590
  %v592 = vpop.f32.mrb[0].mxu0
  %593 = vmatprep.mubr.f32.mxu0 %v511
  %594 = vmatmul.mubr.f32.gmra.mrb[0].mxu0 %v510
  %v595 = vpop.f32.mrb[0].mxu0
  %v596 = vadd.f32 0.0, %v595
  %v597 = vpop.f32.mrb[0].mxu0
  %598 = vmatprep.mubr.f32.mxu0 %v513
  %599 = vmatmul.mubr.f32.gmra.mrb[0].mxu0 %v512
  %v600 = vpop.f32.mrb[0].mxu0
  %v601 = vadd.f32 0.0, %v600
  %v602 = vpop.f32.mrb[0].mxu0
  %603 = vmatprep.mubr.f32.mxu0 %v515
  %604 = vmatmul.mubr.f32.gmra.mrb[0].mxu0 %v514
  %v605 = vpop.f32.mrb[0].mxu0
  %v606 = vadd.f32 0.0, %v605
  %v607 = vpop.f32.mrb[0].mxu0
  %608 = vmatprep.mubr.f32.mxu0 %v517
  %609 = vmatmul.mubr.f32.gmra.mrb[0].mxu0 %v516
  %v610 = vpop.f32.mrb[0].mxu0
  %v611 = vadd.f32 0.0, %v610
  %v612 = vpop.f32.mrb[0].mxu0
  %613 = vmatprep.mubr.f32.mxu0 %v519
  %614 = vmatmul.mubr.f32.gmra.mrb[0].mxu0 %v518
  %v615 = vpop.f32.mrb[0].mxu0
  %v616 = vadd.f32 0.0, %v615
  %v617 = vpop.f32.mrb[0].mxu0
  %618 = vmatprep.mubr.f32.mxu0 %v521
  %619 = vmatmul.mubr.f32.gmra.mrb[0].mxu0 %v520
  %v620 = vpop.f32.mrb[0].mxu0
  %v621 = vadd.f32 0.0, %v620
  %v622 = vpop.f32.mrb[0].mxu0
  %623 = vmatprep.mubr.f32.mxu0 %v523
  %624 = vmatmul.mubr.f32.gmra.mrb[0].mxu0 %v522
  %v625 = vpop.f32.mrb[0].mxu0
  %v626 = vadd.f32 0.0, %v625
  %v627 = vpop.f32.mrb[0].mxu0
  %628 = vdwg.mxu0
  %s629 = scalar_lea.vmem %s1, 512
  %v630 = vld [vmem:[%s629] sm:$0xff]
  %v631 = vld [vmem:[%s629 + $0x8] sm:$0xff]
  %v632 = vld [vmem:[%s629 + $0x10] sm:$0xff]
  %v633 = vld [vmem:[%s629 + $0x18] sm:$0xff]
  %v634 = vld [vmem:[%s629 + $0x20] sm:$0xff]
  %v635 = vld [vmem:[%s629 + $0x28] sm:$0xff]
  %v636 = vld [vmem:[%s629 + $0x30] sm:$0xff]
  %v637 = vld [vmem:[%s629 + $0x38] sm:$0xff]
  %v638 = vld [vmem:[%s629 + $0x40] sm:$0xff]
  %v639 = vld [vmem:[%s629 + $0x48] sm:$0xff]
  %v640 = vld [vmem:[%s629 + $0x50] sm:$0xff]
  %v641 = vld [vmem:[%s629 + $0x58] sm:$0xff]
  %v642 = vld [vmem:[%s629 + $0x60] sm:$0xff]
  %v643 = vld [vmem:[%s629 + $0x68] sm:$0xff]
  %v644 = vld [vmem:[%s629 + $0x70] sm:$0xff]
  %v645 = vld [vmem:[%s629 + $0x78] sm:$0xff]
  %646 = vmatprep.subr.mxu0 0.0
  %647 = vmatpush1.msra.mxu0 %v38
  %648 = vmatprep.subr.mxu0 0.0
  %649 = vmatpush1.msra.mxu0 %v39
  %650 = vmatprep.subr.mxu0 0.0
  %651 = vmatpush1.msra.mxu0 %v40
  %652 = vmatprep.subr.mxu0 0.0
  %653 = vmatpush1.msra.mxu0 %v41
  %654 = vmatprep.subr.mxu0 0.0
  %655 = vmatpush1.msra.mxu0 %v42
  %656 = vmatprep.subr.mxu0 0.0
  %657 = vmatpush1.msra.mxu0 %v43
  %658 = vmatprep.subr.mxu0 0.0
  %659 = vmatpush1.msra.mxu0 %v44
  %660 = vmatprep.subr.mxu0 0.0
  %661 = vmatpush1.msra.mxu0 %v45
  %662 = vmatprep.subr.mxu0 0.0
  %663 = vmatpush1.msra.mxu0 %v46
  %664 = vmatprep.subr.mxu0 0.0
  %665 = vmatpush1.msra.mxu0 %v47
  %666 = vmatprep.subr.mxu0 0.0
  %667 = vmatpush1.msra.mxu0 %v48
  %668 = vmatprep.subr.mxu0 0.0
  %669 = vmatpush1.msra.mxu0 %v49
  %670 = vmatprep.subr.mxu0 0.0
  %671 = vmatpush1.msra.mxu0 %v50
  %672 = vmatprep.subr.mxu0 0.0
  %673 = vmatpush1.msra.mxu0 %v51
  %674 = vmatprep.subr.mxu0 0.0
  %675 = vmatpush1.msra.mxu0 %v52
  %676 = vmatprep.subr.mxu0 0.0
  %677 = vmatpush1.msra.mxu0 %v53
  %678 = vmatprep.subr.mxu0 0.0
  %679 = vmatpush1.msra.mxu0 %v54
  %680 = vmatprep.subr.mxu0 0.0
  %681 = vmatpush1.msra.mxu0 %v55
  %682 = vmatprep.subr.mxu0 0.0
  %683 = vmatpush1.msra.mxu0 %v56
  %684 = vmatprep.subr.mxu0 0.0
  %685 = vmatpush1.msra.mxu0 %v57
  %686 = vmatprep.subr.mxu0 0.0
  %687 = vmatpush1.msra.mxu0 %v58
  %688 = vmatprep.subr.mxu0 0.0
  %689 = vmatpush1.msra.mxu0 %v59
  %690 = vmatprep.subr.mxu0 0.0
  %691 = vmatpush1.msra.mxu0 %v60
  %692 = vmatprep.subr.mxu0 0.0
  %693 = vmatpush1.msra.mxu0 %v61
  %694 = vmatprep.subr.mxu0 0.0
  %695 = vmatpush1.msra.mxu0 %v62
  %696 = vmatprep.subr.mxu0 0.0
  %697 = vmatpush1.msra.mxu0 %v63
  %698 = vmatprep.subr.mxu0 0.0
  %699 = vmatpush1.msra.mxu0 %v64
  %700 = vmatprep.subr.mxu0 0.0
  %701 = vmatpush1.msra.mxu0 %v65
  %702 = vmatprep.subr.mxu0 0.0
  %703 = vmatpush1.msra.mxu0 %v66
  %704 = vmatprep.subr.mxu0 0.0
  %705 = vmatpush1.msra.mxu0 %v67
  %706 = vmatprep.subr.mxu0 0.0
  %707 = vmatpush1.msra.mxu0 %v68
  %708 = vmatprep.subr.mxu0 0.0
  %709 = vmatpush1.msra.mxu0 %v69
  %710 = vmatprep.mubr.f32.mxu0 %v631
  %711 = vmatmul.mubr.f32.gmra.mrb[0].mxu0 %v630
  %v712 = vpop.f32.mrb[0].mxu0
  %v713 = vadd.f32 0.0, %v712
  %v714 = vpop.f32.mrb[0].mxu0
  %715 = vmatprep.mubr.f32.mxu0 %v633
  %716 = vmatmul.mubr.f32.gmra.mrb[0].mxu0 %v632
  %v717 = vpop.f32.mrb[0].mxu0
  %v718 = vadd.f32 0.0, %v717
  %v719 = vpop.f32.mrb[0].mxu0
  %720 = vmatprep.mubr.f32.mxu0 %v635
  %721 = vmatmul.mubr.f32.gmra.mrb[0].mxu0 %v634
  %v722 = vpop.f32.mrb[0].mxu0
  %v723 = vadd.f32 0.0, %v722
  %v724 = vpop.f32.mrb[0].mxu0
  %725 = vmatprep.mubr.f32.mxu0 %v637
  %726 = vmatmul.mubr.f32.gmra.mrb[0].mxu0 %v636
  %v727 = vpop.f32.mrb[0].mxu0
  %v728 = vadd.f32 0.0, %v727
  %v729 = vpop.f32.mrb[0].mxu0
  %730 = vmatprep.mubr.f32.mxu0 %v639
  %731 = vmatmul.mubr.f32.gmra.mrb[0].mxu0 %v638
  %v732 = vpop.f32.mrb[0].mxu0
  %v733 = vadd.f32 0.0, %v732
  %v734 = vpop.f32.mrb[0].mxu0
  %735 = vmatprep.mubr.f32.mxu0 %v641
  %736 = vmatmul.mubr.f32.gmra.mrb[0].mxu0 %v640
  %v737 = vpop.f32.mrb[0].mxu0
  %v738 = vadd.f32 0.0, %v737
  %v739 = vpop.f32.mrb[0].mxu0
  %740 = vmatprep.mubr.f32.mxu0 %v643
  %741 = vmatmul.mubr.f32.gmra.mrb[0].mxu0 %v642
  %v742 = vpop.f32.mrb[0].mxu0
  %v743 = vadd.f32 0.0, %v742
  %v744 = vpop.f32.mrb[0].mxu0
  %745 = vmatprep.mubr.f32.mxu0 %v645
  %746 = vmatmul.mubr.f32.gmra.mrb[0].mxu0 %v644
  %v747 = vpop.f32.mrb[0].mxu0
  %v748 = vadd.f32 0.0, %v747
  %v749 = vpop.f32.mrb[0].mxu0
  %750 = vdwg.mxu0
  %s751 = scalar_lea.vmem %s1, 640
  %v752 = vld [vmem:[%s751] sm:$0xff]
  %v753 = vld [vmem:[%s751 + $0x8] sm:$0xff]
  %v754 = vld [vmem:[%s751 + $0x10] sm:$0xff]
  %v755 = vld [vmem:[%s751 + $0x18] sm:$0xff]
  %v756 = vld [vmem:[%s751 + $0x20] sm:$0xff]
  %v757 = vld [vmem:[%s751 + $0x28] sm:$0xff]
  %v758 = vld [vmem:[%s751 + $0x30] sm:$0xff]
  %v759 = vld [vmem:[%s751 + $0x38] sm:$0xff]
  %v760 = vld [vmem:[%s751 + $0x40] sm:$0xff]
  %v761 = vld [vmem:[%s751 + $0x48] sm:$0xff]
  %v762 = vld [vmem:[%s751 + $0x50] sm:$0xff]
  %v763 = vld [vmem:[%s751 + $0x58] sm:$0xff]
  %v764 = vld [vmem:[%s751 + $0x60] sm:$0xff]
  %v765 = vld [vmem:[%s751 + $0x68] sm:$0xff]
  %v766 = vld [vmem:[%s751 + $0x70] sm:$0xff]
  %v767 = vld [vmem:[%s751 + $0x78] sm:$0xff]
  %768 = vmatprep.subr.mxu0 0.0
  %769 = vmatpush1.msra.mxu0 %v38
  %770 = vmatprep.subr.mxu0 0.0
  %771 = vmatpush1.msra.mxu0 %v39
  %772 = vmatprep.subr.mxu0 0.0
  %773 = vmatpush1.msra.mxu0 %v40
  %774 = vmatprep.subr.mxu0 0.0
  %775 = vmatpush1.msra.mxu0 %v41
  %776 = vmatprep.subr.mxu0 0.0
  %777 = vmatpush1.msra.mxu0 %v42
  %778 = vmatprep.subr.mxu0 0.0
  %779 = vmatpush1.msra.mxu0 %v43
  %780 = vmatprep.subr.mxu0 0.0
  %781 = vmatpush1.msra.mxu0 %v44
  %782 = vmatprep.subr.mxu0 0.0
  %783 = vmatpush1.msra.mxu0 %v45
  %784 = vmatprep.subr.mxu0 0.0
  %785 = vmatpush1.msra.mxu0 %v46
  %786 = vmatprep.subr.mxu0 0.0
  %787 = vmatpush1.msra.mxu0 %v47
  %788 = vmatprep.subr.mxu0 0.0
  %789 = vmatpush1.msra.mxu0 %v48
  %790 = vmatprep.subr.mxu0 0.0
  %791 = vmatpush1.msra.mxu0 %v49
  %792 = vmatprep.subr.mxu0 0.0
  %793 = vmatpush1.msra.mxu0 %v50
  %794 = vmatprep.subr.mxu0 0.0
  %795 = vmatpush1.msra.mxu0 %v51
  %796 = vmatprep.subr.mxu0 0.0
  %797 = vmatpush1.msra.mxu0 %v52
  %798 = vmatprep.subr.mxu0 0.0
  %799 = vmatpush1.msra.mxu0 %v53
  %800 = vmatprep.subr.mxu0 0.0
  %801 = vmatpush1.msra.mxu0 %v54
  %802 = vmatprep.subr.mxu0 0.0
  %803 = vmatpush1.msra.mxu0 %v55
  %804 = vmatprep.subr.mxu0 0.0
  %805 = vmatpush1.msra.mxu0 %v56
  %806 = vmatprep.subr.mxu0 0.0
  %807 = vmatpush1.msra.mxu0 %v57
  %808 = vmatprep.subr.mxu0 0.0
  %809 = vmatpush1.msra.mxu0 %v58
  %810 = vmatprep.subr.mxu0 0.0
  %811 = vmatpush1.msra.mxu0 %v59
  %812 = vmatprep.subr.mxu0 0.0
  %813 = vmatpush1.msra.mxu0 %v60
  %814 = vmatprep.subr.mxu0 0.0
  %815 = vmatpush1.msra.mxu0 %v61
  %816 = vmatprep.subr.mxu0 0.0
  %817 = vmatpush1.msra.mxu0 %v62
  %818 = vmatprep.subr.mxu0 0.0
  %819 = vmatpush1.msra.mxu0 %v63
  %820 = vmatprep.subr.mxu0 0.0
  %821 = vmatpush1.msra.mxu0 %v64
  %822 = vmatprep.subr.mxu0 0.0
  %823 = vmatpush1.msra.mxu0 %v65
  %824 = vmatprep.subr.mxu0 0.0
  %825 = vmatpush1.msra.mxu0 %v66
  %826 = vmatprep.subr.mxu0 0.0
  %827 = vmatpush1.msra.mxu0 %v67
  %828 = vmatprep.subr.mxu0 0.0
  %829 = vmatpush1.msra.mxu0 %v68
  %830 = vmatprep.subr.mxu0 0.0
  %831 = vmatpush1.msra.mxu0 %v69
  %832 = vmatprep.mubr.f32.mxu0 %v753
  %833 = vmatmul.mubr.f32.gmra.mrb[0].mxu0 %v752
  %v834 = vpop.f32.mrb[0].mxu0
  %v835 = vadd.f32 0.0, %v834
  %v836 = vpop.f32.mrb[0].mxu0
  %837 = vmatprep.mubr.f32.mxu0 %v755
  %838 = vmatmul.mubr.f32.gmra.mrb[0].mxu0 %v754
  %v839 = vpop.f32.mrb[0].mxu0
  %v840 = vadd.f32 0.0, %v839
  %v841 = vpop.f32.mrb[0].mxu0
  %842 = vmatprep.mubr.f32.mxu0 %v757
  %843 = vmatmul.mubr.f32.gmra.mrb[0].mxu0 %v756
  %v844 = vpop.f32.mrb[0].mxu0
  %v845 = vadd.f32 0.0, %v844
  %v846 = vpop.f32.mrb[0].mxu0
  %847 = vmatprep.mubr.f32.mxu0 %v759
  %848 = vmatmul.mubr.f32.gmra.mrb[0].mxu0 %v758
  %v849 = vpop.f32.mrb[0].mxu0
  %v850 = vadd.f32 0.0, %v849
  %v851 = vpop.f32.mrb[0].mxu0
  %852 = vmatprep.mubr.f32.mxu0 %v761
  %853 = vmatmul.mubr.f32.gmra.mrb[0].mxu0 %v760
  %v854 = vpop.f32.mrb[0].mxu0
  %v855 = vadd.f32 0.0, %v854
  %v856 = vpop.f32.mrb[0].mxu0
  %857 = vmatprep.mubr.f32.mxu0 %v763
  %858 = vmatmul.mubr.f32.gmra.mrb[0].mxu0 %v762
  %v859 = vpop.f32.mrb[0].mxu0
  %v860 = vadd.f32 0.0, %v859
  %v861 = vpop.f32.mrb[0].mxu0
  %862 = vmatprep.mubr.f32.mxu0 %v765
  %863 = vmatmul.mubr.f32.gmra.mrb[0].mxu0 %v764
  %v864 = vpop.f32.mrb[0].mxu0
  %v865 = vadd.f32 0.0, %v864
  %v866 = vpop.f32.mrb[0].mxu0
  %867 = vmatprep.mubr.f32.mxu0 %v767
  %868 = vmatmul.mubr.f32.gmra.mrb[0].mxu0 %v766
  %v869 = vpop.f32.mrb[0].mxu0
  %v870 = vadd.f32 0.0, %v869
  %v871 = vpop.f32.mrb[0].mxu0
  %872 = vdwg.mxu0
  %s873 = scalar_lea.vmem %s1, 768
  %v874 = vld [vmem:[%s873] sm:$0xff]
  %v875 = vld [vmem:[%s873 + $0x8] sm:$0xff]
  %v876 = vld [vmem:[%s873 + $0x10] sm:$0xff]
  %v877 = vld [vmem:[%s873 + $0x18] sm:$0xff]
  %v878 = vld [vmem:[%s873 + $0x20] sm:$0xff]
  %v879 = vld [vmem:[%s873 + $0x28] sm:$0xff]
  %v880 = vld [vmem:[%s873 + $0x30] sm:$0xff]
  %v881 = vld [vmem:[%s873 + $0x38] sm:$0xff]
  %v882 = vld [vmem:[%s873 + $0x40] sm:$0xff]
  %v883 = vld [vmem:[%s873 + $0x48] sm:$0xff]
  %v884 = vld [vmem:[%s873 + $0x50] sm:$0xff]
  %v885 = vld [vmem:[%s873 + $0x58] sm:$0xff]
  %v886 = vld [vmem:[%s873 + $0x60] sm:$0xff]
  %v887 = vld [vmem:[%s873 + $0x68] sm:$0xff]
  %v888 = vld [vmem:[%s873 + $0x70] sm:$0xff]
  %v889 = vld [vmem:[%s873 + $0x78] sm:$0xff]
  %890 = vmatprep.subr.mxu0 0.0
  %891 = vmatpush1.msra.mxu0 %v38
  %892 = vmatprep.subr.mxu0 0.0
  %893 = vmatpush1.msra.mxu0 %v39
  %894 = vmatprep.subr.mxu0 0.0
  %895 = vmatpush1.msra.mxu0 %v40
  %896 = vmatprep.subr.mxu0 0.0
  %897 = vmatpush1.msra.mxu0 %v41
  %898 = vmatprep.subr.mxu0 0.0
  %899 = vmatpush1.msra.mxu0 %v42
  %900 = vmatprep.subr.mxu0 0.0
  %901 = vmatpush1.msra.mxu0 %v43
  %902 = vmatprep.subr.mxu0 0.0
  %903 = vmatpush1.msra.mxu0 %v44
  %904 = vmatprep.subr.mxu0 0.0
  %905 = vmatpush1.msra.mxu0 %v45
  %906 = vmatprep.subr.mxu0 0.0
  %907 = vmatpush1.msra.mxu0 %v46
  %908 = vmatprep.subr.mxu0 0.0
  %909 = vmatpush1.msra.mxu0 %v47
  %910 = vmatprep.subr.mxu0 0.0
  %911 = vmatpush1.msra.mxu0 %v48
  %912 = vmatprep.subr.mxu0 0.0
  %913 = vmatpush1.msra.mxu0 %v49
  %914 = vmatprep.subr.mxu0 0.0
  %915 = vmatpush1.msra.mxu0 %v50
  %916 = vmatprep.subr.mxu0 0.0
  %917 = vmatpush1.msra.mxu0 %v51
  %918 = vmatprep.subr.mxu0 0.0
  %919 = vmatpush1.msra.mxu0 %v52
  %920 = vmatprep.subr.mxu0 0.0
  %921 = vmatpush1.msra.mxu0 %v53
  %922 = vmatprep.subr.mxu0 0.0
  %923 = vmatpush1.msra.mxu0 %v54
  %924 = vmatprep.subr.mxu0 0.0
  %925 = vmatpush1.msra.mxu0 %v55
  %926 = vmatprep.subr.mxu0 0.0
  %927 = vmatpush1.msra.mxu0 %v56
  %928 = vmatprep.subr.mxu0 0.0
  %929 = vmatpush1.msra.mxu0 %v57
  %930 = vmatprep.subr.mxu0 0.0
  %931 = vmatpush1.msra.mxu0 %v58
  %932 = vmatprep.subr.mxu0 0.0
  %933 = vmatpush1.msra.mxu0 %v59
  %934 = vmatprep.subr.mxu0 0.0
  %935 = vmatpush1.msra.mxu0 %v60
  %936 = vmatprep.subr.mxu0 0.0
  %937 = vmatpush1.msra.mxu0 %v61
  %938 = vmatprep.subr.mxu0 0.0
  %939 = vmatpush1.msra.mxu0 %v62
  %940 = vmatprep.subr.mxu0 0.0
  %941 = vmatpush1.msra.mxu0 %v63
  %942 = vmatprep.subr.mxu0 0.0
  %943 = vmatpush1.msra.mxu0 %v64
  %944 = vmatprep.subr.mxu0 0.0
  %945 = vmatpush1.msra.mxu0 %v65
  %946 = vmatprep.subr.mxu0 0.0
  %947 = vmatpush1.msra.mxu0 %v66
  %948 = vmatprep.subr.mxu0 0.0
  %949 = vmatpush1.msra.mxu0 %v67
  %950 = vmatprep.subr.mxu0 0.0
  %951 = vmatpush1.msra.mxu0 %v68
  %952 = vmatprep.subr.mxu0 0.0
  %953 = vmatpush1.msra.mxu0 %v69
  %954 = vmatprep.mubr.f32.mxu0 %v875
  %955 = vmatmul.mubr.f32.gmra.mrb[0].mxu0 %v874
  %v956 = vpop.f32.mrb[0].mxu0
  %v957 = vadd.f32 0.0, %v956
  %v958 = vpop.f32.mrb[0].mxu0
  %959 = vmatprep.mubr.f32.mxu0 %v877
  %960 = vmatmul.mubr.f32.gmra.mrb[0].mxu0 %v876
  %v961 = vpop.f32.mrb[0].mxu0
  %v962 = vadd.f32 0.0, %v961
  %v963 = vpop.f32.mrb[0].mxu0
  %964 = vmatprep.mubr.f32.mxu0 %v879
  %965 = vmatmul.mubr.f32.gmra.mrb[0].mxu0 %v878
  %v966 = vpop.f32.mrb[0].mxu0
  %v967 = vadd.f32 0.0, %v966
  %v968 = vpop.f32.mrb[0].mxu0
  %969 = vmatprep.mubr.f32.mxu0 %v881
  %970 = vmatmul.mubr.f32.gmra.mrb[0].mxu0 %v880
  %v971 = vpop.f32.mrb[0].mxu0
  %v972 = vadd.f32 0.0, %v971
  %v973 = vpop.f32.mrb[0].mxu0
  %974 = vmatprep.mubr.f32.mxu0 %v883
  %975 = vmatmul.mubr.f32.gmra.mrb[0].mxu0 %v882
  %v976 = vpop.f32.mrb[0].mxu0
  %v977 = vadd.f32 0.0, %v976
  %v978 = vpop.f32.mrb[0].mxu0
  %979 = vmatprep.mubr.f32.mxu0 %v885
  %980 = vmatmul.mubr.f32.gmra.mrb[0].mxu0 %v884
  %v981 = vpop.f32.mrb[0].mxu0
  %v982 = vadd.f32 0.0, %v981
  %v983 = vpop.f32.mrb[0].mxu0
  %984 = vmatprep.mubr.f32.mxu0 %v887
  %985 = vmatmul.mubr.f32.gmra.mrb[0].mxu0 %v886
  %v986 = vpop.f32.mrb[0].mxu0
  %v987 = vadd.f32 0.0, %v986
  %v988 = vpop.f32.mrb[0].mxu0
  %989 = vmatprep.mubr.f32.mxu0 %v889
  %990 = vmatmul.mubr.f32.gmra.mrb[0].mxu0 %v888
  %v991 = vpop.f32.mrb[0].mxu0
  %v992 = vadd.f32 0.0, %v991
  %v993 = vpop.f32.mrb[0].mxu0
  %994 = vdwg.mxu0
  %s995 = scalar_lea.vmem %s1, 896
  %v996 = vld [vmem:[%s995] sm:$0xff]
  %v997 = vld [vmem:[%s995 + $0x8] sm:$0xff]
  %v998 = vld [vmem:[%s995 + $0x10] sm:$0xff]
  %v999 = vld [vmem:[%s995 + $0x18] sm:$0xff]
  %v1000 = vld [vmem:[%s995 + $0x20] sm:$0xff]
  %v1001 = vld [vmem:[%s995 + $0x28] sm:$0xff]
  %v1002 = vld [vmem:[%s995 + $0x30] sm:$0xff]
  %v1003 = vld [vmem:[%s995 + $0x38] sm:$0xff]
  %v1004 = vld [vmem:[%s995 + $0x40] sm:$0xff]
  %v1005 = vld [vmem:[%s995 + $0x48] sm:$0xff]
  %v1006 = vld [vmem:[%s995 + $0x50] sm:$0xff]
  %v1007 = vld [vmem:[%s995 + $0x58] sm:$0xff]
  %v1008 = vld [vmem:[%s995 + $0x60] sm:$0xff]
  %v1009 = vld [vmem:[%s995 + $0x68] sm:$0xff]
  %v1010 = vld [vmem:[%s995 + $0x70] sm:$0xff]
  %v1011 = vld [vmem:[%s995 + $0x78] sm:$0xff]
  %1012 = vmatprep.subr.mxu0 0.0
  %1013 = vmatpush1.msra.mxu0 %v38
  %1014 = vmatprep.subr.mxu0 0.0
  %1015 = vmatpush1.msra.mxu0 %v39
  %1016 = vmatprep.subr.mxu0 0.0
  %1017 = vmatpush1.msra.mxu0 %v40
  %1018 = vmatprep.subr.mxu0 0.0
  %1019 = vmatpush1.msra.mxu0 %v41
  %1020 = vmatprep.subr.mxu0 0.0
  %1021 = vmatpush1.msra.mxu0 %v42
  %1022 = vmatprep.subr.mxu0 0.0
  %1023 = vmatpush1.msra.mxu0 %v43
  %1024 = vmatprep.subr.mxu0 0.0
  %1025 = vmatpush1.msra.mxu0 %v44
  %1026 = vmatprep.subr.mxu0 0.0
  %1027 = vmatpush1.msra.mxu0 %v45
  %1028 = vmatprep.subr.mxu0 0.0
  %1029 = vmatpush1.msra.mxu0 %v46
  %1030 = vmatprep.subr.mxu0 0.0
  %1031 = vmatpush1.msra.mxu0 %v47
  %1032 = vmatprep.subr.mxu0 0.0
  %1033 = vmatpush1.msra.mxu0 %v48
  %1034 = vmatprep.subr.mxu0 0.0
  %1035 = vmatpush1.msra.mxu0 %v49
  %1036 = vmatprep.subr.mxu0 0.0
  %1037 = vmatpush1.msra.mxu0 %v50
  %1038 = vmatprep.subr.mxu0 0.0
  %1039 = vmatpush1.msra.mxu0 %v51
  %1040 = vmatprep.subr.mxu0 0.0
  %1041 = vmatpush1.msra.mxu0 %v52
  %1042 = vmatprep.subr.mxu0 0.0
  %1043 = vmatpush1.msra.mxu0 %v53
  %1044 = vmatprep.subr.mxu0 0.0
  %1045 = vmatpush1.msra.mxu0 %v54
  %1046 = vmatprep.subr.mxu0 0.0
  %1047 = vmatpush1.msra.mxu0 %v55
  %1048 = vmatprep.subr.mxu0 0.0
  %1049 = vmatpush1.msra.mxu0 %v56
  %1050 = vmatprep.subr.mxu0 0.0
  %1051 = vmatpush1.msra.mxu0 %v57
  %1052 = vmatprep.subr.mxu0 0.0
  %1053 = vmatpush1.msra.mxu0 %v58
  %1054 = vmatprep.subr.mxu0 0.0
  %1055 = vmatpush1.msra.mxu0 %v59
  %1056 = vmatprep.subr.mxu0 0.0
  %1057 = vmatpush1.msra.mxu0 %v60
  %1058 = vmatprep.subr.mxu0 0.0
  %1059 = vmatpush1.msra.mxu0 %v61
  %1060 = vmatprep.subr.mxu0 0.0
  %1061 = vmatpush1.msra.mxu0 %v62
  %1062 = vmatprep.subr.mxu0 0.0
  %1063 = vmatpush1.msra.mxu0 %v63
  %1064 = vmatprep.subr.mxu0 0.0
  %1065 = vmatpush1.msra.mxu0 %v64
  %1066 = vmatprep.subr.mxu0 0.0
  %1067 = vmatpush1.msra.mxu0 %v65
  %1068 = vmatprep.subr.mxu0 0.0
  %1069 = vmatpush1.msra.mxu0 %v66
  %1070 = vmatprep.subr.mxu0 0.0
  %1071 = vmatpush1.msra.mxu0 %v67
  %1072 = vmatprep.subr.mxu0 0.0
  %1073 = vmatpush1.msra.mxu0 %v68
  %1074 = vmatprep.subr.mxu0 0.0
  %1075 = vmatpush1.msra.mxu0 %v69
  %1076 = vmatprep.mubr.f32.mxu0 %v997
  %1077 = vmatmul.mubr.f32.gmra.mrb[0].mxu0 %v996
  %v1078 = vpop.f32.mrb[0].mxu0
  %v1079 = vadd.f32 0.0, %v1078
  %v1080 = vpop.f32.mrb[0].mxu0
  %1081 = vmatprep.mubr.f32.mxu0 %v999
  %1082 = vmatmul.mubr.f32.gmra.mrb[0].mxu0 %v998
  %v1083 = vpop.f32.mrb[0].mxu0
  %v1084 = vadd.f32 0.0, %v1083
  %v1085 = vpop.f32.mrb[0].mxu0
  %1086 = vmatprep.mubr.f32.mxu0 %v1001
  %1087 = vmatmul.mubr.f32.gmra.mrb[0].mxu0 %v1000
  %v1088 = vpop.f32.mrb[0].mxu0
  %v1089 = vadd.f32 0.0, %v1088
  %v1090 = vpop.f32.mrb[0].mxu0
  %1091 = vmatprep.mubr.f32.mxu0 %v1003
  %1092 = vmatmul.mubr.f32.gmra.mrb[0].mxu0 %v1002
  %v1093 = vpop.f32.mrb[0].mxu0
  %v1094 = vadd.f32 0.0, %v1093
  %v1095 = vpop.f32.mrb[0].mxu0
  %1096 = vmatprep.mubr.f32.mxu0 %v1005
  %1097 = vmatmul.mubr.f32.gmra.mrb[0].mxu0 %v1004
  %v1098 = vpop.f32.mrb[0].mxu0
  %v1099 = vadd.f32 0.0, %v1098
  %v1100 = vpop.f32.mrb[0].mxu0
  %1101 = vmatprep.mubr.f32.mxu0 %v1007
  %1102 = vmatmul.mubr.f32.gmra.mrb[0].mxu0 %v1006
  %v1103 = vpop.f32.mrb[0].mxu0
  %v1104 = vadd.f32 0.0, %v1103
  %v1105 = vpop.f32.mrb[0].mxu0
  %1106 = vmatprep.mubr.f32.mxu0 %v1009
  %1107 = vmatmul.mubr.f32.gmra.mrb[0].mxu0 %v1008
  %v1108 = vpop.f32.mrb[0].mxu0
  %v1109 = vadd.f32 0.0, %v1108
  %v1110 = vpop.f32.mrb[0].mxu0
  %1111 = vmatprep.mubr.f32.mxu0 %v1011
  %1112 = vmatmul.mubr.f32.gmra.mrb[0].mxu0 %v1010
  %v1113 = vpop.f32.mrb[0].mxu0
  %v1114 = vadd.f32 0.0, %v1113
  %v1115 = vpop.f32.mrb[0].mxu0
  %1116 = vdwg.mxu0
  %s1117 = scalar_lea.vmem %s1, 1024
  %v1118 = vld [vmem:[%s1117] sm:$0xff]
  %v1119 = vld [vmem:[%s1117 + $0x8] sm:$0xff]
  %v1120 = vld [vmem:[%s1117 + $0x10] sm:$0xff]
  %v1121 = vld [vmem:[%s1117 + $0x18] sm:$0xff]
  %v1122 = vld [vmem:[%s1117 + $0x20] sm:$0xff]
  %v1123 = vld [vmem:[%s1117 + $0x28] sm:$0xff]
  %v1124 = vld [vmem:[%s1117 + $0x30] sm:$0xff]
  %v1125 = vld [vmem:[%s1117 + $0x38] sm:$0xff]
  %v1126 = vld [vmem:[%s1117 + $0x40] sm:$0xff]
  %v1127 = vld [vmem:[%s1117 + $0x48] sm:$0xff]
  %v1128 = vld [vmem:[%s1117 + $0x50] sm:$0xff]
  %v1129 = vld [vmem:[%s1117 + $0x58] sm:$0xff]
  %v1130 = vld [vmem:[%s1117 + $0x60] sm:$0xff]
  %v1131 = vld [vmem:[%s1117 + $0x68] sm:$0xff]
  %v1132 = vld [vmem:[%s1117 + $0x70] sm:$0xff]
  %v1133 = vld [vmem:[%s1117 + $0x78] sm:$0xff]
  %1134 = vmatprep.subr.mxu0 0.0
  %1135 = vmatpush1.msra.mxu0 %v38
  %1136 = vmatprep.subr.mxu0 0.0
  %1137 = vmatpush1.msra.mxu0 %v39
  %1138 = vmatprep.subr.mxu0 0.0
  %1139 = vmatpush1.msra.mxu0 %v40
  %1140 = vmatprep.subr.mxu0 0.0
  %1141 = vmatpush1.msra.mxu0 %v41
  %1142 = vmatprep.subr.mxu0 0.0
  %1143 = vmatpush1.msra.mxu0 %v42
  %1144 = vmatprep.subr.mxu0 0.0
  %1145 = vmatpush1.msra.mxu0 %v43
  %1146 = vmatprep.subr.mxu0 0.0
  %1147 = vmatpush1.msra.mxu0 %v44
  %1148 = vmatprep.subr.mxu0 0.0
  %1149 = vmatpush1.msra.mxu0 %v45
  %1150 = vmatprep.subr.mxu0 0.0
  %1151 = vmatpush1.msra.mxu0 %v46
  %1152 = vmatprep.subr.mxu0 0.0
  %1153 = vmatpush1.msra.mxu0 %v47
  %1154 = vmatprep.subr.mxu0 0.0
  %1155 = vmatpush1.msra.mxu0 %v48
  %1156 = vmatprep.subr.mxu0 0.0
  %1157 = vmatpush1.msra.mxu0 %v49
  %1158 = vmatprep.subr.mxu0 0.0
  %1159 = vmatpush1.msra.mxu0 %v50
  %1160 = vmatprep.subr.mxu0 0.0
  %1161 = vmatpush1.msra.mxu0 %v51
  %1162 = vmatprep.subr.mxu0 0.0
  %1163 = vmatpush1.msra.mxu0 %v52
  %1164 = vmatprep.subr.mxu0 0.0
  %1165 = vmatpush1.msra.mxu0 %v53
  %1166 = vmatprep.subr.mxu0 0.0
  %1167 = vmatpush1.msra.mxu0 %v54
  %1168 = vmatprep.subr.mxu0 0.0
  %1169 = vmatpush1.msra.mxu0 %v55
  %1170 = vmatprep.subr.mxu0 0.0
  %1171 = vmatpush1.msra.mxu0 %v56
  %1172 = vmatprep.subr.mxu0 0.0
  %1173 = vmatpush1.msra.mxu0 %v57
  %1174 = vmatprep.subr.mxu0 0.0
  %1175 = vmatpush1.msra.mxu0 %v58
  %1176 = vmatprep.subr.mxu0 0.0
  %1177 = vmatpush1.msra.mxu0 %v59
  %1178 = vmatprep.subr.mxu0 0.0
  %1179 = vmatpush1.msra.mxu0 %v60
  %1180 = vmatprep.subr.mxu0 0.0
  %1181 = vmatpush1.msra.mxu0 %v61
  %1182 = vmatprep.subr.mxu0 0.0
  %1183 = vmatpush1.msra.mxu0 %v62
  %1184 = vmatprep.subr.mxu0 0.0
  %1185 = vmatpush1.msra.mxu0 %v63
  %1186 = vmatprep.subr.mxu0 0.0
  %1187 = vmatpush1.msra.mxu0 %v64
  %1188 = vmatprep.subr.mxu0 0.0
  %1189 = vmatpush1.msra.mxu0 %v65
  %1190 = vmatprep.subr.mxu0 0.0
  %1191 = vmatpush1.msra.mxu0 %v66
  %1192 = vmatprep.subr.mxu0 0.0
  %1193 = vmatpush1.msra.mxu0 %v67
  %1194 = vmatprep.subr.mxu0 0.0
  %1195 = vmatpush1.msra.mxu0 %v68
  %1196 = vmatprep.subr.mxu0 0.0
  %1197 = vmatpush1.msra.mxu0 %v69
  %1198 = vmatprep.mubr.f32.mxu0 %v1119
  %1199 = vmatmul.mubr.f32.gmra.mrb[0].mxu0 %v1118
  %v1200 = vpop.f32.mrb[0].mxu0
  %v1201 = vadd.f32 0.0, %v1200
  %v1202 = vpop.f32.mrb[0].mxu0
  %1203 = vmatprep.mubr.f32.mxu0 %v1121
  %1204 = vmatmul.mubr.f32.gmra.mrb[0].mxu0 %v1120
  %v1205 = vpop.f32.mrb[0].mxu0
  %v1206 = vadd.f32 0.0, %v1205
  %v1207 = vpop.f32.mrb[0].mxu0
  %1208 = vmatprep.mubr.f32.mxu0 %v1123
  %1209 = vmatmul.mubr.f32.gmra.mrb[0].mxu0 %v1122
  %v1210 = vpop.f32.mrb[0].mxu0
  %v1211 = vadd.f32 0.0, %v1210
  %v1212 = vpop.f32.mrb[0].mxu0
  %1213 = vmatprep.mubr.f32.mxu0 %v1125
  %1214 = vmatmul.mubr.f32.gmra.mrb[0].mxu0 %v1124
  %v1215 = vpop.f32.mrb[0].mxu0
  %v1216 = vadd.f32 0.0, %v1215
  %v1217 = vpop.f32.mrb[0].mxu0
  %1218 = vmatprep.mubr.f32.mxu0 %v1127
  %1219 = vmatmul.mubr.f32.gmra.mrb[0].mxu0 %v1126
  %v1220 = vpop.f32.mrb[0].mxu0
  %v1221 = vadd.f32 0.0, %v1220
  %v1222 = vpop.f32.mrb[0].mxu0
  %1223 = vmatprep.mubr.f32.mxu0 %v1129
  %1224 = vmatmul.mubr.f32.gmra.mrb[0].mxu0 %v1128
  %v1225 = vpop.f32.mrb[0].mxu0
  %v1226 = vadd.f32 0.0, %v1225
  %v1227 = vpop.f32.mrb[0].mxu0
  %1228 = vmatprep.mubr.f32.mxu0 %v1131
  %1229 = vmatmul.mubr.f32.gmra.mrb[0].mxu0 %v1130
  %v1230 = vpop.f32.mrb[0].mxu0
  %v1231 = vadd.f32 0.0, %v1230
  %v1232 = vpop.f32.mrb[0].mxu0
  %1233 = vmatprep.mubr.f32.mxu0 %v1133
  %1234 = vmatmul.mubr.f32.gmra.mrb[0].mxu0 %v1132
  %v1235 = vpop.f32.mrb[0].mxu0
  %v1236 = vadd.f32 0.0, %v1235
  %v1237 = vpop.f32.mrb[0].mxu0
  %1238 = vdwg.mxu0
  %1247 = vrot.lane.b32.xlu0 %v347, 8
  %v1248 = vpop.permute.xlu0 %1247
  %1249 = vrot.lane.b32.xlu0 %v352, 8
  %v1250 = vpop.permute.xlu0 %1249
  %1251 = vrot.lane.b32.xlu0 %v357, 8
  %v1252 = vpop.permute.xlu0 %1251
  %1253 = vrot.lane.b32.xlu0 %v362, 8
  %v1254 = vpop.permute.xlu0 %1253
  %1255 = vrot.lane.b32.xlu0 %v367, 8
  %v1256 = vpop.permute.xlu0 %1255
  %1257 = vrot.lane.b32.xlu0 %v372, 8
  %v1258 = vpop.permute.xlu0 %1257
  %1259 = vrot.lane.b32.xlu0 %v377, 8
  %v1260 = vpop.permute.xlu0 %1259
  %1261 = vrot.lane.b32.xlu0 %v382, 8
  %v1262 = vpop.permute.xlu0 %1261
  %1279 = vrot.lane.b32.xlu0 %v469, 16
  %v1280 = vpop.permute.xlu0 %1279
  %1281 = vrot.lane.b32.xlu0 %v474, 16
  %v1282 = vpop.permute.xlu0 %1281
  %1283 = vrot.lane.b32.xlu0 %v479, 16
  %v1284 = vpop.permute.xlu0 %1283
  %1285 = vrot.lane.b32.xlu0 %v484, 16
  %v1286 = vpop.permute.xlu0 %1285
  %1287 = vrot.lane.b32.xlu0 %v489, 16
  %v1288 = vpop.permute.xlu0 %1287
  %1289 = vrot.lane.b32.xlu0 %v494, 16
  %v1290 = vpop.permute.xlu0 %1289
  %1291 = vrot.lane.b32.xlu0 %v499, 16
  %v1292 = vpop.permute.xlu0 %1291
  %1293 = vrot.lane.b32.xlu0 %v504, 16
  %v1294 = vpop.permute.xlu0 %1293
  %1311 = vrot.lane.b32.xlu0 %v591, 24
  %v1312 = vpop.permute.xlu0 %1311
  %1313 = vrot.lane.b32.xlu0 %v596, 24
  %v1314 = vpop.permute.xlu0 %1313
  %1315 = vrot.lane.b32.xlu0 %v601, 24
  %v1316 = vpop.permute.xlu0 %1315
  %1317 = vrot.lane.b32.xlu0 %v606, 24
  %v1318 = vpop.permute.xlu0 %1317
  %1319 = vrot.lane.b32.xlu0 %v611, 24
  %v1320 = vpop.permute.xlu0 %1319
  %1321 = vrot.lane.b32.xlu0 %v616, 24
  %v1322 = vpop.permute.xlu0 %1321
  %1323 = vrot.lane.b32.xlu0 %v621, 24
  %v1324 = vpop.permute.xlu0 %1323
  %1325 = vrot.lane.b32.xlu0 %v626, 24
  %v1326 = vpop.permute.xlu0 %1325
  %1343 = vrot.lane.b32.xlu0 %v713, 32
  %v1344 = vpop.permute.xlu0 %1343
  %1345 = vrot.lane.b32.xlu0 %v718, 32
  %v1346 = vpop.permute.xlu0 %1345
  %1347 = vrot.lane.b32.xlu0 %v723, 32
  %v1348 = vpop.permute.xlu0 %1347
  %1349 = vrot.lane.b32.xlu0 %v728, 32
  %v1350 = vpop.permute.xlu0 %1349
  %1351 = vrot.lane.b32.xlu0 %v733, 32
  %v1352 = vpop.permute.xlu0 %1351
  %1353 = vrot.lane.b32.xlu0 %v738, 32
  %v1354 = vpop.permute.xlu0 %1353
  %1355 = vrot.lane.b32.xlu0 %v743, 32
  %v1356 = vpop.permute.xlu0 %1355
  %1357 = vrot.lane.b32.xlu0 %v748, 32
  %v1358 = vpop.permute.xlu0 %1357
  %1375 = vrot.lane.b32.xlu0 %v835, 40
  %v1376 = vpop.permute.xlu0 %1375
  %1377 = vrot.lane.b32.xlu0 %v840, 40
  %v1378 = vpop.permute.xlu0 %1377
  %1379 = vrot.lane.b32.xlu0 %v845, 40
  %v1380 = vpop.permute.xlu0 %1379
  %1381 = vrot.lane.b32.xlu0 %v850, 40
  %v1382 = vpop.permute.xlu0 %1381
  %1383 = vrot.lane.b32.xlu0 %v855, 40
  %v1384 = vpop.permute.xlu0 %1383
  %1385 = vrot.lane.b32.xlu0 %v860, 40
  %v1386 = vpop.permute.xlu0 %1385
  %1387 = vrot.lane.b32.xlu0 %v865, 40
  %v1388 = vpop.permute.xlu0 %1387
  %1389 = vrot.lane.b32.xlu0 %v870, 40
  %v1390 = vpop.permute.xlu0 %1389
  %1407 = vrot.lane.b32.xlu0 %v957, 48
  %v1408 = vpop.permute.xlu0 %1407
  %1409 = vrot.lane.b32.xlu0 %v962, 48
  %v1410 = vpop.permute.xlu0 %1409
  %1411 = vrot.lane.b32.xlu0 %v967, 48
  %v1412 = vpop.permute.xlu0 %1411
  %1413 = vrot.lane.b32.xlu0 %v972, 48
  %v1414 = vpop.permute.xlu0 %1413
  %1415 = vrot.lane.b32.xlu0 %v977, 48
  %v1416 = vpop.permute.xlu0 %1415
  %1417 = vrot.lane.b32.xlu0 %v982, 48
  %v1418 = vpop.permute.xlu0 %1417
  %1419 = vrot.lane.b32.xlu0 %v987, 48
  %v1420 = vpop.permute.xlu0 %1419
  %1421 = vrot.lane.b32.xlu0 %v992, 48
  %v1422 = vpop.permute.xlu0 %1421
  %1439 = vrot.lane.b32.xlu0 %v1079, 56
  %v1440 = vpop.permute.xlu0 %1439
  %1441 = vrot.lane.b32.xlu0 %v1084, 56
  %v1442 = vpop.permute.xlu0 %1441
  %1443 = vrot.lane.b32.xlu0 %v1089, 56
  %v1444 = vpop.permute.xlu0 %1443
  %1445 = vrot.lane.b32.xlu0 %v1094, 56
  %v1446 = vpop.permute.xlu0 %1445
  %1447 = vrot.lane.b32.xlu0 %v1099, 56
  %v1448 = vpop.permute.xlu0 %1447
  %1449 = vrot.lane.b32.xlu0 %v1104, 56
  %v1450 = vpop.permute.xlu0 %1449
  %1451 = vrot.lane.b32.xlu0 %v1109, 56
  %v1452 = vpop.permute.xlu0 %1451
  %1453 = vrot.lane.b32.xlu0 %v1114, 56
  %v1454 = vpop.permute.xlu0 %1453
  %1471 = vrot.lane.b32.xlu0 %v1201, 64
  %v1472 = vpop.permute.xlu0 %1471
  %1473 = vrot.lane.b32.xlu0 %v1206, 64
  %v1474 = vpop.permute.xlu0 %1473
  %1475 = vrot.lane.b32.xlu0 %v1211, 64
  %v1476 = vpop.permute.xlu0 %1475
  %1477 = vrot.lane.b32.xlu0 %v1216, 64
  %v1478 = vpop.permute.xlu0 %1477
  %1479 = vrot.lane.b32.xlu0 %v1221, 64
  %v1480 = vpop.permute.xlu0 %1479
  %1481 = vrot.lane.b32.xlu0 %v1226, 64
  %v1482 = vpop.permute.xlu0 %1481
  %1483 = vrot.lane.b32.xlu0 %v1231, 64
  %v1484 = vpop.permute.xlu0 %1483
  %1485 = vrot.lane.b32.xlu0 %v1236, 64
  %v1486 = vpop.permute.xlu0 %1485
  %v1495 = vsel %vm70, %v225, %v1248
  %v1496 = vsel %vm70, %v230, %v1250
  %v1497 = vsel %vm70, %v235, %v1252
  %v1498 = vsel %vm70, %v240, %v1254
  %v1499 = vsel %vm70, %v245, %v1256
  %v1500 = vsel %vm70, %v250, %v1258
  %v1501 = vsel %vm70, %v255, %v1260
  %v1502 = vsel %vm70, %v260, %v1262
  %vm1503 = vcmask 130048
  %v1504 = vsel %vm1503, %v1495, %v1280
  %v1505 = vsel %vm1503, %v1496, %v1282
  %v1506 = vsel %vm1503, %v1497, %v1284
  %v1507 = vsel %vm1503, %v1498, %v1286
  %v1508 = vsel %vm1503, %v1499, %v1288
  %v1509 = vsel %vm1503, %v1500, %v1290
  %v1510 = vsel %vm1503, %v1501, %v1292
  %v1511 = vsel %vm1503, %v1502, %v1294
  %vm1512 = vcmask 195584
  %v1513 = vsel %vm1512, %v1504, %v1312
  %v1514 = vsel %vm1512, %v1505, %v1314
  %v1515 = vsel %vm1512, %v1506, %v1316
  %v1516 = vsel %vm1512, %v1507, %v1318
  %v1517 = vsel %vm1512, %v1508, %v1320
  %v1518 = vsel %vm1512, %v1509, %v1322
  %v1519 = vsel %vm1512, %v1510, %v1324
  %v1520 = vsel %vm1512, %v1511, %v1326
  %vm1521 = vcmask 261120
  %v1522 = vsel %vm1521, %v1513, %v1344
  %v1523 = vsel %vm1521, %v1514, %v1346
  %v1524 = vsel %vm1521, %v1515, %v1348
  %v1525 = vsel %vm1521, %v1516, %v1350
  %v1526 = vsel %vm1521, %v1517, %v1352
  %v1527 = vsel %vm1521, %v1518, %v1354
  %v1528 = vsel %vm1521, %v1519, %v1356
  %v1529 = vsel %vm1521, %v1520, %v1358
  %vm1530 = vcmask 326656
  %v1531 = vsel %vm1530, %v1522, %v1376
  %v1532 = vsel %vm1530, %v1523, %v1378
  %v1533 = vsel %vm1530, %v1524, %v1380
  %v1534 = vsel %vm1530, %v1525, %v1382
  %v1535 = vsel %vm1530, %v1526, %v1384
  %v1536 = vsel %vm1530, %v1527, %v1386
  %v1537 = vsel %vm1530, %v1528, %v1388
  %v1538 = vsel %vm1530, %v1529, %v1390
  %vm1539 = vcmask 392192
  %v1540 = vsel %vm1539, %v1531, %v1408
  %v1541 = vsel %vm1539, %v1532, %v1410
  %v1542 = vsel %vm1539, %v1533, %v1412
  %v1543 = vsel %vm1539, %v1534, %v1414
  %v1544 = vsel %vm1539, %v1535, %v1416
  %v1545 = vsel %vm1539, %v1536, %v1418
  %v1546 = vsel %vm1539, %v1537, %v1420
  %v1547 = vsel %vm1539, %v1538, %v1422
  %vm1548 = vcmask 457728
  %v1549 = vsel %vm1548, %v1540, %v1440
  %v1550 = vsel %vm1548, %v1541, %v1442
  %v1551 = vsel %vm1548, %v1542, %v1444
  %v1552 = vsel %vm1548, %v1543, %v1446
  %v1553 = vsel %vm1548, %v1544, %v1448
  %v1554 = vsel %vm1548, %v1545, %v1450
  %v1555 = vsel %vm1548, %v1546, %v1452
  %v1556 = vsel %vm1548, %v1547, %v1454
  %vm1557 = vcmask 523264
  %v1558 = vsel %vm1557, %v1549, %v1472
  %v1559 = vsel %vm1557, %v1550, %v1474
  %v1560 = vsel %vm1557, %v1551, %v1476
  %v1561 = vsel %vm1557, %v1552, %v1478
  %v1562 = vsel %vm1557, %v1553, %v1480
  %v1563 = vsel %vm1557, %v1554, %v1482
  %v1564 = vsel %vm1557, %v1555, %v1484
  %v1565 = vsel %vm1557, %v1556, %v1486
  %v1566 = vld [vmem:[%s3] sm:$0xff]
  %v1567 = vld [vmem:[%s3 + $0x8] sm:$0xff]
  %v1568 = vld [vmem:[%s3 + $0x10] sm:$0xff]
  %v1569 = vld [vmem:[%s3 + $0x18] sm:$0xff]
  %v1570 = vld [vmem:[%s3 + $0x20] sm:$0xff]
  %v1571 = vld [vmem:[%s3 + $0x28] sm:$0xff]
  %v1572 = vld [vmem:[%s3 + $0x30] sm:$0xff]
  %v1573 = vld [vmem:[%s3 + $0x38] sm:$0xff]
  %v1574 = vld [vmem:[%s3 + $0x40] sm:$0xff]
  %v1575 = vld [vmem:[%s4] sm:$0x1]
  %v1577 = vlaneseq
  %v1578 = vshrl.u32 %v1577, 7
  %v1579 = vsub.s32 0, %v1578
  %v1580 = vrot.slane %v1575, %v1579
  %vm1582 = vcmask 588800
  %v1584 = vsel %vm1582, %v1558, 0
  %v1587 = vsel %vm1582, %v1559, 0
  %v1590 = vsel %vm1582, %v1560, 0
  %v1593 = vsel %vm1582, %v1561, 0
  %v1596 = vsel %vm1582, %v1562, 0
  %v1599 = vsel %vm1582, %v1563, 0
  %v1602 = vsel %vm1582, %v1564, 0
  %v1605 = vsel %vm1582, %v1565, 0
  %1607 = vmatprep.subr.mxu0 0.0
  %1608 = vmatpush1.msra.mxu0 %v1566
  %1609 = vmatprep.subr.mxu0 0.0
  %1610 = vmatpush1.msra.mxu0 %v1567
  %1611 = vmatprep.subr.mxu0 0.0
  %1612 = vmatpush1.msra.mxu0 %v1568
  %1613 = vmatprep.subr.mxu0 0.0
  %1614 = vmatpush1.msra.mxu0 %v1569
  %1615 = vmatprep.subr.mxu0 0.0
  %1616 = vmatpush1.msra.mxu0 %v1570
  %1617 = vmatprep.subr.mxu0 0.0
  %1618 = vmatpush1.msra.mxu0 %v1571
  %1619 = vmatprep.subr.mxu0 0.0
  %1620 = vmatpush1.msra.mxu0 %v1572
  %1621 = vmatprep.subr.mxu0 0.0
  %1622 = vmatpush1.msra.mxu0 %v1573
  %1623 = vmatprep.subr.mxu0 0.0
  %1624 = vmatpush1.msra.mxu0 %v1574
  %1625 = vmatprep.subr.mxu0 0.0
  %1626 = vmatpush1.msra.mxu0 0.0
  %1627 = vmatprep.subr.mxu0 0.0
  %1628 = vmatpush1.msra.mxu0 0.0
  %1629 = vmatprep.subr.mxu0 0.0
  %1630 = vmatpush1.msra.mxu0 0.0
  %1631 = vmatprep.subr.mxu0 0.0
  %1632 = vmatpush1.msra.mxu0 0.0
  %1633 = vmatprep.subr.mxu0 0.0
  %1634 = vmatpush1.msra.mxu0 0.0
  %1635 = vmatprep.subr.mxu0 0.0
  %1636 = vmatpush1.msra.mxu0 0.0
  %1637 = vmatprep.subr.mxu0 0.0
  %1638 = vmatpush1.msra.mxu0 0.0
  %1639 = vmatprep.subr.mxu0 0.0
  %1640 = vmatpush1.msra.mxu0 0.0
  %1641 = vmatprep.subr.mxu0 0.0
  %1642 = vmatpush1.msra.mxu0 0.0
  %1643 = vmatprep.subr.mxu0 0.0
  %1644 = vmatpush1.msra.mxu0 0.0
  %1645 = vmatprep.subr.mxu0 0.0
  %1646 = vmatpush1.msra.mxu0 0.0
  %1647 = vmatprep.subr.mxu0 0.0
  %1648 = vmatpush1.msra.mxu0 0.0
  %1649 = vmatprep.subr.mxu0 0.0
  %1650 = vmatpush1.msra.mxu0 0.0
  %1651 = vmatprep.subr.mxu0 0.0
  %1652 = vmatpush1.msra.mxu0 0.0
  %1653 = vmatprep.subr.mxu0 0.0
  %1654 = vmatpush1.msra.mxu0 0.0
  %1655 = vmatprep.subr.mxu0 0.0
  %1656 = vmatpush1.msra.mxu0 0.0
  %1657 = vmatprep.subr.mxu0 0.0
  %1658 = vmatpush1.msra.mxu0 0.0
  %1659 = vmatprep.subr.mxu0 0.0
  %1660 = vmatpush1.msra.mxu0 0.0
  %1661 = vmatprep.subr.mxu0 0.0
  %1662 = vmatpush1.msra.mxu0 0.0
  %1663 = vmatprep.subr.mxu0 0.0
  %1664 = vmatpush1.msra.mxu0 0.0
  %1665 = vmatprep.subr.mxu0 0.0
  %1666 = vmatpush1.msra.mxu0 0.0
  %1667 = vmatprep.subr.mxu0 0.0
  %1668 = vmatpush1.msra.mxu0 0.0
  %1669 = vmatprep.subr.mxu0 0.0
  %1670 = vmatpush1.msra.mxu0 0.0
  %1671 = vmatprep.mubr.f32.mxu0 0.0
  %1672 = vmatmul.mubr.f32.gmra.mrb[0].mxu0 %v1584
  %v1673 = vpop.f32.mrb[0].mxu0
  %v1674 = vadd.f32 %v1580, %v1673
  %v1675 = vpop.f32.mrb[0].mxu0
  %1676 = vmatprep.mubr.f32.mxu0 0.0
  %1677 = vmatmul.mubr.f32.gmra.mrb[0].mxu0 %v1587
  %v1678 = vpop.f32.mrb[0].mxu0
  %v1679 = vadd.f32 %v1580, %v1678
  %v1680 = vpop.f32.mrb[0].mxu0
  %1681 = vmatprep.mubr.f32.mxu0 0.0
  %1682 = vmatmul.mubr.f32.gmra.mrb[0].mxu0 %v1590
  %v1683 = vpop.f32.mrb[0].mxu0
  %v1684 = vadd.f32 %v1580, %v1683
  %v1685 = vpop.f32.mrb[0].mxu0
  %1686 = vmatprep.mubr.f32.mxu0 0.0
  %1687 = vmatmul.mubr.f32.gmra.mrb[0].mxu0 %v1593
  %v1688 = vpop.f32.mrb[0].mxu0
  %v1689 = vadd.f32 %v1580, %v1688
  %v1690 = vpop.f32.mrb[0].mxu0
  %1691 = vmatprep.mubr.f32.mxu0 0.0
  %1692 = vmatmul.mubr.f32.gmra.mrb[0].mxu0 %v1596
  %v1693 = vpop.f32.mrb[0].mxu0
  %v1694 = vadd.f32 %v1580, %v1693
  %v1695 = vpop.f32.mrb[0].mxu0
  %1696 = vmatprep.mubr.f32.mxu0 0.0
  %1697 = vmatmul.mubr.f32.gmra.mrb[0].mxu0 %v1599
  %v1698 = vpop.f32.mrb[0].mxu0
  %v1699 = vadd.f32 %v1580, %v1698
  %v1700 = vpop.f32.mrb[0].mxu0
  %1701 = vmatprep.mubr.f32.mxu0 0.0
  %1702 = vmatmul.mubr.f32.gmra.mrb[0].mxu0 %v1602
  %v1703 = vpop.f32.mrb[0].mxu0
  %v1704 = vadd.f32 %v1580, %v1703
  %v1705 = vpop.f32.mrb[0].mxu0
  %1706 = vmatprep.mubr.f32.mxu0 0.0
  %1707 = vmatmul.mubr.f32.gmra.mrb[0].mxu0 %v1605
  %v1708 = vpop.f32.mrb[0].mxu0
  %v1709 = vadd.f32 %v1580, %v1708
  %v1710 = vpop.f32.mrb[0].mxu0
  %1711 = vdwg.mxu0
  %v1712 = vmax.f32 %v1674, 0.0
  %v1713 = vmax.f32 %v1679, 0.0
  %v1714 = vmax.f32 %v1684, 0.0
  %v1715 = vmax.f32 %v1689, 0.0
  %v1716 = vmax.f32 %v1694, 0.0
  %v1717 = vmax.f32 %v1699, 0.0
  %v1718 = vmax.f32 %v1704, 0.0
  %v1719 = vmax.f32 %v1709, 0.0
  %v1720 = vsel %vm1557, %v1712, 0.0
  %v1721 = vsel %vm1557, %v1713, 0.0
  %v1722 = vadd.f32 %v1720, %v1721
  %v1723 = vsel %vm1557, %v1714, 0.0
  %v1724 = vadd.f32 %v1722, %v1723
  %v1725 = vsel %vm1557, %v1715, 0.0
  %v1726 = vadd.f32 %v1724, %v1725
  %v1727 = vsel %vm1557, %v1716, 0.0
  %v1728 = vadd.f32 %v1726, %v1727
  %v1729 = vsel %vm1557, %v1717, 0.0
  %v1730 = vadd.f32 %v1728, %v1729
  %v1731 = vsel %vm1557, %v1718, 0.0
  %v1732 = vadd.f32 %v1730, %v1731
  %v1733 = vsel %vm1557, %v1719, 0.0
  %v1734 = vadd.f32 %v1732, %v1733
  %v1735 = vrot.slane %v1734, 4
  %v1736 = vadd.f32 %v1734, %v1735
  %v1737 = vrot.slane %v1736, 2
  %v1738 = vadd.f32 %v1736, %v1737
  %v1739 = vrot.slane %v1738, 1
  %v1740 = vadd.f32 %v1738, %v1739
  %v1741 = vrcp.pop 64.0
  %v1742 = vmul.f32 %v1740, %v1741
  %v1743 = vld [vmem:[%s2] sm:$0xff]
  %v1744 = vld [vmem:[%s2 + $0x8] sm:$0xff]
  %v1746 = vsel %vm1557, %v1743, 0
  %v1749 = vsel %vm1557, %v1744, 0
  %1751 = vmatprep.subr.mxu0 0.0
  %1752 = vmatpush1.msra.mxu0 %v1712
  %1753 = vmatprep.subr.mxu0 0.0
  %1754 = vmatpush1.msra.mxu0 %v1713
  %1755 = vmatprep.subr.mxu0 0.0
  %1756 = vmatpush1.msra.mxu0 %v1714
  %1757 = vmatprep.subr.mxu0 0.0
  %1758 = vmatpush1.msra.mxu0 %v1715
  %1759 = vmatprep.subr.mxu0 0.0
  %1760 = vmatpush1.msra.mxu0 %v1716
  %1761 = vmatprep.subr.mxu0 0.0
  %1762 = vmatpush1.msra.mxu0 %v1717
  %1763 = vmatprep.subr.mxu0 0.0
  %1764 = vmatpush1.msra.mxu0 %v1718
  %1765 = vmatprep.subr.mxu0 0.0
  %1766 = vmatpush1.msra.mxu0 %v1719
  %1767 = vmatprep.subr.mxu0 0.0
  %1768 = vmatpush1.msra.mxu0 0.0
  %1769 = vmatprep.subr.mxu0 0.0
  %1770 = vmatpush1.msra.mxu0 0.0
  %1771 = vmatprep.subr.mxu0 0.0
  %1772 = vmatpush1.msra.mxu0 0.0
  %1773 = vmatprep.subr.mxu0 0.0
  %1774 = vmatpush1.msra.mxu0 0.0
  %1775 = vmatprep.subr.mxu0 0.0
  %1776 = vmatpush1.msra.mxu0 0.0
  %1777 = vmatprep.subr.mxu0 0.0
  %1778 = vmatpush1.msra.mxu0 0.0
  %1779 = vmatprep.subr.mxu0 0.0
  %1780 = vmatpush1.msra.mxu0 0.0
  %1781 = vmatprep.subr.mxu0 0.0
  %1782 = vmatpush1.msra.mxu0 0.0
  %1783 = vmatprep.subr.mxu0 0.0
  %1784 = vmatpush1.msra.mxu0 0.0
  %1785 = vmatprep.subr.mxu0 0.0
  %1786 = vmatpush1.msra.mxu0 0.0
  %1787 = vmatprep.subr.mxu0 0.0
  %1788 = vmatpush1.msra.mxu0 0.0
  %1789 = vmatprep.subr.mxu0 0.0
  %1790 = vmatpush1.msra.mxu0 0.0
  %1791 = vmatprep.subr.mxu0 0.0
  %1792 = vmatpush1.msra.mxu0 0.0
  %1793 = vmatprep.subr.mxu0 0.0
  %1794 = vmatpush1.msra.mxu0 0.0
  %1795 = vmatprep.subr.mxu0 0.0
  %1796 = vmatpush1.msra.mxu0 0.0
  %1797 = vmatprep.subr.mxu0 0.0
  %1798 = vmatpush1.msra.mxu0 0.0
  %1799 = vmatprep.subr.mxu0 0.0
  %1800 = vmatpush1.msra.mxu0 0.0
  %1801 = vmatprep.subr.mxu0 0.0
  %1802 = vmatpush1.msra.mxu0 0.0
  %1803 = vmatprep.subr.mxu0 0.0
  %1804 = vmatpush1.msra.mxu0 0.0
  %1805 = vmatprep.subr.mxu0 0.0
  %1806 = vmatpush1.msra.mxu0 0.0
  %1807 = vmatprep.subr.mxu0 0.0
  %1808 = vmatpush1.msra.mxu0 0.0
  %1809 = vmatprep.subr.mxu0 0.0
  %1810 = vmatpush1.msra.mxu0 0.0
  %1811 = vmatprep.subr.mxu0 0.0
  %1812 = vmatpush1.msra.mxu0 0.0
  %1813 = vmatprep.subr.mxu0 0.0
  %1814 = vmatpush1.msra.mxu0 0.0
  %1815 = vmatprep.mubr.f32.mxu0 0.0
  %1816 = vmatmul.mubr.f32.gmra.mrb[0].mxu0 %v1746
  %v1817 = vpop.f32.mrb[0].mxu0
  %v1818 = vadd.f32 0.0, %v1817
  %v1819 = vpop.f32.mrb[0].mxu0
  %1820 = vmatprep.mubr.f32.mxu0 0.0
  %1821 = vmatmul.mubr.f32.gmra.mrb[0].mxu0 %v1749
  %v1822 = vpop.f32.mrb[0].mxu0
  %v1823 = vadd.f32 0.0, %v1822
  %v1824 = vpop.f32.mrb[0].mxu0
  %1825 = vdwg.mxu0
  %s1826 = scalar_lea.vmem %s2, 16
  %v1827 = vld [vmem:[%s1826] sm:$0xff]
  %v1828 = vld [vmem:[%s1826 + $0x8] sm:$0xff]
  %v1830 = vsel %vm1557, %v1827, 0
  %v1833 = vsel %vm1557, %v1828, 0
  %1835 = vmatprep.subr.mxu0 0.0
  %1836 = vmatpush1.msra.mxu0 %v1712
  %1837 = vmatprep.subr.mxu0 0.0
  %1838 = vmatpush1.msra.mxu0 %v1713
  %1839 = vmatprep.subr.mxu0 0.0
  %1840 = vmatpush1.msra.mxu0 %v1714
  %1841 = vmatprep.subr.mxu0 0.0
  %1842 = vmatpush1.msra.mxu0 %v1715
  %1843 = vmatprep.subr.mxu0 0.0
  %1844 = vmatpush1.msra.mxu0 %v1716
  %1845 = vmatprep.subr.mxu0 0.0
  %1846 = vmatpush1.msra.mxu0 %v1717
  %1847 = vmatprep.subr.mxu0 0.0
  %1848 = vmatpush1.msra.mxu0 %v1718
  %1849 = vmatprep.subr.mxu0 0.0
  %1850 = vmatpush1.msra.mxu0 %v1719
  %1851 = vmatprep.subr.mxu0 0.0
  %1852 = vmatpush1.msra.mxu0 0.0
  %1853 = vmatprep.subr.mxu0 0.0
  %1854 = vmatpush1.msra.mxu0 0.0
  %1855 = vmatprep.subr.mxu0 0.0
  %1856 = vmatpush1.msra.mxu0 0.0
  %1857 = vmatprep.subr.mxu0 0.0
  %1858 = vmatpush1.msra.mxu0 0.0
  %1859 = vmatprep.subr.mxu0 0.0
  %1860 = vmatpush1.msra.mxu0 0.0
  %1861 = vmatprep.subr.mxu0 0.0
  %1862 = vmatpush1.msra.mxu0 0.0
  %1863 = vmatprep.subr.mxu0 0.0
  %1864 = vmatpush1.msra.mxu0 0.0
  %1865 = vmatprep.subr.mxu0 0.0
  %1866 = vmatpush1.msra.mxu0 0.0
  %1867 = vmatprep.subr.mxu0 0.0
  %1868 = vmatpush1.msra.mxu0 0.0
  %1869 = vmatprep.subr.mxu0 0.0
  %1870 = vmatpush1.msra.mxu0 0.0
  %1871 = vmatprep.subr.mxu0 0.0
  %1872 = vmatpush1.msra.mxu0 0.0
  %1873 = vmatprep.subr.mxu0 0.0
  %1874 = vmatpush1.msra.mxu0 0.0
  %1875 = vmatprep.subr.mxu0 0.0
  %1876 = vmatpush1.msra.mxu0 0.0
  %1877 = vmatprep.subr.mxu0 0.0
  %1878 = vmatpush1.msra.mxu0 0.0
  %1879 = vmatprep.subr.mxu0 0.0
  %1880 = vmatpush1.msra.mxu0 0.0
  %1881 = vmatprep.subr.mxu0 0.0
  %1882 = vmatpush1.msra.mxu0 0.0
  %1883 = vmatprep.subr.mxu0 0.0
  %1884 = vmatpush1.msra.mxu0 0.0
  %1885 = vmatprep.subr.mxu0 0.0
  %1886 = vmatpush1.msra.mxu0 0.0
  %1887 = vmatprep.subr.mxu0 0.0
  %1888 = vmatpush1.msra.mxu0 0.0
  %1889 = vmatprep.subr.mxu0 0.0
  %1890 = vmatpush1.msra.mxu0 0.0
  %1891 = vmatprep.subr.mxu0 0.0
  %1892 = vmatpush1.msra.mxu0 0.0
  %1893 = vmatprep.subr.mxu0 0.0
  %1894 = vmatpush1.msra.mxu0 0.0
  %1895 = vmatprep.subr.mxu0 0.0
  %1896 = vmatpush1.msra.mxu0 0.0
  %1897 = vmatprep.subr.mxu0 0.0
  %1898 = vmatpush1.msra.mxu0 0.0
  %1899 = vmatprep.mubr.f32.mxu0 0.0
  %1900 = vmatmul.mubr.f32.gmra.mrb[0].mxu0 %v1830
  %v1901 = vpop.f32.mrb[0].mxu0
  %v1902 = vadd.f32 0.0, %v1901
  %v1903 = vpop.f32.mrb[0].mxu0
  %1904 = vmatprep.mubr.f32.mxu0 0.0
  %1905 = vmatmul.mubr.f32.gmra.mrb[0].mxu0 %v1833
  %v1906 = vpop.f32.mrb[0].mxu0
  %v1907 = vadd.f32 0.0, %v1906
  %v1908 = vpop.f32.mrb[0].mxu0
  %1909 = vdwg.mxu0
  %s1910 = scalar_lea.vmem %s2, 32
  %v1911 = vld [vmem:[%s1910] sm:$0xff]
  %v1912 = vld [vmem:[%s1910 + $0x8] sm:$0xff]
  %v1914 = vsel %vm1557, %v1911, 0
  %v1917 = vsel %vm1557, %v1912, 0
  %1919 = vmatprep.subr.mxu0 0.0
  %1920 = vmatpush1.msra.mxu0 %v1712
  %1921 = vmatprep.subr.mxu0 0.0
  %1922 = vmatpush1.msra.mxu0 %v1713
  %1923 = vmatprep.subr.mxu0 0.0
  %1924 = vmatpush1.msra.mxu0 %v1714
  %1925 = vmatprep.subr.mxu0 0.0
  %1926 = vmatpush1.msra.mxu0 %v1715
  %1927 = vmatprep.subr.mxu0 0.0
  %1928 = vmatpush1.msra.mxu0 %v1716
  %1929 = vmatprep.subr.mxu0 0.0
  %1930 = vmatpush1.msra.mxu0 %v1717
  %1931 = vmatprep.subr.mxu0 0.0
  %1932 = vmatpush1.msra.mxu0 %v1718
  %1933 = vmatprep.subr.mxu0 0.0
  %1934 = vmatpush1.msra.mxu0 %v1719
  %1935 = vmatprep.subr.mxu0 0.0
  %1936 = vmatpush1.msra.mxu0 0.0
  %1937 = vmatprep.subr.mxu0 0.0
  %1938 = vmatpush1.msra.mxu0 0.0
  %1939 = vmatprep.subr.mxu0 0.0
  %1940 = vmatpush1.msra.mxu0 0.0
  %1941 = vmatprep.subr.mxu0 0.0
  %1942 = vmatpush1.msra.mxu0 0.0
  %1943 = vmatprep.subr.mxu0 0.0
  %1944 = vmatpush1.msra.mxu0 0.0
  %1945 = vmatprep.subr.mxu0 0.0
  %1946 = vmatpush1.msra.mxu0 0.0
  %1947 = vmatprep.subr.mxu0 0.0
  %1948 = vmatpush1.msra.mxu0 0.0
  %1949 = vmatprep.subr.mxu0 0.0
  %1950 = vmatpush1.msra.mxu0 0.0
  %1951 = vmatprep.subr.mxu0 0.0
  %1952 = vmatpush1.msra.mxu0 0.0
  %1953 = vmatprep.subr.mxu0 0.0
  %1954 = vmatpush1.msra.mxu0 0.0
  %1955 = vmatprep.subr.mxu0 0.0
  %1956 = vmatpush1.msra.mxu0 0.0
  %1957 = vmatprep.subr.mxu0 0.0
  %1958 = vmatpush1.msra.mxu0 0.0
  %1959 = vmatprep.subr.mxu0 0.0
  %1960 = vmatpush1.msra.mxu0 0.0
  %1961 = vmatprep.subr.mxu0 0.0
  %1962 = vmatpush1.msra.mxu0 0.0
  %1963 = vmatprep.subr.mxu0 0.0
  %1964 = vmatpush1.msra.mxu0 0.0
  %1965 = vmatprep.subr.mxu0 0.0
  %1966 = vmatpush1.msra.mxu0 0.0
  %1967 = vmatprep.subr.mxu0 0.0
  %1968 = vmatpush1.msra.mxu0 0.0
  %1969 = vmatprep.subr.mxu0 0.0
  %1970 = vmatpush1.msra.mxu0 0.0
  %1971 = vmatprep.subr.mxu0 0.0
  %1972 = vmatpush1.msra.mxu0 0.0
  %1973 = vmatprep.subr.mxu0 0.0
  %1974 = vmatpush1.msra.mxu0 0.0
  %1975 = vmatprep.subr.mxu0 0.0
  %1976 = vmatpush1.msra.mxu0 0.0
  %1977 = vmatprep.subr.mxu0 0.0
  %1978 = vmatpush1.msra.mxu0 0.0
  %1979 = vmatprep.subr.mxu0 0.0
  %1980 = vmatpush1.msra.mxu0 0.0
  %1981 = vmatprep.subr.mxu0 0.0
  %1982 = vmatpush1.msra.mxu0 0.0
  %1983 = vmatprep.mubr.f32.mxu0 0.0
  %1984 = vmatmul.mubr.f32.gmra.mrb[0].mxu0 %v1914
  %v1985 = vpop.f32.mrb[0].mxu0
  %v1986 = vadd.f32 0.0, %v1985
  %v1987 = vpop.f32.mrb[0].mxu0
  %1988 = vmatprep.mubr.f32.mxu0 0.0
  %1989 = vmatmul.mubr.f32.gmra.mrb[0].mxu0 %v1917
  %v1990 = vpop.f32.mrb[0].mxu0
  %v1991 = vadd.f32 0.0, %v1990
  %v1992 = vpop.f32.mrb[0].mxu0
  %1993 = vdwg.mxu0
  %s1994 = scalar_lea.vmem %s2, 48
  %v1995 = vld [vmem:[%s1994] sm:$0xff]
  %v1996 = vld [vmem:[%s1994 + $0x8] sm:$0xff]
  %v1998 = vsel %vm1557, %v1995, 0
  %v2001 = vsel %vm1557, %v1996, 0
  %2003 = vmatprep.subr.mxu0 0.0
  %2004 = vmatpush1.msra.mxu0 %v1712
  %2005 = vmatprep.subr.mxu0 0.0
  %2006 = vmatpush1.msra.mxu0 %v1713
  %2007 = vmatprep.subr.mxu0 0.0
  %2008 = vmatpush1.msra.mxu0 %v1714
  %2009 = vmatprep.subr.mxu0 0.0
  %2010 = vmatpush1.msra.mxu0 %v1715
  %2011 = vmatprep.subr.mxu0 0.0
  %2012 = vmatpush1.msra.mxu0 %v1716
  %2013 = vmatprep.subr.mxu0 0.0
  %2014 = vmatpush1.msra.mxu0 %v1717
  %2015 = vmatprep.subr.mxu0 0.0
  %2016 = vmatpush1.msra.mxu0 %v1718
  %2017 = vmatprep.subr.mxu0 0.0
  %2018 = vmatpush1.msra.mxu0 %v1719
  %2019 = vmatprep.subr.mxu0 0.0
  %2020 = vmatpush1.msra.mxu0 0.0
  %2021 = vmatprep.subr.mxu0 0.0
  %2022 = vmatpush1.msra.mxu0 0.0
  %2023 = vmatprep.subr.mxu0 0.0
  %2024 = vmatpush1.msra.mxu0 0.0
  %2025 = vmatprep.subr.mxu0 0.0
  %2026 = vmatpush1.msra.mxu0 0.0
  %2027 = vmatprep.subr.mxu0 0.0
  %2028 = vmatpush1.msra.mxu0 0.0
  %2029 = vmatprep.subr.mxu0 0.0
  %2030 = vmatpush1.msra.mxu0 0.0
  %2031 = vmatprep.subr.mxu0 0.0
  %2032 = vmatpush1.msra.mxu0 0.0
  %2033 = vmatprep.subr.mxu0 0.0
  %2034 = vmatpush1.msra.mxu0 0.0
  %2035 = vmatprep.subr.mxu0 0.0
  %2036 = vmatpush1.msra.mxu0 0.0
  %2037 = vmatprep.subr.mxu0 0.0
  %2038 = vmatpush1.msra.mxu0 0.0
  %2039 = vmatprep.subr.mxu0 0.0
  %2040 = vmatpush1.msra.mxu0 0.0
  %2041 = vmatprep.subr.mxu0 0.0
  %2042 = vmatpush1.msra.mxu0 0.0
  %2043 = vmatprep.subr.mxu0 0.0
  %2044 = vmatpush1.msra.mxu0 0.0
  %2045 = vmatprep.subr.mxu0 0.0
  %2046 = vmatpush1.msra.mxu0 0.0
  %2047 = vmatprep.subr.mxu0 0.0
  %2048 = vmatpush1.msra.mxu0 0.0
  %2049 = vmatprep.subr.mxu0 0.0
  %2050 = vmatpush1.msra.mxu0 0.0
  %2051 = vmatprep.subr.mxu0 0.0
  %2052 = vmatpush1.msra.mxu0 0.0
  %2053 = vmatprep.subr.mxu0 0.0
  %2054 = vmatpush1.msra.mxu0 0.0
  %2055 = vmatprep.subr.mxu0 0.0
  %2056 = vmatpush1.msra.mxu0 0.0
  %2057 = vmatprep.subr.mxu0 0.0
  %2058 = vmatpush1.msra.mxu0 0.0
  %2059 = vmatprep.subr.mxu0 0.0
  %2060 = vmatpush1.msra.mxu0 0.0
  %2061 = vmatprep.subr.mxu0 0.0
  %2062 = vmatpush1.msra.mxu0 0.0
  %2063 = vmatprep.subr.mxu0 0.0
  %2064 = vmatpush1.msra.mxu0 0.0
  %2065 = vmatprep.subr.mxu0 0.0
  %2066 = vmatpush1.msra.mxu0 0.0
  %2067 = vmatprep.mubr.f32.mxu0 0.0
  %2068 = vmatmul.mubr.f32.gmra.mrb[0].mxu0 %v1998
  %v2069 = vpop.f32.mrb[0].mxu0
  %v2070 = vadd.f32 0.0, %v2069
  %v2071 = vpop.f32.mrb[0].mxu0
  %2072 = vmatprep.mubr.f32.mxu0 0.0
  %2073 = vmatmul.mubr.f32.gmra.mrb[0].mxu0 %v2001
  %v2074 = vpop.f32.mrb[0].mxu0
  %v2075 = vadd.f32 0.0, %v2074
  %v2076 = vpop.f32.mrb[0].mxu0
  %2077 = vdwg.mxu0
  %s2078 = scalar_lea.vmem %s2, 64
  %v2079 = vld [vmem:[%s2078] sm:$0xff]
  %v2080 = vld [vmem:[%s2078 + $0x8] sm:$0xff]
  %v2082 = vsel %vm1557, %v2079, 0
  %v2085 = vsel %vm1557, %v2080, 0
  %2087 = vmatprep.subr.mxu0 0.0
  %2088 = vmatpush1.msra.mxu0 %v1712
  %2089 = vmatprep.subr.mxu0 0.0
  %2090 = vmatpush1.msra.mxu0 %v1713
  %2091 = vmatprep.subr.mxu0 0.0
  %2092 = vmatpush1.msra.mxu0 %v1714
  %2093 = vmatprep.subr.mxu0 0.0
  %2094 = vmatpush1.msra.mxu0 %v1715
  %2095 = vmatprep.subr.mxu0 0.0
  %2096 = vmatpush1.msra.mxu0 %v1716
  %2097 = vmatprep.subr.mxu0 0.0
  %2098 = vmatpush1.msra.mxu0 %v1717
  %2099 = vmatprep.subr.mxu0 0.0
  %2100 = vmatpush1.msra.mxu0 %v1718
  %2101 = vmatprep.subr.mxu0 0.0
  %2102 = vmatpush1.msra.mxu0 %v1719
  %2103 = vmatprep.subr.mxu0 0.0
  %2104 = vmatpush1.msra.mxu0 0.0
  %2105 = vmatprep.subr.mxu0 0.0
  %2106 = vmatpush1.msra.mxu0 0.0
  %2107 = vmatprep.subr.mxu0 0.0
  %2108 = vmatpush1.msra.mxu0 0.0
  %2109 = vmatprep.subr.mxu0 0.0
  %2110 = vmatpush1.msra.mxu0 0.0
  %2111 = vmatprep.subr.mxu0 0.0
  %2112 = vmatpush1.msra.mxu0 0.0
  %2113 = vmatprep.subr.mxu0 0.0
  %2114 = vmatpush1.msra.mxu0 0.0
  %2115 = vmatprep.subr.mxu0 0.0
  %2116 = vmatpush1.msra.mxu0 0.0
  %2117 = vmatprep.subr.mxu0 0.0
  %2118 = vmatpush1.msra.mxu0 0.0
  %2119 = vmatprep.subr.mxu0 0.0
  %2120 = vmatpush1.msra.mxu0 0.0
  %2121 = vmatprep.subr.mxu0 0.0
  %2122 = vmatpush1.msra.mxu0 0.0
  %2123 = vmatprep.subr.mxu0 0.0
  %2124 = vmatpush1.msra.mxu0 0.0
  %2125 = vmatprep.subr.mxu0 0.0
  %2126 = vmatpush1.msra.mxu0 0.0
  %2127 = vmatprep.subr.mxu0 0.0
  %2128 = vmatpush1.msra.mxu0 0.0
  %2129 = vmatprep.subr.mxu0 0.0
  %2130 = vmatpush1.msra.mxu0 0.0
  %2131 = vmatprep.subr.mxu0 0.0
  %2132 = vmatpush1.msra.mxu0 0.0
  %2133 = vmatprep.subr.mxu0 0.0
  %2134 = vmatpush1.msra.mxu0 0.0
  %2135 = vmatprep.subr.mxu0 0.0
  %2136 = vmatpush1.msra.mxu0 0.0
  %2137 = vmatprep.subr.mxu0 0.0
  %2138 = vmatpush1.msra.mxu0 0.0
  %2139 = vmatprep.subr.mxu0 0.0
  %2140 = vmatpush1.msra.mxu0 0.0
  %2141 = vmatprep.subr.mxu0 0.0
  %2142 = vmatpush1.msra.mxu0 0.0
  %2143 = vmatprep.subr.mxu0 0.0
  %2144 = vmatpush1.msra.mxu0 0.0
  %2145 = vmatprep.subr.mxu0 0.0
  %2146 = vmatpush1.msra.mxu0 0.0
  %2147 = vmatprep.subr.mxu0 0.0
  %2148 = vmatpush1.msra.mxu0 0.0
  %2149 = vmatprep.subr.mxu0 0.0
  %2150 = vmatpush1.msra.mxu0 0.0
  %2151 = vmatprep.mubr.f32.mxu0 0.0
  %2152 = vmatmul.mubr.f32.gmra.mrb[0].mxu0 %v2082
  %v2153 = vpop.f32.mrb[0].mxu0
  %v2154 = vadd.f32 0.0, %v2153
  %v2155 = vpop.f32.mrb[0].mxu0
  %2156 = vmatprep.mubr.f32.mxu0 0.0
  %2157 = vmatmul.mubr.f32.gmra.mrb[0].mxu0 %v2085
  %v2158 = vpop.f32.mrb[0].mxu0
  %v2159 = vadd.f32 0.0, %v2158
  %v2160 = vpop.f32.mrb[0].mxu0
  %2161 = vdwg.mxu0
  %s2162 = scalar_lea.vmem %s2, 80
  %v2163 = vld [vmem:[%s2162] sm:$0xff]
  %v2164 = vld [vmem:[%s2162 + $0x8] sm:$0xff]
  %v2166 = vsel %vm1557, %v2163, 0
  %v2169 = vsel %vm1557, %v2164, 0
  %2171 = vmatprep.subr.mxu0 0.0
  %2172 = vmatpush1.msra.mxu0 %v1712
  %2173 = vmatprep.subr.mxu0 0.0
  %2174 = vmatpush1.msra.mxu0 %v1713
  %2175 = vmatprep.subr.mxu0 0.0
  %2176 = vmatpush1.msra.mxu0 %v1714
  %2177 = vmatprep.subr.mxu0 0.0
  %2178 = vmatpush1.msra.mxu0 %v1715
  %2179 = vmatprep.subr.mxu0 0.0
  %2180 = vmatpush1.msra.mxu0 %v1716
  %2181 = vmatprep.subr.mxu0 0.0
  %2182 = vmatpush1.msra.mxu0 %v1717
  %2183 = vmatprep.subr.mxu0 0.0
  %2184 = vmatpush1.msra.mxu0 %v1718
  %2185 = vmatprep.subr.mxu0 0.0
  %2186 = vmatpush1.msra.mxu0 %v1719
  %2187 = vmatprep.subr.mxu0 0.0
  %2188 = vmatpush1.msra.mxu0 0.0
  %2189 = vmatprep.subr.mxu0 0.0
  %2190 = vmatpush1.msra.mxu0 0.0
  %2191 = vmatprep.subr.mxu0 0.0
  %2192 = vmatpush1.msra.mxu0 0.0
  %2193 = vmatprep.subr.mxu0 0.0
  %2194 = vmatpush1.msra.mxu0 0.0
  %2195 = vmatprep.subr.mxu0 0.0
  %2196 = vmatpush1.msra.mxu0 0.0
  %2197 = vmatprep.subr.mxu0 0.0
  %2198 = vmatpush1.msra.mxu0 0.0
  %2199 = vmatprep.subr.mxu0 0.0
  %2200 = vmatpush1.msra.mxu0 0.0
  %2201 = vmatprep.subr.mxu0 0.0
  %2202 = vmatpush1.msra.mxu0 0.0
  %2203 = vmatprep.subr.mxu0 0.0
  %2204 = vmatpush1.msra.mxu0 0.0
  %2205 = vmatprep.subr.mxu0 0.0
  %2206 = vmatpush1.msra.mxu0 0.0
  %2207 = vmatprep.subr.mxu0 0.0
  %2208 = vmatpush1.msra.mxu0 0.0
  %2209 = vmatprep.subr.mxu0 0.0
  %2210 = vmatpush1.msra.mxu0 0.0
  %2211 = vmatprep.subr.mxu0 0.0
  %2212 = vmatpush1.msra.mxu0 0.0
  %2213 = vmatprep.subr.mxu0 0.0
  %2214 = vmatpush1.msra.mxu0 0.0
  %2215 = vmatprep.subr.mxu0 0.0
  %2216 = vmatpush1.msra.mxu0 0.0
  %2217 = vmatprep.subr.mxu0 0.0
  %2218 = vmatpush1.msra.mxu0 0.0
  %2219 = vmatprep.subr.mxu0 0.0
  %2220 = vmatpush1.msra.mxu0 0.0
  %2221 = vmatprep.subr.mxu0 0.0
  %2222 = vmatpush1.msra.mxu0 0.0
  %2223 = vmatprep.subr.mxu0 0.0
  %2224 = vmatpush1.msra.mxu0 0.0
  %2225 = vmatprep.subr.mxu0 0.0
  %2226 = vmatpush1.msra.mxu0 0.0
  %2227 = vmatprep.subr.mxu0 0.0
  %2228 = vmatpush1.msra.mxu0 0.0
  %2229 = vmatprep.subr.mxu0 0.0
  %2230 = vmatpush1.msra.mxu0 0.0
  %2231 = vmatprep.subr.mxu0 0.0
  %2232 = vmatpush1.msra.mxu0 0.0
  %2233 = vmatprep.subr.mxu0 0.0
  %2234 = vmatpush1.msra.mxu0 0.0
  %2235 = vmatprep.mubr.f32.mxu0 0.0
  %2236 = vmatmul.mubr.f32.gmra.mrb[0].mxu0 %v2166
  %v2237 = vpop.f32.mrb[0].mxu0
  %v2238 = vadd.f32 0.0, %v2237
  %v2239 = vpop.f32.mrb[0].mxu0
  %2240 = vmatprep.mubr.f32.mxu0 0.0
  %2241 = vmatmul.mubr.f32.gmra.mrb[0].mxu0 %v2169
  %v2242 = vpop.f32.mrb[0].mxu0
  %v2243 = vadd.f32 0.0, %v2242
  %v2244 = vpop.f32.mrb[0].mxu0
  %2245 = vdwg.mxu0
  %s2246 = scalar_lea.vmem %s2, 96
  %v2247 = vld [vmem:[%s2246] sm:$0xff]
  %v2248 = vld [vmem:[%s2246 + $0x8] sm:$0xff]
  %v2250 = vsel %vm1557, %v2247, 0
  %v2253 = vsel %vm1557, %v2248, 0
  %2255 = vmatprep.subr.mxu0 0.0
  %2256 = vmatpush1.msra.mxu0 %v1712
  %2257 = vmatprep.subr.mxu0 0.0
  %2258 = vmatpush1.msra.mxu0 %v1713
  %2259 = vmatprep.subr.mxu0 0.0
  %2260 = vmatpush1.msra.mxu0 %v1714
  %2261 = vmatprep.subr.mxu0 0.0
  %2262 = vmatpush1.msra.mxu0 %v1715
  %2263 = vmatprep.subr.mxu0 0.0
  %2264 = vmatpush1.msra.mxu0 %v1716
  %2265 = vmatprep.subr.mxu0 0.0
  %2266 = vmatpush1.msra.mxu0 %v1717
  %2267 = vmatprep.subr.mxu0 0.0
  %2268 = vmatpush1.msra.mxu0 %v1718
  %2269 = vmatprep.subr.mxu0 0.0
  %2270 = vmatpush1.msra.mxu0 %v1719
  %2271 = vmatprep.subr.mxu0 0.0
  %2272 = vmatpush1.msra.mxu0 0.0
  %2273 = vmatprep.subr.mxu0 0.0
  %2274 = vmatpush1.msra.mxu0 0.0
  %2275 = vmatprep.subr.mxu0 0.0
  %2276 = vmatpush1.msra.mxu0 0.0
  %2277 = vmatprep.subr.mxu0 0.0
  %2278 = vmatpush1.msra.mxu0 0.0
  %2279 = vmatprep.subr.mxu0 0.0
  %2280 = vmatpush1.msra.mxu0 0.0
  %2281 = vmatprep.subr.mxu0 0.0
  %2282 = vmatpush1.msra.mxu0 0.0
  %2283 = vmatprep.subr.mxu0 0.0
  %2284 = vmatpush1.msra.mxu0 0.0
  %2285 = vmatprep.subr.mxu0 0.0
  %2286 = vmatpush1.msra.mxu0 0.0
  %2287 = vmatprep.subr.mxu0 0.0
  %2288 = vmatpush1.msra.mxu0 0.0
  %2289 = vmatprep.subr.mxu0 0.0
  %2290 = vmatpush1.msra.mxu0 0.0
  %2291 = vmatprep.subr.mxu0 0.0
  %2292 = vmatpush1.msra.mxu0 0.0
  %2293 = vmatprep.subr.mxu0 0.0
  %2294 = vmatpush1.msra.mxu0 0.0
  %2295 = vmatprep.subr.mxu0 0.0
  %2296 = vmatpush1.msra.mxu0 0.0
  %2297 = vmatprep.subr.mxu0 0.0
  %2298 = vmatpush1.msra.mxu0 0.0
  %2299 = vmatprep.subr.mxu0 0.0
  %2300 = vmatpush1.msra.mxu0 0.0
  %2301 = vmatprep.subr.mxu0 0.0
  %2302 = vmatpush1.msra.mxu0 0.0
  %2303 = vmatprep.subr.mxu0 0.0
  %2304 = vmatpush1.msra.mxu0 0.0
  %2305 = vmatprep.subr.mxu0 0.0
  %2306 = vmatpush1.msra.mxu0 0.0
  %2307 = vmatprep.subr.mxu0 0.0
  %2308 = vmatpush1.msra.mxu0 0.0
  %2309 = vmatprep.subr.mxu0 0.0
  %2310 = vmatpush1.msra.mxu0 0.0
  %2311 = vmatprep.subr.mxu0 0.0
  %2312 = vmatpush1.msra.mxu0 0.0
  %2313 = vmatprep.subr.mxu0 0.0
  %2314 = vmatpush1.msra.mxu0 0.0
  %2315 = vmatprep.subr.mxu0 0.0
  %2316 = vmatpush1.msra.mxu0 0.0
  %2317 = vmatprep.subr.mxu0 0.0
  %2318 = vmatpush1.msra.mxu0 0.0
  %2319 = vmatprep.mubr.f32.mxu0 0.0
  %2320 = vmatmul.mubr.f32.gmra.mrb[0].mxu0 %v2250
  %v2321 = vpop.f32.mrb[0].mxu0
  %v2322 = vadd.f32 0.0, %v2321
  %v2323 = vpop.f32.mrb[0].mxu0
  %2324 = vmatprep.mubr.f32.mxu0 0.0
  %2325 = vmatmul.mubr.f32.gmra.mrb[0].mxu0 %v2253
  %v2326 = vpop.f32.mrb[0].mxu0
  %v2327 = vadd.f32 0.0, %v2326
  %v2328 = vpop.f32.mrb[0].mxu0
  %2329 = vdwg.mxu0
  %s2330 = scalar_lea.vmem %s2, 112
  %v2331 = vld [vmem:[%s2330] sm:$0xff]
  %v2332 = vld [vmem:[%s2330 + $0x8] sm:$0xff]
  %v2334 = vsel %vm1557, %v2331, 0
  %v2337 = vsel %vm1557, %v2332, 0
  %2339 = vmatprep.subr.mxu0 0.0
  %2340 = vmatpush1.msra.mxu0 %v1712
  %2341 = vmatprep.subr.mxu0 0.0
  %2342 = vmatpush1.msra.mxu0 %v1713
  %2343 = vmatprep.subr.mxu0 0.0
  %2344 = vmatpush1.msra.mxu0 %v1714
  %2345 = vmatprep.subr.mxu0 0.0
  %2346 = vmatpush1.msra.mxu0 %v1715
  %2347 = vmatprep.subr.mxu0 0.0
  %2348 = vmatpush1.msra.mxu0 %v1716
  %2349 = vmatprep.subr.mxu0 0.0
  %2350 = vmatpush1.msra.mxu0 %v1717
  %2351 = vmatprep.subr.mxu0 0.0
  %2352 = vmatpush1.msra.mxu0 %v1718
  %2353 = vmatprep.subr.mxu0 0.0
  %2354 = vmatpush1.msra.mxu0 %v1719
  %2355 = vmatprep.subr.mxu0 0.0
  %2356 = vmatpush1.msra.mxu0 0.0
  %2357 = vmatprep.subr.mxu0 0.0
  %2358 = vmatpush1.msra.mxu0 0.0
  %2359 = vmatprep.subr.mxu0 0.0
  %2360 = vmatpush1.msra.mxu0 0.0
  %2361 = vmatprep.subr.mxu0 0.0
  %2362 = vmatpush1.msra.mxu0 0.0
  %2363 = vmatprep.subr.mxu0 0.0
  %2364 = vmatpush1.msra.mxu0 0.0
  %2365 = vmatprep.subr.mxu0 0.0
  %2366 = vmatpush1.msra.mxu0 0.0
  %2367 = vmatprep.subr.mxu0 0.0
  %2368 = vmatpush1.msra.mxu0 0.0
  %2369 = vmatprep.subr.mxu0 0.0
  %2370 = vmatpush1.msra.mxu0 0.0
  %2371 = vmatprep.subr.mxu0 0.0
  %2372 = vmatpush1.msra.mxu0 0.0
  %2373 = vmatprep.subr.mxu0 0.0
  %2374 = vmatpush1.msra.mxu0 0.0
  %2375 = vmatprep.subr.mxu0 0.0
  %2376 = vmatpush1.msra.mxu0 0.0
  %2377 = vmatprep.subr.mxu0 0.0
  %2378 = vmatpush1.msra.mxu0 0.0
  %2379 = vmatprep.subr.mxu0 0.0
  %2380 = vmatpush1.msra.mxu0 0.0
  %2381 = vmatprep.subr.mxu0 0.0
  %2382 = vmatpush1.msra.mxu0 0.0
  %2383 = vmatprep.subr.mxu0 0.0
  %2384 = vmatpush1.msra.mxu0 0.0
  %2385 = vmatprep.subr.mxu0 0.0
  %2386 = vmatpush1.msra.mxu0 0.0
  %2387 = vmatprep.subr.mxu0 0.0
  %2388 = vmatpush1.msra.mxu0 0.0
  %2389 = vmatprep.subr.mxu0 0.0
  %2390 = vmatpush1.msra.mxu0 0.0
  %2391 = vmatprep.subr.mxu0 0.0
  %2392 = vmatpush1.msra.mxu0 0.0
  %2393 = vmatprep.subr.mxu0 0.0
  %2394 = vmatpush1.msra.mxu0 0.0
  %2395 = vmatprep.subr.mxu0 0.0
  %2396 = vmatpush1.msra.mxu0 0.0
  %2397 = vmatprep.subr.mxu0 0.0
  %2398 = vmatpush1.msra.mxu0 0.0
  %2399 = vmatprep.subr.mxu0 0.0
  %2400 = vmatpush1.msra.mxu0 0.0
  %2401 = vmatprep.subr.mxu0 0.0
  %2402 = vmatpush1.msra.mxu0 0.0
  %2403 = vmatprep.mubr.f32.mxu0 0.0
  %2404 = vmatmul.mubr.f32.gmra.mrb[0].mxu0 %v2334
  %v2405 = vpop.f32.mrb[0].mxu0
  %v2406 = vadd.f32 0.0, %v2405
  %v2407 = vpop.f32.mrb[0].mxu0
  %2408 = vmatprep.mubr.f32.mxu0 0.0
  %2409 = vmatmul.mubr.f32.gmra.mrb[0].mxu0 %v2337
  %v2410 = vpop.f32.mrb[0].mxu0
  %v2411 = vadd.f32 0.0, %v2410
  %v2412 = vpop.f32.mrb[0].mxu0
  %2413 = vdwg.mxu0
  %s2414 = scalar_lea.vmem %s2, 128
  %v2415 = vld [vmem:[%s2414] sm:$0xff]
  %v2416 = vld [vmem:[%s2414 + $0x8] sm:$0xff]
  %v2418 = vsel %vm1557, %v2415, 0
  %v2421 = vsel %vm1557, %v2416, 0
  %2423 = vmatprep.subr.mxu0 0.0
  %2424 = vmatpush1.msra.mxu0 %v1712
  %2425 = vmatprep.subr.mxu0 0.0
  %2426 = vmatpush1.msra.mxu0 %v1713
  %2427 = vmatprep.subr.mxu0 0.0
  %2428 = vmatpush1.msra.mxu0 %v1714
  %2429 = vmatprep.subr.mxu0 0.0
  %2430 = vmatpush1.msra.mxu0 %v1715
  %2431 = vmatprep.subr.mxu0 0.0
  %2432 = vmatpush1.msra.mxu0 %v1716
  %2433 = vmatprep.subr.mxu0 0.0
  %2434 = vmatpush1.msra.mxu0 %v1717
  %2435 = vmatprep.subr.mxu0 0.0
  %2436 = vmatpush1.msra.mxu0 %v1718
  %2437 = vmatprep.subr.mxu0 0.0
  %2438 = vmatpush1.msra.mxu0 %v1719
  %2439 = vmatprep.subr.mxu0 0.0
  %2440 = vmatpush1.msra.mxu0 0.0
  %2441 = vmatprep.subr.mxu0 0.0
  %2442 = vmatpush1.msra.mxu0 0.0
  %2443 = vmatprep.subr.mxu0 0.0
  %2444 = vmatpush1.msra.mxu0 0.0
  %2445 = vmatprep.subr.mxu0 0.0
  %2446 = vmatpush1.msra.mxu0 0.0
  %2447 = vmatprep.subr.mxu0 0.0
  %2448 = vmatpush1.msra.mxu0 0.0
  %2449 = vmatprep.subr.mxu0 0.0
  %2450 = vmatpush1.msra.mxu0 0.0
  %2451 = vmatprep.subr.mxu0 0.0
  %2452 = vmatpush1.msra.mxu0 0.0
  %2453 = vmatprep.subr.mxu0 0.0
  %2454 = vmatpush1.msra.mxu0 0.0
  %2455 = vmatprep.subr.mxu0 0.0
  %2456 = vmatpush1.msra.mxu0 0.0
  %2457 = vmatprep.subr.mxu0 0.0
  %2458 = vmatpush1.msra.mxu0 0.0
  %2459 = vmatprep.subr.mxu0 0.0
  %2460 = vmatpush1.msra.mxu0 0.0
  %2461 = vmatprep.subr.mxu0 0.0
  %2462 = vmatpush1.msra.mxu0 0.0
  %2463 = vmatprep.subr.mxu0 0.0
  %2464 = vmatpush1.msra.mxu0 0.0
  %2465 = vmatprep.subr.mxu0 0.0
  %2466 = vmatpush1.msra.mxu0 0.0
  %2467 = vmatprep.subr.mxu0 0.0
  %2468 = vmatpush1.msra.mxu0 0.0
  %2469 = vmatprep.subr.mxu0 0.0
  %2470 = vmatpush1.msra.mxu0 0.0
  %2471 = vmatprep.subr.mxu0 0.0
  %2472 = vmatpush1.msra.mxu0 0.0
  %2473 = vmatprep.subr.mxu0 0.0
  %2474 = vmatpush1.msra.mxu0 0.0
  %2475 = vmatprep.subr.mxu0 0.0
  %2476 = vmatpush1.msra.mxu0 0.0
  %2477 = vmatprep.subr.mxu0 0.0
  %2478 = vmatpush1.msra.mxu0 0.0
  %2479 = vmatprep.subr.mxu0 0.0
  %2480 = vmatpush1.msra.mxu0 0.0
  %2481 = vmatprep.subr.mxu0 0.0
  %2482 = vmatpush1.msra.mxu0 0.0
  %2483 = vmatprep.subr.mxu0 0.0
  %2484 = vmatpush1.msra.mxu0 0.0
  %2485 = vmatprep.subr.mxu0 0.0
  %2486 = vmatpush1.msra.mxu0 0.0
  %2487 = vmatprep.mubr.f32.mxu0 0.0
  %2488 = vmatmul.mubr.f32.gmra.mrb[0].mxu0 %v2418
  %v2489 = vpop.f32.mrb[0].mxu0
  %v2490 = vadd.f32 0.0, %v2489
  %v2491 = vpop.f32.mrb[0].mxu0
  %2492 = vmatprep.mubr.f32.mxu0 0.0
  %2493 = vmatmul.mubr.f32.gmra.mrb[0].mxu0 %v2421
  %v2494 = vpop.f32.mrb[0].mxu0
  %v2495 = vadd.f32 0.0, %v2494
  %v2496 = vpop.f32.mrb[0].mxu0
  %2497 = vdwg.mxu0
  %2500 = vrot.lane.b32.xlu0 %v1902, 64
  %v2501 = vpop.permute.xlu0 %2500
  %2502 = vrot.lane.b32.xlu0 %v1907, 64
  %v2503 = vpop.permute.xlu0 %2502
  %2508 = vrot.lane.b32.xlu0 %v2070, 64
  %v2509 = vpop.permute.xlu0 %2508
  %2510 = vrot.lane.b32.xlu0 %v2075, 64
  %v2511 = vpop.permute.xlu0 %2510
  %2516 = vrot.lane.b32.xlu0 %v2238, 64
  %v2517 = vpop.permute.xlu0 %2516
  %2518 = vrot.lane.b32.xlu0 %v2243, 64
  %v2519 = vpop.permute.xlu0 %2518
  %2524 = vrot.lane.b32.xlu0 %v2406, 64
  %v2525 = vpop.permute.xlu0 %2524
  %2526 = vrot.lane.b32.xlu0 %v2411, 64
  %v2527 = vpop.permute.xlu0 %2526
  %v2530 = vsel %vm1557, %v1818, %v2501
  %v2531 = vsel %vm1557, %v1823, %v2503
  %v2532 = vsel %vm1557, %v1986, %v2509
  %v2533 = vsel %vm1557, %v1991, %v2511
  %v2534 = vsel %vm1557, %v2154, %v2517
  %v2535 = vsel %vm1557, %v2159, %v2519
  %v2536 = vsel %vm1557, %v2322, %v2525
  %v2537 = vsel %vm1557, %v2327, %v2527
  %v2538 = vld [vmem:[%s5] sm:$0xff]
  %v2539 = vld [vmem:[%s5 + $0x8] sm:$0xff]
  %v2540 = vld [vmem:[%s5 + $0x10] sm:$0xff]
  %v2541 = vld [vmem:[%s5 + $0x18] sm:$0xff]
  %v2542 = vld [vmem:[%s5 + $0x20] sm:$0xff]
  %v2543 = vld [vmem:[%s5 + $0x28] sm:$0xff]
  %v2544 = vld [vmem:[%s5 + $0x30] sm:$0xff]
  %v2545 = vld [vmem:[%s5 + $0x38] sm:$0xff]
  %v2546 = vld [vmem:[%s5 + $0x40] sm:$0xff]
  %v2547 = vld [vmem:[%s5 + $0x48] sm:$0xff]
  %v2548 = vld [vmem:[%s5 + $0x50] sm:$0xff]
  %v2549 = vld [vmem:[%s5 + $0x58] sm:$0xff]
  %v2550 = vld [vmem:[%s5 + $0x60] sm:$0xff]
  %v2551 = vld [vmem:[%s5 + $0x68] sm:$0xff]
  %v2552 = vld [vmem:[%s5 + $0x70] sm:$0xff]
  %v2553 = vld [vmem:[%s5 + $0x78] sm:$0xff]
  %v2554 = vld [vmem:[%s5 + $0x80] sm:$0xff]
  %v2555 = vld [vmem:[%s5 + $0x88] sm:$0xff]
  %v2556 = vld [vmem:[%s5 + $0x90] sm:$0xff]
  %v2557 = vld [vmem:[%s5 + $0x98] sm:$0xff]
  %v2558 = vld [vmem:[%s5 + $0xa0] sm:$0xff]
  %v2559 = vld [vmem:[%s5 + $0xa8] sm:$0xff]
  %v2560 = vld [vmem:[%s5 + $0xb0] sm:$0xff]
  %v2561 = vld [vmem:[%s5 + $0xb8] sm:$0xff]
  %v2562 = vld [vmem:[%s5 + $0xc0] sm:$0xff]
  %v2563 = vld [vmem:[%s5 + $0xc8] sm:$0xff]
  %v2564 = vld [vmem:[%s5 + $0xd0] sm:$0xff]
  %v2565 = vld [vmem:[%s5 + $0xd8] sm:$0xff]
  %v2566 = vld [vmem:[%s5 + $0xe0] sm:$0xff]
  %v2567 = vld [vmem:[%s5 + $0xe8] sm:$0xff]
  %v2568 = vld [vmem:[%s5 + $0xf0] sm:$0xff]
  %v2569 = vld [vmem:[%s5 + $0xf8] sm:$0xff]
  %v2570 = vld [vmem:[%s5 + $0x100] sm:$0xff]
  %v2571 = vld [vmem:[%s5 + $0x108] sm:$0xff]
  %v2572 = vld [vmem:[%s5 + $0x110] sm:$0xff]
  %v2573 = vld [vmem:[%s5 + $0x118] sm:$0xff]
  %v2574 = vld [vmem:[%s5 + $0x120] sm:$0xff]
  %v2575 = vld [vmem:[%s5 + $0x128] sm:$0xff]
  %v2576 = vld [vmem:[%s5 + $0x130] sm:$0xff]
  %v2577 = vld [vmem:[%s5 + $0x138] sm:$0xff]
  %v2578 = vld [vmem:[%s5 + $0x140] sm:$0xff]
  %v2579 = vld [vmem:[%s5 + $0x148] sm:$0xff]
  %v2580 = vld [vmem:[%s5 + $0x150] sm:$0xff]
  %v2581 = vld [vmem:[%s5 + $0x158] sm:$0xff]
  %v2582 = vld [vmem:[%s5 + $0x160] sm:$0xff]
  %v2583 = vld [vmem:[%s5 + $0x168] sm:$0xff]
  %v2584 = vld [vmem:[%s5 + $0x170] sm:$0xff]
  %v2585 = vld [vmem:[%s5 + $0x178] sm:$0xff]
  %v2586 = vld [vmem:[%s5 + $0x180] sm:$0xff]
  %v2587 = vld [vmem:[%s5 + $0x188] sm:$0xff]
  %v2588 = vld [vmem:[%s5 + $0x190] sm:$0xff]
  %v2589 = vld [vmem:[%s5 + $0x198] sm:$0xff]
  %v2590 = vld [vmem:[%s5 + $0x1a0] sm:$0xff]
  %v2591 = vld [vmem:[%s5 + $0x1a8] sm:$0xff]
  %v2592 = vld [vmem:[%s5 + $0x1b0] sm:$0xff]
  %v2593 = vld [vmem:[%s5 + $0x1b8] sm:$0xff]
  %v2594 = vld [vmem:[%s5 + $0x1c0] sm:$0xff]
  %v2595 = vld [vmem:[%s5 + $0x1c8] sm:$0xff]
  %v2596 = vld [vmem:[%s5 + $0x1d0] sm:$0xff]
  %v2597 = vld [vmem:[%s5 + $0x1d8] sm:$0xff]
  %v2598 = vld [vmem:[%s5 + $0x1e0] sm:$0xff]
  %v2599 = vld [vmem:[%s5 + $0x1e8] sm:$0xff]
  %v2600 = vld [vmem:[%s5 + $0x1f0] sm:$0xff]
  %v2601 = vld [vmem:[%s5 + $0x1f8] sm:$0xff]
  %v2602 = vld [vmem:[%s5 + $0x200] sm:$0xff]
  %v2603 = vld [vmem:[%s5 + $0x208] sm:$0xff]
  %v2604 = vld [vmem:[%s5 + $0x210] sm:$0xff]
  %v2605 = vld [vmem:[%s5 + $0x218] sm:$0xff]
  %v2606 = vld [vmem:[%s5 + $0x220] sm:$0xff]
  %v2607 = vld [vmem:[%s5 + $0x228] sm:$0xff]
  %v2608 = vld [vmem:[%s5 + $0x230] sm:$0xff]
  %v2609 = vld [vmem:[%s5 + $0x238] sm:$0xff]
  %v2610 = vld [vmem:[%s6] sm:$0x1]
  %v2612 = vlaneseq
  %v2613 = vshrl.u32 %v2612, 7
  %v2614 = vsub.s32 0, %v2613
  %v2615 = vrot.slane %v2610, %v2614
  %v2618 = vsel %vm1557, %v2490, 0
  %v2621 = vsel %vm1557, %v2495, 0
  %2623 = vmatprep.subr.mxu0 0.0
  %2624 = vmatpush1.msra.mxu0 %v2538
  %2625 = vmatprep.subr.mxu0 0.0
  %2626 = vmatpush1.msra.mxu0 %v2539
  %2627 = vmatprep.subr.mxu0 0.0
  %2628 = vmatpush1.msra.mxu0 %v2540
  %2629 = vmatprep.subr.mxu0 0.0
  %2630 = vmatpush1.msra.mxu0 %v2541
  %2631 = vmatprep.subr.mxu0 0.0
  %2632 = vmatpush1.msra.mxu0 %v2542
  %2633 = vmatprep.subr.mxu0 0.0
  %2634 = vmatpush1.msra.mxu0 %v2543
  %2635 = vmatprep.subr.mxu0 0.0
  %2636 = vmatpush1.msra.mxu0 %v2544
  %2637 = vmatprep.subr.mxu0 0.0
  %2638 = vmatpush1.msra.mxu0 %v2545
  %2639 = vmatprep.subr.mxu0 0.0
  %2640 = vmatpush1.msra.mxu0 %v2546
  %2641 = vmatprep.subr.mxu0 0.0
  %2642 = vmatpush1.msra.mxu0 %v2547
  %2643 = vmatprep.subr.mxu0 0.0
  %2644 = vmatpush1.msra.mxu0 %v2548
  %2645 = vmatprep.subr.mxu0 0.0
  %2646 = vmatpush1.msra.mxu0 %v2549
  %2647 = vmatprep.subr.mxu0 0.0
  %2648 = vmatpush1.msra.mxu0 %v2550
  %2649 = vmatprep.subr.mxu0 0.0
  %2650 = vmatpush1.msra.mxu0 %v2551
  %2651 = vmatprep.subr.mxu0 0.0
  %2652 = vmatpush1.msra.mxu0 %v2552
  %2653 = vmatprep.subr.mxu0 0.0
  %2654 = vmatpush1.msra.mxu0 %v2553
  %2655 = vmatprep.subr.mxu0 0.0
  %2656 = vmatpush1.msra.mxu0 %v2554
  %2657 = vmatprep.subr.mxu0 0.0
  %2658 = vmatpush1.msra.mxu0 %v2555
  %2659 = vmatprep.subr.mxu0 0.0
  %2660 = vmatpush1.msra.mxu0 %v2556
  %2661 = vmatprep.subr.mxu0 0.0
  %2662 = vmatpush1.msra.mxu0 %v2557
  %2663 = vmatprep.subr.mxu0 0.0
  %2664 = vmatpush1.msra.mxu0 %v2558
  %2665 = vmatprep.subr.mxu0 0.0
  %2666 = vmatpush1.msra.mxu0 %v2559
  %2667 = vmatprep.subr.mxu0 0.0
  %2668 = vmatpush1.msra.mxu0 %v2560
  %2669 = vmatprep.subr.mxu0 0.0
  %2670 = vmatpush1.msra.mxu0 %v2561
  %2671 = vmatprep.subr.mxu0 0.0
  %2672 = vmatpush1.msra.mxu0 %v2562
  %2673 = vmatprep.subr.mxu0 0.0
  %2674 = vmatpush1.msra.mxu0 %v2563
  %2675 = vmatprep.subr.mxu0 0.0
  %2676 = vmatpush1.msra.mxu0 %v2564
  %2677 = vmatprep.subr.mxu0 0.0
  %2678 = vmatpush1.msra.mxu0 %v2565
  %2679 = vmatprep.subr.mxu0 0.0
  %2680 = vmatpush1.msra.mxu0 %v2566
  %2681 = vmatprep.subr.mxu0 0.0
  %2682 = vmatpush1.msra.mxu0 %v2567
  %2683 = vmatprep.subr.mxu0 0.0
  %2684 = vmatpush1.msra.mxu0 %v2568
  %2685 = vmatprep.subr.mxu0 0.0
  %2686 = vmatpush1.msra.mxu0 %v2569
  %2687 = vmatprep.mubr.f32.mxu0 %v2532
  %2688 = vmatmul.mubr.f32.gmra.mrb[0].mxu0 %v2530
  %v2689 = vpop.f32.mrb[0].mxu0
  %v2690 = vadd.f32 %v2615, %v2689
  %v2691 = vpop.f32.mrb[0].mxu0
  %2692 = vmatprep.mubr.f32.mxu0 %v2533
  %2693 = vmatmul.mubr.f32.gmra.mrb[0].mxu0 %v2531
  %v2694 = vpop.f32.mrb[0].mxu0
  %v2695 = vadd.f32 %v2615, %v2694
  %v2696 = vpop.f32.mrb[0].mxu0
  %2697 = vdwg.mxu0
  %2698 = vmatprep.subr.mxu0 0.0
  %2699 = vmatpush1.msra.mxu0 %v2570
  %2700 = vmatprep.subr.mxu0 0.0
  %2701 = vmatpush1.msra.mxu0 %v2571
  %2702 = vmatprep.subr.mxu0 0.0
  %2703 = vmatpush1.msra.mxu0 %v2572
  %2704 = vmatprep.subr.mxu0 0.0
  %2705 = vmatpush1.msra.mxu0 %v2573
  %2706 = vmatprep.subr.mxu0 0.0
  %2707 = vmatpush1.msra.mxu0 %v2574
  %2708 = vmatprep.subr.mxu0 0.0
  %2709 = vmatpush1.msra.mxu0 %v2575
  %2710 = vmatprep.subr.mxu0 0.0
  %2711 = vmatpush1.msra.mxu0 %v2576
  %2712 = vmatprep.subr.mxu0 0.0
  %2713 = vmatpush1.msra.mxu0 %v2577
  %2714 = vmatprep.subr.mxu0 0.0
  %2715 = vmatpush1.msra.mxu0 %v2578
  %2716 = vmatprep.subr.mxu0 0.0
  %2717 = vmatpush1.msra.mxu0 %v2579
  %2718 = vmatprep.subr.mxu0 0.0
  %2719 = vmatpush1.msra.mxu0 %v2580
  %2720 = vmatprep.subr.mxu0 0.0
  %2721 = vmatpush1.msra.mxu0 %v2581
  %2722 = vmatprep.subr.mxu0 0.0
  %2723 = vmatpush1.msra.mxu0 %v2582
  %2724 = vmatprep.subr.mxu0 0.0
  %2725 = vmatpush1.msra.mxu0 %v2583
  %2726 = vmatprep.subr.mxu0 0.0
  %2727 = vmatpush1.msra.mxu0 %v2584
  %2728 = vmatprep.subr.mxu0 0.0
  %2729 = vmatpush1.msra.mxu0 %v2585
  %2730 = vmatprep.subr.mxu0 0.0
  %2731 = vmatpush1.msra.mxu0 %v2586
  %2732 = vmatprep.subr.mxu0 0.0
  %2733 = vmatpush1.msra.mxu0 %v2587
  %2734 = vmatprep.subr.mxu0 0.0
  %2735 = vmatpush1.msra.mxu0 %v2588
  %2736 = vmatprep.subr.mxu0 0.0
  %2737 = vmatpush1.msra.mxu0 %v2589
  %2738 = vmatprep.subr.mxu0 0.0
  %2739 = vmatpush1.msra.mxu0 %v2590
  %2740 = vmatprep.subr.mxu0 0.0
  %2741 = vmatpush1.msra.mxu0 %v2591
  %2742 = vmatprep.subr.mxu0 0.0
  %2743 = vmatpush1.msra.mxu0 %v2592
  %2744 = vmatprep.subr.mxu0 0.0
  %2745 = vmatpush1.msra.mxu0 %v2593
  %2746 = vmatprep.subr.mxu0 0.0
  %2747 = vmatpush1.msra.mxu0 %v2594
  %2748 = vmatprep.subr.mxu0 0.0
  %2749 = vmatpush1.msra.mxu0 %v2595
  %2750 = vmatprep.subr.mxu0 0.0
  %2751 = vmatpush1.msra.mxu0 %v2596
  %2752 = vmatprep.subr.mxu0 0.0
  %2753 = vmatpush1.msra.mxu0 %v2597
  %2754 = vmatprep.subr.mxu0 0.0
  %2755 = vmatpush1.msra.mxu0 %v2598
  %2756 = vmatprep.subr.mxu0 0.0
  %2757 = vmatpush1.msra.mxu0 %v2599
  %2758 = vmatprep.subr.mxu0 0.0
  %2759 = vmatpush1.msra.mxu0 %v2600
  %2760 = vmatprep.subr.mxu0 0.0
  %2761 = vmatpush1.msra.mxu0 %v2601
  %2762 = vmatprep.mubr.f32.mxu0 %v2536
  %2763 = vmatmul.mubr.f32.gmra.mrb[0].mxu0 %v2534
  %v2764 = vpop.f32.mrb[0].mxu0
  %v2765 = vadd.f32 %v2690, %v2764
  %v2766 = vpop.f32.mrb[0].mxu0
  %2767 = vmatprep.mubr.f32.mxu0 %v2537
  %2768 = vmatmul.mubr.f32.gmra.mrb[0].mxu0 %v2535
  %v2769 = vpop.f32.mrb[0].mxu0
  %v2770 = vadd.f32 %v2695, %v2769
  %v2771 = vpop.f32.mrb[0].mxu0
  %2772 = vdwg.mxu0
  %2773 = vmatprep.subr.mxu0 0.0
  %2774 = vmatpush1.msra.mxu0 %v2602
  %2775 = vmatprep.subr.mxu0 0.0
  %2776 = vmatpush1.msra.mxu0 %v2603
  %2777 = vmatprep.subr.mxu0 0.0
  %2778 = vmatpush1.msra.mxu0 %v2604
  %2779 = vmatprep.subr.mxu0 0.0
  %2780 = vmatpush1.msra.mxu0 %v2605
  %2781 = vmatprep.subr.mxu0 0.0
  %2782 = vmatpush1.msra.mxu0 %v2606
  %2783 = vmatprep.subr.mxu0 0.0
  %2784 = vmatpush1.msra.mxu0 %v2607
  %2785 = vmatprep.subr.mxu0 0.0
  %2786 = vmatpush1.msra.mxu0 %v2608
  %2787 = vmatprep.subr.mxu0 0.0
  %2788 = vmatpush1.msra.mxu0 %v2609
  %2789 = vmatprep.subr.mxu0 0.0
  %2790 = vmatpush1.msra.mxu0 0.0
  %2791 = vmatprep.subr.mxu0 0.0
  %2792 = vmatpush1.msra.mxu0 0.0
  %2793 = vmatprep.subr.mxu0 0.0
  %2794 = vmatpush1.msra.mxu0 0.0
  %2795 = vmatprep.subr.mxu0 0.0
  %2796 = vmatpush1.msra.mxu0 0.0
  %2797 = vmatprep.subr.mxu0 0.0
  %2798 = vmatpush1.msra.mxu0 0.0
  %2799 = vmatprep.subr.mxu0 0.0
  %2800 = vmatpush1.msra.mxu0 0.0
  %2801 = vmatprep.subr.mxu0 0.0
  %2802 = vmatpush1.msra.mxu0 0.0
  %2803 = vmatprep.subr.mxu0 0.0
  %2804 = vmatpush1.msra.mxu0 0.0
  %2805 = vmatprep.subr.mxu0 0.0
  %2806 = vmatpush1.msra.mxu0 0.0
  %2807 = vmatprep.subr.mxu0 0.0
  %2808 = vmatpush1.msra.mxu0 0.0
  %2809 = vmatprep.subr.mxu0 0.0
  %2810 = vmatpush1.msra.mxu0 0.0
  %2811 = vmatprep.subr.mxu0 0.0
  %2812 = vmatpush1.msra.mxu0 0.0
  %2813 = vmatprep.subr.mxu0 0.0
  %2814 = vmatpush1.msra.mxu0 0.0
  %2815 = vmatprep.subr.mxu0 0.0
  %2816 = vmatpush1.msra.mxu0 0.0
  %2817 = vmatprep.subr.mxu0 0.0
  %2818 = vmatpush1.msra.mxu0 0.0
  %2819 = vmatprep.subr.mxu0 0.0
  %2820 = vmatpush1.msra.mxu0 0.0
  %2821 = vmatprep.subr.mxu0 0.0
  %2822 = vmatpush1.msra.mxu0 0.0
  %2823 = vmatprep.subr.mxu0 0.0
  %2824 = vmatpush1.msra.mxu0 0.0
  %2825 = vmatprep.subr.mxu0 0.0
  %2826 = vmatpush1.msra.mxu0 0.0
  %2827 = vmatprep.subr.mxu0 0.0
  %2828 = vmatpush1.msra.mxu0 0.0
  %2829 = vmatprep.subr.mxu0 0.0
  %2830 = vmatpush1.msra.mxu0 0.0
  %2831 = vmatprep.subr.mxu0 0.0
  %2832 = vmatpush1.msra.mxu0 0.0
  %2833 = vmatprep.subr.mxu0 0.0
  %2834 = vmatpush1.msra.mxu0 0.0
  %2835 = vmatprep.subr.mxu0 0.0
  %2836 = vmatpush1.msra.mxu0 0.0
  %2837 = vmatprep.mubr.f32.mxu0 0.0
  %2838 = vmatmul.mubr.f32.gmra.mrb[0].mxu0 %v2618
  %v2839 = vpop.f32.mrb[0].mxu0
  %v2840 = vadd.f32 %v2765, %v2839
  %v2841 = vpop.f32.mrb[0].mxu0
  %2842 = vmatprep.mubr.f32.mxu0 0.0
  %2843 = vmatmul.mubr.f32.gmra.mrb[0].mxu0 %v2621
  %v2844 = vpop.f32.mrb[0].mxu0
  %v2845 = vadd.f32 %v2770, %v2844
  %v2846 = vpop.f32.mrb[0].mxu0
  %2847 = vdwg.mxu0
  %v2848 = vmax.f32 %v2840, 0.0
  %v2849 = vmax.f32 %v2845, 0.0
  %v2850 = vadd.f32 %v2848, %v2849
  %v2851 = vrot.slane %v2850, 4
  %v2852 = vadd.f32 %v2850, %v2851
  %v2853 = vrot.slane %v2852, 2
  %v2854 = vadd.f32 %v2852, %v2853
  %v2855 = vrot.slane %v2854, 1
  %v2856 = vadd.f32 %v2854, %v2855
  %v2857 = vrcp.pop 16.0
  %v2858 = vmul.f32 %v2856, %v2857
  %v2859 = vld [vmem:[%s7] sm:$0xff]
  %v2860 = vld [vmem:[%s8] sm:$0xff]
  %v2861 = vld [vmem:[%s8 + $0x8] sm:$0xff]
  %v2862 = vld [vmem:[%s8 + $0x10] sm:$0xff]
  %v2863 = vld [vmem:[%s8 + $0x18] sm:$0xff]
  %v2864 = vld [vmem:[%s8 + $0x20] sm:$0xff]
  %v2865 = vld [vmem:[%s8 + $0x28] sm:$0xff]
  %v2866 = vld [vmem:[%s8 + $0x30] sm:$0xff]
  %v2867 = vld [vmem:[%s8 + $0x38] sm:$0xff]
  %v2869 = vsel %vm1557, %v1742, 0
  %2871 = vmatprep.subr.mxu0 0.0
  %2872 = vmatpush1.msra.mxu0 %v2860
  %2873 = vmatprep.subr.mxu0 0.0
  %2874 = vmatpush1.msra.mxu0 %v2861
  %2875 = vmatprep.subr.mxu0 0.0
  %2876 = vmatpush1.msra.mxu0 %v2862
  %2877 = vmatprep.subr.mxu0 0.0
  %2878 = vmatpush1.msra.mxu0 %v2863
  %2879 = vmatprep.subr.mxu0 0.0
  %2880 = vmatpush1.msra.mxu0 %v2864
  %2881 = vmatprep.subr.mxu0 0.0
  %2882 = vmatpush1.msra.mxu0 %v2865
  %2883 = vmatprep.subr.mxu0 0.0
  %2884 = vmatpush1.msra.mxu0 %v2866
  %2885 = vmatprep.subr.mxu0 0.0
  %2886 = vmatpush1.msra.mxu0 %v2867
  %2887 = vmatprep.subr.mxu0 0.0
  %2888 = vmatpush1.msra.mxu0 0.0
  %2889 = vmatprep.subr.mxu0 0.0
  %2890 = vmatpush1.msra.mxu0 0.0
  %2891 = vmatprep.subr.mxu0 0.0
  %2892 = vmatpush1.msra.mxu0 0.0
  %2893 = vmatprep.subr.mxu0 0.0
  %2894 = vmatpush1.msra.mxu0 0.0
  %2895 = vmatprep.subr.mxu0 0.0
  %2896 = vmatpush1.msra.mxu0 0.0
  %2897 = vmatprep.subr.mxu0 0.0
  %2898 = vmatpush1.msra.mxu0 0.0
  %2899 = vmatprep.subr.mxu0 0.0
  %2900 = vmatpush1.msra.mxu0 0.0
  %2901 = vmatprep.subr.mxu0 0.0
  %2902 = vmatpush1.msra.mxu0 0.0
  %2903 = vmatprep.subr.mxu0 0.0
  %2904 = vmatpush1.msra.mxu0 0.0
  %2905 = vmatprep.subr.mxu0 0.0
  %2906 = vmatpush1.msra.mxu0 0.0
  %2907 = vmatprep.subr.mxu0 0.0
  %2908 = vmatpush1.msra.mxu0 0.0
  %2909 = vmatprep.subr.mxu0 0.0
  %2910 = vmatpush1.msra.mxu0 0.0
  %2911 = vmatprep.subr.mxu0 0.0
  %2912 = vmatpush1.msra.mxu0 0.0
  %2913 = vmatprep.subr.mxu0 0.0
  %2914 = vmatpush1.msra.mxu0 0.0
  %2915 = vmatprep.subr.mxu0 0.0
  %2916 = vmatpush1.msra.mxu0 0.0
  %2917 = vmatprep.subr.mxu0 0.0
  %2918 = vmatpush1.msra.mxu0 0.0
  %2919 = vmatprep.subr.mxu0 0.0
  %2920 = vmatpush1.msra.mxu0 0.0
  %2921 = vmatprep.subr.mxu0 0.0
  %2922 = vmatpush1.msra.mxu0 0.0
  %2923 = vmatprep.subr.mxu0 0.0
  %2924 = vmatpush1.msra.mxu0 0.0
  %2925 = vmatprep.subr.mxu0 0.0
  %2926 = vmatpush1.msra.mxu0 0.0
  %2927 = vmatprep.subr.mxu0 0.0
  %2928 = vmatpush1.msra.mxu0 0.0
  %2929 = vmatprep.subr.mxu0 0.0
  %2930 = vmatpush1.msra.mxu0 0.0
  %2931 = vmatprep.subr.mxu0 0.0
  %2932 = vmatpush1.msra.mxu0 0.0
  %2933 = vmatprep.subr.mxu0 0.0
  %2934 = vmatpush1.msra.mxu0 0.0
  %2935 = vmatprep.mubr.f32.mxu0 0.0
  %2936 = vmatmul.mubr.f32.gmra.mrb[0].mxu0 %v2869
  %v2937 = vpop.f32.mrb[0].mxu0
  %v2938 = vadd.f32 0.0, %v2937
  %v2939 = vpop.f32.mrb[0].mxu0
  %2940 = vdwg.mxu0
  %v2942 = vsel %vm70, %v141, 0
  %2944 = vmatprep.subr.mxu0 0.0
  %2945 = vmatpush1.msra.mxu0 %v2859
  %2946 = vmatprep.subr.mxu0 0.0
  %2947 = vmatpush1.msra.mxu0 0.0
  %2948 = vmatprep.subr.mxu0 0.0
  %2949 = vmatpush1.msra.mxu0 0.0
  %2950 = vmatprep.subr.mxu0 0.0
  %2951 = vmatpush1.msra.mxu0 0.0
  %2952 = vmatprep.subr.mxu0 0.0
  %2953 = vmatpush1.msra.mxu0 0.0
  %2954 = vmatprep.subr.mxu0 0.0
  %2955 = vmatpush1.msra.mxu0 0.0
  %2956 = vmatprep.subr.mxu0 0.0
  %2957 = vmatpush1.msra.mxu0 0.0
  %2958 = vmatprep.subr.mxu0 0.0
  %2959 = vmatpush1.msra.mxu0 0.0
  %2960 = vmatprep.subr.mxu0 0.0
  %2961 = vmatpush1.msra.mxu0 0.0
  %2962 = vmatprep.subr.mxu0 0.0
  %2963 = vmatpush1.msra.mxu0 0.0
  %2964 = vmatprep.subr.mxu0 0.0
  %2965 = vmatpush1.msra.mxu0 0.0
  %2966 = vmatprep.subr.mxu0 0.0
  %2967 = vmatpush1.msra.mxu0 0.0
  %2968 = vmatprep.subr.mxu0 0.0
  %2969 = vmatpush1.msra.mxu0 0.0
  %2970 = vmatprep.subr.mxu0 0.0
  %2971 = vmatpush1.msra.mxu0 0.0
  %2972 = vmatprep.subr.mxu0 0.0
  %2973 = vmatpush1.msra.mxu0 0.0
  %2974 = vmatprep.subr.mxu0 0.0
  %2975 = vmatpush1.msra.mxu0 0.0
  %2976 = vmatprep.subr.mxu0 0.0
  %2977 = vmatpush1.msra.mxu0 0.0
  %2978 = vmatprep.subr.mxu0 0.0
  %2979 = vmatpush1.msra.mxu0 0.0
  %2980 = vmatprep.subr.mxu0 0.0
  %2981 = vmatpush1.msra.mxu0 0.0
  %2982 = vmatprep.subr.mxu0 0.0
  %2983 = vmatpush1.msra.mxu0 0.0
  %2984 = vmatprep.subr.mxu0 0.0
  %2985 = vmatpush1.msra.mxu0 0.0
  %2986 = vmatprep.subr.mxu0 0.0
  %2987 = vmatpush1.msra.mxu0 0.0
  %2988 = vmatprep.subr.mxu0 0.0
  %2989 = vmatpush1.msra.mxu0 0.0
  %2990 = vmatprep.subr.mxu0 0.0
  %2991 = vmatpush1.msra.mxu0 0.0
  %2992 = vmatprep.subr.mxu0 0.0
  %2993 = vmatpush1.msra.mxu0 0.0
  %2994 = vmatprep.subr.mxu0 0.0
  %2995 = vmatpush1.msra.mxu0 0.0
  %2996 = vmatprep.subr.mxu0 0.0
  %2997 = vmatpush1.msra.mxu0 0.0
  %2998 = vmatprep.subr.mxu0 0.0
  %2999 = vmatpush1.msra.mxu0 0.0
  %3000 = vmatprep.subr.mxu0 0.0
  %3001 = vmatpush1.msra.mxu0 0.0
  %3002 = vmatprep.subr.mxu0 0.0
  %3003 = vmatpush1.msra.mxu0 0.0
  %3004 = vmatprep.subr.mxu0 0.0
  %3005 = vmatpush1.msra.mxu0 0.0
  %3006 = vmatprep.subr.mxu0 0.0
  %3007 = vmatpush1.msra.mxu0 0.0
  %3008 = vmatprep.mubr.f32.mxu0 0.0
  %3009 = vmatmul.mubr.f32.gmra.mrb[0].mxu0 %v2942
  %v3010 = vpop.f32.mrb[0].mxu0
  %v3011 = vadd.f32 %v2938, %v3010
  %v3012 = vpop.f32.mrb[0].mxu0
  %3013 = vdwg.mxu0
  %v3014 = vld [vmem:[%s9] sm:$0xff]
  %v3015 = vld [vmem:[%s9 + $0x8] sm:$0xff]
  %v3016 = vld [vmem:[%s9 + $0x10] sm:$0xff]
  %v3017 = vld [vmem:[%s9 + $0x18] sm:$0xff]
  %v3018 = vld [vmem:[%s9 + $0x20] sm:$0xff]
  %v3019 = vld [vmem:[%s9 + $0x28] sm:$0xff]
  %v3020 = vld [vmem:[%s9 + $0x30] sm:$0xff]
  %v3021 = vld [vmem:[%s9 + $0x38] sm:$0xff]
  %v3022 = vld [vmem:[%s9 + $0x40] sm:$0xff]
  %v3023 = vld [vmem:[%s9 + $0x48] sm:$0xff]
  %v3024 = vld [vmem:[%s9 + $0x50] sm:$0xff]
  %v3025 = vld [vmem:[%s9 + $0x58] sm:$0xff]
  %v3026 = vld [vmem:[%s9 + $0x60] sm:$0xff]
  %v3027 = vld [vmem:[%s9 + $0x68] sm:$0xff]
  %v3028 = vld [vmem:[%s9 + $0x70] sm:$0xff]
  %v3029 = vld [vmem:[%s9 + $0x78] sm:$0xff]
  %3030 = vmatprep.subr.mxu0 0.0
  %3031 = vmatpush1.msra.mxu0 %v3014
  %3032 = vmatprep.subr.mxu0 0.0
  %3033 = vmatpush1.msra.mxu0 %v3015
  %3034 = vmatprep.subr.mxu0 0.0
  %3035 = vmatpush1.msra.mxu0 %v3016
  %3036 = vmatprep.subr.mxu0 0.0
  %3037 = vmatpush1.msra.mxu0 %v3017
  %3038 = vmatprep.subr.mxu0 0.0
  %3039 = vmatpush1.msra.mxu0 %v3018
  %3040 = vmatprep.subr.mxu0 0.0
  %3041 = vmatpush1.msra.mxu0 %v3019
  %3042 = vmatprep.subr.mxu0 0.0
  %3043 = vmatpush1.msra.mxu0 %v3020
  %3044 = vmatprep.subr.mxu0 0.0
  %3045 = vmatpush1.msra.mxu0 %v3021
  %3046 = vmatprep.subr.mxu0 0.0
  %3047 = vmatpush1.msra.mxu0 %v3022
  %3048 = vmatprep.subr.mxu0 0.0
  %3049 = vmatpush1.msra.mxu0 %v3023
  %3050 = vmatprep.subr.mxu0 0.0
  %3051 = vmatpush1.msra.mxu0 %v3024
  %3052 = vmatprep.subr.mxu0 0.0
  %3053 = vmatpush1.msra.mxu0 %v3025
  %3054 = vmatprep.subr.mxu0 0.0
  %3055 = vmatpush1.msra.mxu0 %v3026
  %3056 = vmatprep.subr.mxu0 0.0
  %3057 = vmatpush1.msra.mxu0 %v3027
  %3058 = vmatprep.subr.mxu0 0.0
  %3059 = vmatpush1.msra.mxu0 %v3028
  %3060 = vmatprep.subr.mxu0 0.0
  %3061 = vmatpush1.msra.mxu0 %v3029
  %3062 = vmatprep.subr.mxu0 0.0
  %3063 = vmatpush1.msra.mxu0 0.0
  %3064 = vmatprep.subr.mxu0 0.0
  %3065 = vmatpush1.msra.mxu0 0.0
  %3066 = vmatprep.subr.mxu0 0.0
  %3067 = vmatpush1.msra.mxu0 0.0
  %3068 = vmatprep.subr.mxu0 0.0
  %3069 = vmatpush1.msra.mxu0 0.0
  %3070 = vmatprep.subr.mxu0 0.0
  %3071 = vmatpush1.msra.mxu0 0.0
  %3072 = vmatprep.subr.mxu0 0.0
  %3073 = vmatpush1.msra.mxu0 0.0
  %3074 = vmatprep.subr.mxu0 0.0
  %3075 = vmatpush1.msra.mxu0 0.0
  %3076 = vmatprep.subr.mxu0 0.0
  %3077 = vmatpush1.msra.mxu0 0.0
  %3078 = vmatprep.subr.mxu0 0.0
  %3079 = vmatpush1.msra.mxu0 0.0
  %3080 = vmatprep.subr.mxu0 0.0
  %3081 = vmatpush1.msra.mxu0 0.0
  %3082 = vmatprep.subr.mxu0 0.0
  %3083 = vmatpush1.msra.mxu0 0.0
  %3084 = vmatprep.subr.mxu0 0.0
  %3085 = vmatpush1.msra.mxu0 0.0
  %3086 = vmatprep.subr.mxu0 0.0
  %3087 = vmatpush1.msra.mxu0 0.0
  %3088 = vmatprep.subr.mxu0 0.0
  %3089 = vmatpush1.msra.mxu0 0.0
  %3090 = vmatprep.subr.mxu0 0.0
  %3091 = vmatpush1.msra.mxu0 0.0
  %3092 = vmatprep.subr.mxu0 0.0
  %3093 = vmatpush1.msra.mxu0 0.0
  %3094 = vmatprep.mubr.f32.mxu0 0.0
  %3095 = vmatmul.mubr.f32.gmra.mrb[0].mxu0 %v2858
  %v3096 = vpop.f32.mrb[0].mxu0
  %v3097 = vadd.f32 0.0, %v3096
  %v3098 = vpop.f32.mrb[0].mxu0
  %3099 = vdwg.mxu0
  %v3100 = vadd.f32 %v3011, %v3097
  %v3101 = vld [vmem:[%s10] sm:$0x1]
  %v3102 = vadd.f32 %v3100, %v3101
  %vm3103 = vcmask 122880
  %3104 = vst.msk [vmem:[%s11] sm:$0x1] %vm3103, %v3102
  // Predicated region
  $region46: #{syntax_model_forward.1} parent=0 // pred_check
    _
  $region47: #{syntax_model_forward.1} parent=0 // pred_check_branch
    %3106 = sbr.rel (0) target = $region49
  $region48: #{syntax_model_forward.1} parent=0 // pred_region
    _
  $region49: #{syntax_model_forward.1} parent=0 // pred_fallthru
    _
  // Predicated region
  $region50: #{syntax_model_forward.1} parent=0 // pred_check
    _
  $region51: #{syntax_model_forward.1} parent=0 // pred_check_branch
    %3108 = sbr.rel (0) target = $region53
  $region52: #{syntax_model_forward.1} parent=0 // pred_region
    _
  $region53: #{syntax_model_forward.1} parent=0 // pred_fallthru
    _

</llo_original>
